<compile_context>
chip_gen: v5e
topology: v5e:2x2
jax: 0.10.0
libtpu: 0.0.40
codegen_flags: <defaults>
</compile_context>

<pallas_src>
import functools

import jax
import jax.numpy as jnp
from jax.experimental import pallas as pl
from jax.experimental.pallas import tpu as pltpu


# ----------------------------------------------------------------------------
# Pallas kernel: multi-stream tapped conv (taps folded into K, fused bias/ReLU)
# ----------------------------------------------------------------------------
def _conv_kernel(*refs, n_streams, tap_offsets, relu):
    # refs layout: x_0, w_0, x_1, w_1, ..., b, out
    #   x_s : (1, Cp_s, L_s)      padded + row-flattened input stream
    #   w_s : (Cout, T*Cp_s)      per-stream weight, K index = tap*Cp_s + c
    #   b   : (Cout, 1)
    #   out : (1, Cout, P)        P = H*(W+2) for 3x3, H*W for 1x1
    b_ref = refs[2 * n_streams]
    o_ref = refs[2 * n_streams + 1]
    cout, p = o_ref.shape[1], o_ref.shape[2]

    acc = jnp.zeros((cout, p), jnp.float32)
    for s in range(n_streams):
        x_ref = refs[2 * s]
        w_ref = refs[2 * s + 1]
        # 9 (or 1) shifted views of the padded tile: static lane slices in VMEM.
        taps = [x_ref[0, :, off:off + p] for off in tap_offsets]
        xk = taps[0] if len(taps) == 1 else jnp.concatenate(taps, axis=0)
        acc = acc + jnp.dot(w_ref[...].astype(jnp.bfloat16),
                            xk.astype(jnp.bfloat16),
                            preferred_element_type=jnp.float32)
    acc = acc + b_ref[...]                      # (Cout,1) broadcasts over lanes
    if relu:
        acc = jnp.maximum(acc, 0.0)
    o_ref[0] = acc.astype(o_ref.dtype)


def _conv_pallas(xs, ws, b, tap_offsets, p, relu):
    """xs[s]: (N, Cp_s, L_s) f32; ws[s]: (Cout, T*Cp_s) f32; b: (Cout,)."""
    n = xs[0].shape[0]
    cout = ws[0].shape[0]
    in_specs, args = [], []
    for xp, wk in zip(xs, ws):
        in_specs.append(pl.BlockSpec((1,) + xp.shape[1:], lambda i: (i, 0, 0)))
        in_specs.append(pl.BlockSpec(wk.shape, lambda i: (0, 0)))
        args += [xp, wk]
    in_specs.append(pl.BlockSpec((cout, 1), lambda i: (0, 0)))
    args.append(b.reshape(cout, 1))

    return pl.pallas_call(
        functools.partial(_conv_kernel, n_streams=len(xs),
                          tap_offsets=tap_offsets, relu=relu),
        out_shape=jax.ShapeDtypeStruct((n, cout, p), jnp.float32),
        grid=(n,),
        in_specs=in_specs,
        out_specs=pl.BlockSpec((1, cout, p), lambda i: (i, 0, 0)),
        compiler_params=pltpu.CompilerParams(
            dimension_semantics=("parallel",),
            vmem_limit_bytes=32 * 1024 * 1024),
    )(*args)


# ----------------------------------------------------------------------------
# Conv wrappers (layout prep is glue; all FLOPs run inside the kernel)
# ----------------------------------------------------------------------------
def _ceil8(c):
    return -(-c // 8) * 8


def conv3x3_relu(streams, b):
    """streams: list of (x (N,C,H,W), w (3,3,C,Cout)); SAME pad, stride 1, ReLU.

    Multiple streams share one f32 accumulator (used to fuse the decoder
    skip-concat without materializing the concatenated tensor)."""
    n, _, h, w_sp = streams[0][0].shape
    cout = streams[0][1].shape[-1]
    wp = w_sp + 2                       # padded row width
    p = h * wp                          # output columns (incl. 2 garbage cols/row)
    tap_offsets = tuple(dy * wp + dx for dy in range(3) for dx in range(3))

    xs, ws = [], []
    for x, w in streams:
        c = x.shape[1]
        cp = _ceil8(c)
        # pad: channels -> multiple of 8, rows -> (1 top, 2 bottom), cols -> (1,1)
        xp = jnp.pad(x, ((0, 0), (0, cp - c), (1, 2), (1, 1)))
        xs.append(xp.reshape(n, cp, (h + 3) * wp))
        wk = jnp.pad(w, ((0, 0), (0, 0), (0, cp - c), (0, 0)))       # (3,3,Cp,Cout)
        ws.append(jnp.transpose(wk, (3, 0, 1, 2)).reshape(cout, 9 * cp))
    out = _conv_pallas(xs, ws, b, tap_offsets, p, relu=True)
    # drop the 2 garbage columns per row introduced by the flattened-pad trick
    return out.reshape(n, cout, h, wp)[:, :, :, :w_sp]


def conv1x1(x, w, b):
    """x: (N,C,H,W); w: (Cin,Cout); bias; no activation (PosNet.final_layer)."""
    n, c, h, w_sp = x.shape
    cout = w.shape[-1]
    cp = _ceil8(c)
    p = h * w_sp
    xp = jnp.pad(x, ((0, 0), (0, cp - c), (0, 0), (0, 0))).reshape(n, cp, p)
    wk = jnp.transpose(jnp.pad(w, ((0, cp - c), (0, 0))), (1, 0))    # (Cout, Cp)
    out = _conv_pallas([xp], [wk], b, (0,), p, relu=False)
    return out.reshape(n, cout, h, w_sp)


def maxpool2x2(x):
    # reviewer-endorsed plain-jnp pool: XLA fuses the window gather + max,
    # avoiding an extra pallas_call launch and an HBM re-gather.
    n, c, h, w = x.shape
    return x.reshape(n, c, h // 2, 2, w // 2, 2).max(axis=(3, 5))


def upsample2x(x):
    # nearest-neighbour x2 upsample (pure data movement -> glue)
    return jnp.repeat(jnp.repeat(x, 2, axis=2), 2, axis=3)


# ----------------------------------------------------------------------------
# PosNet forward (stays in NCHW the whole time -- no layout transposes)
# ----------------------------------------------------------------------------
def posnet_forward(x_nchw, params):
    h = x_nchw
    skips = []
    # --- Unet backbone: encoder
    for (w, b) in params["enc"]:
        h = conv3x3_relu([(h, w)], b)
        skips.append(h)
        h = maxpool2x2(h)
    # --- bottleneck
    w, b = params["bott"]
    h = conv3x3_relu([(h, w)], b)
    # --- decoder: upsample + (fused) skip-concat + conv
    for (w, b), skip in zip(params["dec"], reversed(skips)):
        h_up = upsample2x(h)
        cu = h_up.shape[1]
        h = conv3x3_relu([(h_up, w[:, :, :cu, :]), (skip, w[:, :, cu:, :])], b)
    # --- final 1x1 Conv2d head (PosNet.final_layer)
    w, b = params["final"]
    return conv1x1(h, w, b)


# ----------------------------------------------------------------------------
# Deterministic parameter init (PyTorch Conv2d-style uniform bounds)
# ----------------------------------------------------------------------------
def _conv_init(key, kh, kw, cin, cout):
    k1, k2 = jax.random.split(key)
    bound = 1.0 / float(jnp.sqrt(kh * kw * cin))
    w = jax.random.uniform(k1, (kh, kw, cin, cout), jnp.float32, -bound, bound)
    b = jax.random.uniform(k2, (cout,), jnp.float32, -bound, bound)
    return w, b


def init_params(key, in_channels, out_channels, hidden_dims):
    n_lvl = len(hidden_dims)
    keys = iter(jax.random.split(key, 2 * n_lvl + 2))
    enc, cin = [], in_channels
    for hd in hidden_dims:
        enc.append(_conv_init(next(keys), 3, 3, cin, hd))
        cin = hd
    bott = _conv_init(next(keys), 3, 3, cin, cin * 2)
    dec, up_c = [], cin * 2
    for hd in reversed(hidden_dims):
        dec.append(_conv_init(next(keys), 3, 3, up_c + hd, hd))
        up_c = hd
    fw, fb = _conv_init(next(keys), 1, 1, up_c, out_channels)
    return {"enc": enc, "bott": bott, "dec": dec,
            "final": (fw.reshape(up_c, out_channels), fb)}


# ----------------------------------------------------------------------------
# Pure-JAX reference (for correctness check)
# ----------------------------------------------------------------------------
def _ref_conv(x, w, b, relu, pad):
    out = jax.lax.conv_general_dilated(
        x, w, window_strides=(1, 1), padding=pad,
        dimension_numbers=("NHWC", "HWIO", "NHWC"),
        precision=jax.lax.Precision.HIGHEST) + b
    return jnp.maximum(out, 0.0) if relu else out


def posnet_reference(x_nchw, params):
    h = jnp.transpose(x_nchw, (0, 2, 3, 1))
    skips = []
    for (w, b) in params["enc"]:
        h = _ref_conv(h, w, b, True, "SAME")
        skips.append(h)
        h = jax.lax.reduce_window(h, -jnp.inf, jax.lax.max,
                                  (1, 2, 2, 1), (1, 2, 2, 1), "VALID")
    w, b = params["bott"]
    h = _ref_conv(h, w, b, True, "SAME")
    for (w, b), skip in zip(params["dec"], reversed(skips)):
        h = jnp.repeat(jnp.repeat(h, 2, axis=1), 2, axis=2)
        h = jnp.concatenate([h, skip], axis=-1)
        h = _ref_conv(h, w, b, True, "SAME")
    w, b = params["final"]
    h = _ref_conv(h, w[None, None], b, False, "VALID")
    return jnp.transpose(h, (0, 3, 1, 2))


# ----------------------------------------------------------------------------
if __name__ == "__main__":
    key = jax.random.PRNGKey(0)
    k_x, k_p = jax.random.split(key)

    N, Cin, H, W = 2, 4, 16, 16
    Cout = 3
    hidden_dims = [8, 16]

    x = jax.random.normal(k_x, (N, Cin, H, W), jnp.float32)
    params = init_params(k_p, Cin, Cout, hidden_dims)

    out = jax.jit(posnet_forward)(x, params)
    out = jax.block_until_ready(out)
    assert out.shape == (N, Cout, H, W), out.shape

    ref = posnet_reference(x, params)
    # bf16 MXU operands with f32 accumulation -> slightly looser tolerance
    assert jnp.allclose(out, ref, atol=2e-2, rtol=2e-2), "mismatch vs reference"

    print("KERNEL_OK")
</pallas_src>

<mosaic_0001>
module attributes {stable_mosaic.version = 11 : i64} {
  func.func @_conv_kernel(%arg0: i32, %arg1: memref<1x8x342xf32, #tpu.memory_space<vmem>>, %arg2: memref<8x72xf32, #tpu.memory_space<vmem>>, %arg3: memref<8x1xf32, #tpu.memory_space<vmem>>, %arg4: memref<1x8x288xf32, #tpu.memory_space<vmem>>) attributes {dimension_semantics = [#tpu.dimension_semantics<parallel>], iteration_bounds = array<i64: 2>, scalar_prefetch = 0 : i64, scratch_operands = 0 : i64, tpu.core_type = #tpu.core_type<tc>, window_params = [{transform_indices = @transform_0, window_bounds = array<i64: 1, 8, 342>}, {pipeline_mode = #tpu.pipeline_mode<synchronous>, transform_indices = @transform_1, window_bounds = array<i64: 8, 72>}, {pipeline_mode = #tpu.pipeline_mode<synchronous>, transform_indices = @transform_2, window_bounds = array<i64: 8, 1>}, {transform_indices = @transform_3, window_bounds = array<i64: 1, 8, 288>}]} {
    %cst = arith.constant 0.000000e+00 : f32
    %0 = vector.broadcast %cst : f32 to vector<8x288xf32>
    %c0 = arith.constant 0 : index
    %c0_0 = arith.constant 0 : index
    %c0_1 = arith.constant 0 : index
    %1 = vector.load %arg1[%c0, %c0_0, %c0_1] : memref<1x8x342xf32, #tpu.memory_space<vmem>>, vector<1x8x288xf32>
    %2 = vector.shape_cast %1 : vector<1x8x288xf32> to vector<8x288xf32>
    %c0_2 = arith.constant 0 : index
    %c0_3 = arith.constant 0 : index
    %c1 = arith.constant 1 : index
    %3 = vector.load %arg1[%c0_2, %c0_3, %c1] : memref<1x8x342xf32, #tpu.memory_space<vmem>>, vector<1x8x288xf32>
    %4 = vector.shape_cast %3 : vector<1x8x288xf32> to vector<8x288xf32>
    %c0_4 = arith.constant 0 : index
    %c0_5 = arith.constant 0 : index
    %c2 = arith.constant 2 : index
    %5 = vector.load %arg1[%c0_4, %c0_5, %c2] : memref<1x8x342xf32, #tpu.memory_space<vmem>>, vector<1x8x288xf32>
    %6 = vector.shape_cast %5 : vector<1x8x288xf32> to vector<8x288xf32>
    %c0_6 = arith.constant 0 : index
    %c0_7 = arith.constant 0 : index
    %c18 = arith.constant 18 : index
    %7 = vector.load %arg1[%c0_6, %c0_7, %c18] : memref<1x8x342xf32, #tpu.memory_space<vmem>>, vector<1x8x288xf32>
    %8 = vector.shape_cast %7 : vector<1x8x288xf32> to vector<8x288xf32>
    %c0_8 = arith.constant 0 : index
    %c0_9 = arith.constant 0 : index
    %c19 = arith.constant 19 : index
    %9 = vector.load %arg1[%c0_8, %c0_9, %c19] : memref<1x8x342xf32, #tpu.memory_space<vmem>>, vector<1x8x288xf32>
    %10 = vector.shape_cast %9 : vector<1x8x288xf32> to vector<8x288xf32>
    %c0_10 = arith.constant 0 : index
    %c0_11 = arith.constant 0 : index
    %c20 = arith.constant 20 : index
    %11 = vector.load %arg1[%c0_10, %c0_11, %c20] : memref<1x8x342xf32, #tpu.memory_space<vmem>>, vector<1x8x288xf32>
    %12 = vector.shape_cast %11 : vector<1x8x288xf32> to vector<8x288xf32>
    %c0_12 = arith.constant 0 : index
    %c0_13 = arith.constant 0 : index
    %c36 = arith.constant 36 : index
    %13 = vector.load %arg1[%c0_12, %c0_13, %c36] : memref<1x8x342xf32, #tpu.memory_space<vmem>>, vector<1x8x288xf32>
    %14 = vector.shape_cast %13 : vector<1x8x288xf32> to vector<8x288xf32>
    %c0_14 = arith.constant 0 : index
    %c0_15 = arith.constant 0 : index
    %c37 = arith.constant 37 : index
    %15 = vector.load %arg1[%c0_14, %c0_15, %c37] : memref<1x8x342xf32, #tpu.memory_space<vmem>>, vector<1x8x288xf32>
    %16 = vector.shape_cast %15 : vector<1x8x288xf32> to vector<8x288xf32>
    %c0_16 = arith.constant 0 : index
    %c0_17 = arith.constant 0 : index
    %c38 = arith.constant 38 : index
    %17 = vector.load %arg1[%c0_16, %c0_17, %c38] : memref<1x8x342xf32, #tpu.memory_space<vmem>>, vector<1x8x288xf32>
    %18 = vector.shape_cast %17 : vector<1x8x288xf32> to vector<8x288xf32>
    %19 = tpu.concatenate %2, %4, %6, %8, %10, %12, %14, %16, %18 in 0 : vector<8x288xf32>, vector<8x288xf32>, vector<8x288xf32>, vector<8x288xf32>, vector<8x288xf32>, vector<8x288xf32>, vector<8x288xf32>, vector<8x288xf32>, vector<8x288xf32> -> vector<72x288xf32>
    %c0_18 = arith.constant 0 : index
    %c0_19 = arith.constant 0 : index
    %20 = vector.load %arg2[%c0_18, %c0_19] : memref<8x72xf32, #tpu.memory_space<vmem>>, vector<8x72xf32>
    %21 = arith.truncf %20 : vector<8x72xf32> to vector<8x72xbf16>
    %22 = arith.truncf %19 : vector<72x288xf32> to vector<72x288xbf16>
    %cst_20 = arith.constant dense<0.000000e+00> : vector<8x288xf32>
    %23 = tpu.matmul %21, %22, %cst_20 {dimension_numbers = #tpu.dot_dimension_numbers<[1], [0], [0], [1], [0, 0, 1, 1], [], []>} : vector<8x72xbf16>, vector<72x288xbf16>, vector<8x288xf32> -> vector<8x288xf32>
    %24 = arith.addf %0, %23 : vector<8x288xf32>
    %c0_21 = arith.constant 0 : index
    %c0_22 = arith.constant 0 : index
    %25 = vector.load %arg3[%c0_21, %c0_22] : memref<8x1xf32, #tpu.memory_space<vmem>>, vector<8x1xf32>
    %26 = vector.broadcast %25 : vector<8x1xf32> to vector<8x288xf32>
    %27 = arith.addf %24, %26 : vector<8x288xf32>
    %cst_23 = arith.constant 0.000000e+00 : f32
    %28 = vector.broadcast %cst_23 : f32 to vector<8x288xf32>
    %29 = arith.maximumf %27, %28 : vector<8x288xf32>
    %c0_24 = arith.constant 0 : index
    %c0_25 = arith.constant 0 : index
    %c0_26 = arith.constant 0 : index
    %30 = vector.load %arg4[%c0_24, %c0_25, %c0_26] : memref<1x8x288xf32, #tpu.memory_space<vmem>>, vector<1x8x288xf32>
    %31 = vector.shape_cast %30 : vector<1x8x288xf32> to vector<8x288xf32>
    %32 = vector.shape_cast %29 : vector<8x288xf32> to vector<1x8x288xf32>
    tpu.vector_store %arg4[%c0_24, %c0_25, %c0_26], %32 {strides = array<i32>} : memref<1x8x288xf32, #tpu.memory_space<vmem>>, vector<1x8x288xf32>,
    return
  }
  func.func @transform_0(%arg0: i32) -> (i32, i32, i32) {
    %c0_i32 = arith.constant 0 : i32
    %c0_i32_0 = arith.constant 0 : i32
    %c0_i32_1 = arith.constant 0 : i32
    return %arg0, %c0_i32, %c0_i32_0 : i32, i32, i32
  }
  func.func @transform_1(%arg0: i32) -> (i32, i32) {
    %c0_i32 = arith.constant 0 : i32
    %c0_i32_0 = arith.constant 0 : i32
    %c0_i32_1 = arith.constant 0 : i32
    return %c0_i32, %c0_i32_0 : i32, i32
  }
  func.func @transform_2(%arg0: i32) -> (i32, i32) {
    %c0_i32 = arith.constant 0 : i32
    %c0_i32_0 = arith.constant 0 : i32
    %c0_i32_1 = arith.constant 0 : i32
    return %c0_i32, %c0_i32_0 : i32, i32
  }
  func.func @transform_3(%arg0: i32) -> (i32, i32, i32) {
    %c0_i32 = arith.constant 0 : i32
    %c0_i32_0 = arith.constant 0 : i32
    %c0_i32_1 = arith.constant 0 : i32
    return %arg0, %c0_i32, %c0_i32_0 : i32, i32, i32
  }
}

module attributes {stable_mosaic.version = 11 : i64} {
  func.func @_conv_kernel(%arg0: i32, %arg1: memref<1x8x110xf32, #tpu.memory_space<vmem>>, %arg2: memref<16x72xf32, #tpu.memory_space<vmem>>, %arg3: memref<16x1xf32, #tpu.memory_space<vmem>>, %arg4: memref<1x16x80xf32, #tpu.memory_space<vmem>>) attributes {dimension_semantics = [#tpu.dimension_semantics<parallel>], iteration_bounds = array<i64: 2>, scalar_prefetch = 0 : i64, scratch_operands = 0 : i64, tpu.core_type = #tpu.core_type<tc>, window_params = [{transform_indices = @transform_0, window_bounds = array<i64: 1, 8, 110>}, {pipeline_mode = #tpu.pipeline_mode<synchronous>, transform_indices = @transform_1, window_bounds = array<i64: 16, 72>}, {pipeline_mode = #tpu.pipeline_mode<synchronous>, transform_indices = @transform_2, window_bounds = array<i64: 16, 1>}, {transform_indices = @transform_3, window_bounds = array<i64: 1, 16, 80>}]} {
    %cst = arith.constant 0.000000e+00 : f32
    %0 = vector.broadcast %cst : f32 to vector<16x80xf32>
    %c0 = arith.constant 0 : index
    %c0_0 = arith.constant 0 : index
    %c0_1 = arith.constant 0 : index
    %1 = vector.load %arg1[%c0, %c0_0, %c0_1] : memref<1x8x110xf32, #tpu.memory_space<vmem>>, vector<1x8x80xf32>
    %2 = vector.shape_cast %1 : vector<1x8x80xf32> to vector<8x80xf32>
    %c0_2 = arith.constant 0 : index
    %c0_3 = arith.constant 0 : index
    %c1 = arith.constant 1 : index
    %3 = vector.load %arg1[%c0_2, %c0_3, %c1] : memref<1x8x110xf32, #tpu.memory_space<vmem>>, vector<1x8x80xf32>
    %4 = vector.shape_cast %3 : vector<1x8x80xf32> to vector<8x80xf32>
    %c0_4 = arith.constant 0 : index
    %c0_5 = arith.constant 0 : index
    %c2 = arith.constant 2 : index
    %5 = vector.load %arg1[%c0_4, %c0_5, %c2] : memref<1x8x110xf32, #tpu.memory_space<vmem>>, vector<1x8x80xf32>
    %6 = vector.shape_cast %5 : vector<1x8x80xf32> to vector<8x80xf32>
    %c0_6 = arith.constant 0 : index
    %c0_7 = arith.constant 0 : index
    %c10 = arith.constant 10 : index
    %7 = vector.load %arg1[%c0_6, %c0_7, %c10] : memref<1x8x110xf32, #tpu.memory_space<vmem>>, vector<1x8x80xf32>
    %8 = vector.shape_cast %7 : vector<1x8x80xf32> to vector<8x80xf32>
    %c0_8 = arith.constant 0 : index
    %c0_9 = arith.constant 0 : index
    %c11 = arith.constant 11 : index
    %9 = vector.load %arg1[%c0_8, %c0_9, %c11] : memref<1x8x110xf32, #tpu.memory_space<vmem>>, vector<1x8x80xf32>
    %10 = vector.shape_cast %9 : vector<1x8x80xf32> to vector<8x80xf32>
    %c0_10 = arith.constant 0 : index
    %c0_11 = arith.constant 0 : index
    %c12 = arith.constant 12 : index
    %11 = vector.load %arg1[%c0_10, %c0_11, %c12] : memref<1x8x110xf32, #tpu.memory_space<vmem>>, vector<1x8x80xf32>
    %12 = vector.shape_cast %11 : vector<1x8x80xf32> to vector<8x80xf32>
    %c0_12 = arith.constant 0 : index
    %c0_13 = arith.constant 0 : index
    %c20 = arith.constant 20 : index
    %13 = vector.load %arg1[%c0_12, %c0_13, %c20] : memref<1x8x110xf32, #tpu.memory_space<vmem>>, vector<1x8x80xf32>
    %14 = vector.shape_cast %13 : vector<1x8x80xf32> to vector<8x80xf32>
    %c0_14 = arith.constant 0 : index
    %c0_15 = arith.constant 0 : index
    %c21 = arith.constant 21 : index
    %15 = vector.load %arg1[%c0_14, %c0_15, %c21] : memref<1x8x110xf32, #tpu.memory_space<vmem>>, vector<1x8x80xf32>
    %16 = vector.shape_cast %15 : vector<1x8x80xf32> to vector<8x80xf32>
    %c0_16 = arith.constant 0 : index
    %c0_17 = arith.constant 0 : index
    %c22 = arith.constant 22 : index
    %17 = vector.load %arg1[%c0_16, %c0_17, %c22] : memref<1x8x110xf32, #tpu.memory_space<vmem>>, vector<1x8x80xf32>
    %18 = vector.shape_cast %17 : vector<1x8x80xf32> to vector<8x80xf32>
    %19 = tpu.concatenate %2, %4, %6, %8, %10, %12, %14, %16, %18 in 0 : vector<8x80xf32>, vector<8x80xf32>, vector<8x80xf32>, vector<8x80xf32>, vector<8x80xf32>, vector<8x80xf32>, vector<8x80xf32>, vector<8x80xf32>, vector<8x80xf32> -> vector<72x80xf32>
    %c0_18 = arith.constant 0 : index
    %c0_19 = arith.constant 0 : index
    %20 = vector.load %arg2[%c0_18, %c0_19] : memref<16x72xf32, #tpu.memory_space<vmem>>, vector<16x72xf32>
    %21 = arith.truncf %20 : vector<16x72xf32> to vector<16x72xbf16>
    %22 = arith.truncf %19 : vector<72x80xf32> to vector<72x80xbf16>
    %cst_20 = arith.constant dense<0.000000e+00> : vector<16x80xf32>
    %23 = tpu.matmul %21, %22, %cst_20 {dimension_numbers = #tpu.dot_dimension_numbers<[1], [0], [0], [1], [0, 0, 1, 1], [], []>} : vector<16x72xbf16>, vector<72x80xbf16>, vector<16x80xf32> -> vector<16x80xf32>
    %24 = arith.addf %0, %23 : vector<16x80xf32>
    %c0_21 = arith.constant 0 : index
    %c0_22 = arith.constant 0 : index
    %25 = vector.load %arg3[%c0_21, %c0_22] : memref<16x1xf32, #tpu.memory_space<vmem>>, vector<16x1xf32>
    %26 = vector.broadcast %25 : vector<16x1xf32> to vector<16x80xf32>
    %27 = arith.addf %24, %26 : vector<16x80xf32>
    %cst_23 = arith.constant 0.000000e+00 : f32
    %28 = vector.broadcast %cst_23 : f32 to vector<16x80xf32>
    %29 = arith.maximumf %27, %28 : vector<16x80xf32>
    %c0_24 = arith.constant 0 : index
    %c0_25 = arith.constant 0 : index
    %c0_26 = arith.constant 0 : index
    %30 = vector.load %arg4[%c0_24, %c0_25, %c0_26] : memref<1x16x80xf32, #tpu.memory_space<vmem>>, vector<1x16x80xf32>
    %31 = vector.shape_cast %30 : vector<1x16x80xf32> to vector<16x80xf32>
    %32 = vector.shape_cast %29 : vector<16x80xf32> to vector<1x16x80xf32>
    tpu.vector_store %arg4[%c0_24, %c0_25, %c0_26], %32 {strides = array<i32>} : memref<1x16x80xf32, #tpu.memory_space<vmem>>, vector<1x16x80xf32>,
    return
  }
  func.func @transform_0(%arg0: i32) -> (i32, i32, i32) {
    %c0_i32 = arith.constant 0 : i32
    %c0_i32_0 = arith.constant 0 : i32
    %c0_i32_1 = arith.constant 0 : i32
    return %arg0, %c0_i32, %c0_i32_0 : i32, i32, i32
  }
  func.func @transform_1(%arg0: i32) -> (i32, i32) {
    %c0_i32 = arith.constant 0 : i32
    %c0_i32_0 = arith.constant 0 : i32
    %c0_i32_1 = arith.constant 0 : i32
    return %c0_i32, %c0_i32_0 : i32, i32
  }
  func.func @transform_2(%arg0: i32) -> (i32, i32) {
    %c0_i32 = arith.constant 0 : i32
    %c0_i32_0 = arith.constant 0 : i32
    %c0_i32_1 = arith.constant 0 : i32
    return %c0_i32, %c0_i32_0 : i32, i32
  }
  func.func @transform_3(%arg0: i32) -> (i32, i32, i32) {
    %c0_i32 = arith.constant 0 : i32
    %c0_i32_0 = arith.constant 0 : i32
    %c0_i32_1 = arith.constant 0 : i32
    return %arg0, %c0_i32, %c0_i32_0 : i32, i32, i32
  }
}

module attributes {stable_mosaic.version = 11 : i64} {
  func.func @_conv_kernel(%arg0: i32, %arg1: memref<1x16x42xf32, #tpu.memory_space<vmem>>, %arg2: memref<32x144xf32, #tpu.memory_space<vmem>>, %arg3: memref<32x1xf32, #tpu.memory_space<vmem>>, %arg4: memref<1x32x24xf32, #tpu.memory_space<vmem>>) attributes {dimension_semantics = [#tpu.dimension_semantics<parallel>], iteration_bounds = array<i64: 2>, scalar_prefetch = 0 : i64, scratch_operands = 0 : i64, tpu.core_type = #tpu.core_type<tc>, window_params = [{transform_indices = @transform_0, window_bounds = array<i64: 1, 16, 42>}, {pipeline_mode = #tpu.pipeline_mode<synchronous>, transform_indices = @transform_1, window_bounds = array<i64: 32, 144>}, {pipeline_mode = #tpu.pipeline_mode<synchronous>, transform_indices = @transform_2, window_bounds = array<i64: 32, 1>}, {transform_indices = @transform_3, window_bounds = array<i64: 1, 32, 24>}]} {
    %cst = arith.constant 0.000000e+00 : f32
    %0 = vector.broadcast %cst : f32 to vector<32x24xf32>
    %c0 = arith.constant 0 : index
    %c0_0 = arith.constant 0 : index
    %c0_1 = arith.constant 0 : index
    %1 = vector.load %arg1[%c0, %c0_0, %c0_1] : memref<1x16x42xf32, #tpu.memory_space<vmem>>, vector<1x16x24xf32>
    %2 = vector.shape_cast %1 : vector<1x16x24xf32> to vector<16x24xf32>
    %c0_2 = arith.constant 0 : index
    %c0_3 = arith.constant 0 : index
    %c1 = arith.constant 1 : index
    %3 = vector.load %arg1[%c0_2, %c0_3, %c1] : memref<1x16x42xf32, #tpu.memory_space<vmem>>, vector<1x16x24xf32>
    %4 = vector.shape_cast %3 : vector<1x16x24xf32> to vector<16x24xf32>
    %c0_4 = arith.constant 0 : index
    %c0_5 = arith.constant 0 : index
    %c2 = arith.constant 2 : index
    %5 = vector.load %arg1[%c0_4, %c0_5, %c2] : memref<1x16x42xf32, #tpu.memory_space<vmem>>, vector<1x16x24xf32>
    %6 = vector.shape_cast %5 : vector<1x16x24xf32> to vector<16x24xf32>
    %c0_6 = arith.constant 0 : index
    %c0_7 = arith.constant 0 : index
    %c6 = arith.constant 6 : index
    %7 = vector.load %arg1[%c0_6, %c0_7, %c6] : memref<1x16x42xf32, #tpu.memory_space<vmem>>, vector<1x16x24xf32>
    %8 = vector.shape_cast %7 : vector<1x16x24xf32> to vector<16x24xf32>
    %c0_8 = arith.constant 0 : index
    %c0_9 = arith.constant 0 : index
    %c7 = arith.constant 7 : index
    %9 = vector.load %arg1[%c0_8, %c0_9, %c7] : memref<1x16x42xf32, #tpu.memory_space<vmem>>, vector<1x16x24xf32>
    %10 = vector.shape_cast %9 : vector<1x16x24xf32> to vector<16x24xf32>
    %c0_10 = arith.constant 0 : index
    %c0_11 = arith.constant 0 : index
    %c8 = arith.constant 8 : index
    %11 = vector.load %arg1[%c0_10, %c0_11, %c8] : memref<1x16x42xf32, #tpu.memory_space<vmem>>, vector<1x16x24xf32>
    %12 = vector.shape_cast %11 : vector<1x16x24xf32> to vector<16x24xf32>
    %c0_12 = arith.constant 0 : index
    %c0_13 = arith.constant 0 : index
    %c12 = arith.constant 12 : index
    %13 = vector.load %arg1[%c0_12, %c0_13, %c12] : memref<1x16x42xf32, #tpu.memory_space<vmem>>, vector<1x16x24xf32>
    %14 = vector.shape_cast %13 : vector<1x16x24xf32> to vector<16x24xf32>
    %c0_14 = arith.constant 0 : index
    %c0_15 = arith.constant 0 : index
    %c13 = arith.constant 13 : index
    %15 = vector.load %arg1[%c0_14, %c0_15, %c13] : memref<1x16x42xf32, #tpu.memory_space<vmem>>, vector<1x16x24xf32>
    %16 = vector.shape_cast %15 : vector<1x16x24xf32> to vector<16x24xf32>
    %c0_16 = arith.constant 0 : index
    %c0_17 = arith.constant 0 : index
    %c14 = arith.constant 14 : index
    %17 = vector.load %arg1[%c0_16, %c0_17, %c14] : memref<1x16x42xf32, #tpu.memory_space<vmem>>, vector<1x16x24xf32>
    %18 = vector.shape_cast %17 : vector<1x16x24xf32> to vector<16x24xf32>
    %19 = tpu.concatenate %2, %4, %6, %8, %10, %12, %14, %16, %18 in 0 : vector<16x24xf32>, vector<16x24xf32>, vector<16x24xf32>, vector<16x24xf32>, vector<16x24xf32>, vector<16x24xf32>, vector<16x24xf32>, vector<16x24xf32>, vector<16x24xf32> -> vector<144x24xf32>
    %c0_18 = arith.constant 0 : index
    %c0_19 = arith.constant 0 : index
    %20 = vector.load %arg2[%c0_18, %c0_19] : memref<32x144xf32, #tpu.memory_space<vmem>>, vector<32x144xf32>
    %21 = arith.truncf %20 : vector<32x144xf32> to vector<32x144xbf16>
    %22 = arith.truncf %19 : vector<144x24xf32> to vector<144x24xbf16>
    %cst_20 = arith.constant dense<0.000000e+00> : vector<32x24xf32>
    %23 = tpu.matmul %21, %22, %cst_20 {dimension_numbers = #tpu.dot_dimension_numbers<[1], [0], [0], [1], [0, 0, 1, 1], [], []>} : vector<32x144xbf16>, vector<144x24xbf16>, vector<32x24xf32> -> vector<32x24xf32>
    %24 = arith.addf %0, %23 : vector<32x24xf32>
    %c0_21 = arith.constant 0 : index
    %c0_22 = arith.constant 0 : index
    %25 = vector.load %arg3[%c0_21, %c0_22] : memref<32x1xf32, #tpu.memory_space<vmem>>, vector<32x1xf32>
    %26 = vector.broadcast %25 : vector<32x1xf32> to vector<32x24xf32>
    %27 = arith.addf %24, %26 : vector<32x24xf32>
    %cst_23 = arith.constant 0.000000e+00 : f32
    %28 = vector.broadcast %cst_23 : f32 to vector<32x24xf32>
    %29 = arith.maximumf %27, %28 : vector<32x24xf32>
    %c0_24 = arith.constant 0 : index
    %c0_25 = arith.constant 0 : index
    %c0_26 = arith.constant 0 : index
    %30 = vector.load %arg4[%c0_24, %c0_25, %c0_26] : memref<1x32x24xf32, #tpu.memory_space<vmem>>, vector<1x32x24xf32>
    %31 = vector.shape_cast %30 : vector<1x32x24xf32> to vector<32x24xf32>
    %32 = vector.shape_cast %29 : vector<32x24xf32> to vector<1x32x24xf32>
    tpu.vector_store %arg4[%c0_24, %c0_25, %c0_26], %32 {strides = array<i32>} : memref<1x32x24xf32, #tpu.memory_space<vmem>>, vector<1x32x24xf32>,
    return
  }
  func.func @transform_0(%arg0: i32) -> (i32, i32, i32) {
    %c0_i32 = arith.constant 0 : i32
    %c0_i32_0 = arith.constant 0 : i32
    %c0_i32_1 = arith.constant 0 : i32
    return %arg0, %c0_i32, %c0_i32_0 : i32, i32, i32
  }
  func.func @transform_1(%arg0: i32) -> (i32, i32) {
    %c0_i32 = arith.constant 0 : i32
    %c0_i32_0 = arith.constant 0 : i32
    %c0_i32_1 = arith.constant 0 : i32
    return %c0_i32, %c0_i32_0 : i32, i32
  }
  func.func @transform_2(%arg0: i32) -> (i32, i32) {
    %c0_i32 = arith.constant 0 : i32
    %c0_i32_0 = arith.constant 0 : i32
    %c0_i32_1 = arith.constant 0 : i32
    return %c0_i32, %c0_i32_0 : i32, i32
  }
  func.func @transform_3(%arg0: i32) -> (i32, i32, i32) {
    %c0_i32 = arith.constant 0 : i32
    %c0_i32_0 = arith.constant 0 : i32
    %c0_i32_1 = arith.constant 0 : i32
    return %arg0, %c0_i32, %c0_i32_0 : i32, i32, i32
  }
}

module attributes {stable_mosaic.version = 11 : i64} {
  func.func @_conv_kernel(%arg0: i32, %arg1: memref<1x32x110xf32, #tpu.memory_space<vmem>>, %arg2: memref<16x288xf32, #tpu.memory_space<vmem>>, %arg3: memref<1x16x110xf32, #tpu.memory_space<vmem>>, %arg4: memref<16x144xf32, #tpu.memory_space<vmem>>, %arg5: memref<16x1xf32, #tpu.memory_space<vmem>>, %arg6: memref<1x16x80xf32, #tpu.memory_space<vmem>>) attributes {dimension_semantics = [#tpu.dimension_semantics<parallel>], iteration_bounds = array<i64: 2>, scalar_prefetch = 0 : i64, scratch_operands = 0 : i64, tpu.core_type = #tpu.core_type<tc>, window_params = [{transform_indices = @transform_0, window_bounds = array<i64: 1, 32, 110>}, {pipeline_mode = #tpu.pipeline_mode<synchronous>, transform_indices = @transform_1, window_bounds = array<i64: 16, 288>}, {transform_indices = @transform_2, window_bounds = array<i64: 1, 16, 110>}, {pipeline_mode = #tpu.pipeline_mode<synchronous>, transform_indices = @transform_3, window_bounds = array<i64: 16, 144>}, {pipeline_mode = #tpu.pipeline_mode<synchronous>, transform_indices = @transform_4, window_bounds = array<i64: 16, 1>}, {transform_indices = @transform_5, window_bounds = array<i64: 1, 16, 80>}]} {
    %cst = arith.constant 0.000000e+00 : f32
    %0 = vector.broadcast %cst : f32 to vector<16x80xf32>
    %c0 = arith.constant 0 : index
    %c0_0 = arith.constant 0 : index
    %c0_1 = arith.constant 0 : index
    %1 = vector.load %arg1[%c0, %c0_0, %c0_1] : memref<1x32x110xf32, #tpu.memory_space<vmem>>, vector<1x32x80xf32>
    %2 = vector.shape_cast %1 : vector<1x32x80xf32> to vector<32x80xf32>
    %c0_2 = arith.constant 0 : index
    %c0_3 = arith.constant 0 : index
    %c1 = arith.constant 1 : index
    %3 = vector.load %arg1[%c0_2, %c0_3, %c1] : memref<1x32x110xf32, #tpu.memory_space<vmem>>, vector<1x32x80xf32>
    %4 = vector.shape_cast %3 : vector<1x32x80xf32> to vector<32x80xf32>
    %c0_4 = arith.constant 0 : index
    %c0_5 = arith.constant 0 : index
    %c2 = arith.constant 2 : index
    %5 = vector.load %arg1[%c0_4, %c0_5, %c2] : memref<1x32x110xf32, #tpu.memory_space<vmem>>, vector<1x32x80xf32>
    %6 = vector.shape_cast %5 : vector<1x32x80xf32> to vector<32x80xf32>
    %c0_6 = arith.constant 0 : index
    %c0_7 = arith.constant 0 : index
    %c10 = arith.constant 10 : index
    %7 = vector.load %arg1[%c0_6, %c0_7, %c10] : memref<1x32x110xf32, #tpu.memory_space<vmem>>, vector<1x32x80xf32>
    %8 = vector.shape_cast %7 : vector<1x32x80xf32> to vector<32x80xf32>
    %c0_8 = arith.constant 0 : index
    %c0_9 = arith.constant 0 : index
    %c11 = arith.constant 11 : index
    %9 = vector.load %arg1[%c0_8, %c0_9, %c11] : memref<1x32x110xf32, #tpu.memory_space<vmem>>, vector<1x32x80xf32>
    %10 = vector.shape_cast %9 : vector<1x32x80xf32> to vector<32x80xf32>
    %c0_10 = arith.constant 0 : index
    %c0_11 = arith.constant 0 : index
    %c12 = arith.constant 12 : index
    %11 = vector.load %arg1[%c0_10, %c0_11, %c12] : memref<1x32x110xf32, #tpu.memory_space<vmem>>, vector<1x32x80xf32>
    %12 = vector.shape_cast %11 : vector<1x32x80xf32> to vector<32x80xf32>
    %c0_12 = arith.constant 0 : index
    %c0_13 = arith.constant 0 : index
    %c20 = arith.constant 20 : index
    %13 = vector.load %arg1[%c0_12, %c0_13, %c20] : memref<1x32x110xf32, #tpu.memory_space<vmem>>, vector<1x32x80xf32>
    %14 = vector.shape_cast %13 : vector<1x32x80xf32> to vector<32x80xf32>
    %c0_14 = arith.constant 0 : index
    %c0_15 = arith.constant 0 : index
    %c21 = arith.constant 21 : index
    %15 = vector.load %arg1[%c0_14, %c0_15, %c21] : memref<1x32x110xf32, #tpu.memory_space<vmem>>, vector<1x32x80xf32>
    %16 = vector.shape_cast %15 : vector<1x32x80xf32> to vector<32x80xf32>
    %c0_16 = arith.constant 0 : index
    %c0_17 = arith.constant 0 : index
    %c22 = arith.constant 22 : index
    %17 = vector.load %arg1[%c0_16, %c0_17, %c22] : memref<1x32x110xf32, #tpu.memory_space<vmem>>, vector<1x32x80xf32>
    %18 = vector.shape_cast %17 : vector<1x32x80xf32> to vector<32x80xf32>
    %19 = tpu.concatenate %2, %4, %6, %8, %10, %12, %14, %16, %18 in 0 : vector<32x80xf32>, vector<32x80xf32>, vector<32x80xf32>, vector<32x80xf32>, vector<32x80xf32>, vector<32x80xf32>, vector<32x80xf32>, vector<32x80xf32>, vector<32x80xf32> -> vector<288x80xf32>
    %c0_18 = arith.constant 0 : index
    %c0_19 = arith.constant 0 : index
    %20 = vector.load %arg2[%c0_18, %c0_19] : memref<16x288xf32, #tpu.memory_space<vmem>>, vector<16x288xf32>
    %21 = arith.truncf %20 : vector<16x288xf32> to vector<16x288xbf16>
    %22 = arith.truncf %19 : vector<288x80xf32> to vector<288x80xbf16>
    %cst_20 = arith.constant dense<0.000000e+00> : vector<16x80xf32>
    %23 = tpu.matmul %21, %22, %cst_20 {dimension_numbers = #tpu.dot_dimension_numbers<[1], [0], [0], [1], [0, 0, 1, 1], [], []>} : vector<16x288xbf16>, vector<288x80xbf16>, vector<16x80xf32> -> vector<16x80xf32>
    %24 = arith.addf %0, %23 : vector<16x80xf32>
    %c0_21 = arith.constant 0 : index
    %c0_22 = arith.constant 0 : index
    %c0_23 = arith.constant 0 : index
    %25 = vector.load %arg3[%c0_21, %c0_22, %c0_23] : memref<1x16x110xf32, #tpu.memory_space<vmem>>, vector<1x16x80xf32>
    %26 = vector.shape_cast %25 : vector<1x16x80xf32> to vector<16x80xf32>
    %c0_24 = arith.constant 0 : index
    %c0_25 = arith.constant 0 : index
    %c1_26 = arith.constant 1 : index
    %27 = vector.load %arg3[%c0_24, %c0_25, %c1_26] : memref<1x16x110xf32, #tpu.memory_space<vmem>>, vector<1x16x80xf32>
    %28 = vector.shape_cast %27 : vector<1x16x80xf32> to vector<16x80xf32>
    %c0_27 = arith.constant 0 : index
    %c0_28 = arith.constant 0 : index
    %c2_29 = arith.constant 2 : index
    %29 = vector.load %arg3[%c0_27, %c0_28, %c2_29] : memref<1x16x110xf32, #tpu.memory_space<vmem>>, vector<1x16x80xf32>
    %30 = vector.shape_cast %29 : vector<1x16x80xf32> to vector<16x80xf32>
    %c0_30 = arith.constant 0 : index
    %c0_31 = arith.constant 0 : index
    %c10_32 = arith.constant 10 : index
    %31 = vector.load %arg3[%c0_30, %c0_31, %c10_32] : memref<1x16x110xf32, #tpu.memory_space<vmem>>, vector<1x16x80xf32>
    %32 = vector.shape_cast %31 : vector<1x16x80xf32> to vector<16x80xf32>
    %c0_33 = arith.constant 0 : index
    %c0_34 = arith.constant 0 : index
    %c11_35 = arith.constant 11 : index
    %33 = vector.load %arg3[%c0_33, %c0_34, %c11_35] : memref<1x16x110xf32, #tpu.memory_space<vmem>>, vector<1x16x80xf32>
    %34 = vector.shape_cast %33 : vector<1x16x80xf32> to vector<16x80xf32>
    %c0_36 = arith.constant 0 : index
    %c0_37 = arith.constant 0 : index
    %c12_38 = arith.constant 12 : index
    %35 = vector.load %arg3[%c0_36, %c0_37, %c12_38] : memref<1x16x110xf32, #tpu.memory_space<vmem>>, vector<1x16x80xf32>
    %36 = vector.shape_cast %35 : vector<1x16x80xf32> to vector<16x80xf32>
    %c0_39 = arith.constant 0 : index
    %c0_40 = arith.constant 0 : index
    %c20_41 = arith.constant 20 : index
    %37 = vector.load %arg3[%c0_39, %c0_40, %c20_41] : memref<1x16x110xf32, #tpu.memory_space<vmem>>, vector<1x16x80xf32>
    %38 = vector.shape_cast %37 : vector<1x16x80xf32> to vector<16x80xf32>
    %c0_42 = arith.constant 0 : index
    %c0_43 = arith.constant 0 : index
    %c21_44 = arith.constant 21 : index
    %39 = vector.load %arg3[%c0_42, %c0_43, %c21_44] : memref<1x16x110xf32, #tpu.memory_space<vmem>>, vector<1x16x80xf32>
    %40 = vector.shape_cast %39 : vector<1x16x80xf32> to vector<16x80xf32>
    %c0_45 = arith.constant 0 : index
    %c0_46 = arith.constant 0 : index
    %c22_47 = arith.constant 22 : index
    %41 = vector.load %arg3[%c0_45, %c0_46, %c22_47] : memref<1x16x110xf32, #tpu.memory_space<vmem>>, vector<1x16x80xf32>
    %42 = vector.shape_cast %41 : vector<1x16x80xf32> to vector<16x80xf32>
    %43 = tpu.concatenate %26, %28, %30, %32, %34, %36, %38, %40, %42 in 0 : vector<16x80xf32>, vector<16x80xf32>, vector<16x80xf32>, vector<16x80xf32>, vector<16x80xf32>, vector<16x80xf32>, vector<16x80xf32>, vector<16x80xf32>, vector<16x80xf32> -> vector<144x80xf32>
    %c0_48 = arith.constant 0 : index
    %c0_49 = arith.constant 0 : index
    %44 = vector.load %arg4[%c0_48, %c0_49] : memref<16x144xf32, #tpu.memory_space<vmem>>, vector<16x144xf32>
    %45 = arith.truncf %44 : vector<16x144xf32> to vector<16x144xbf16>
    %46 = arith.truncf %43 : vector<144x80xf32> to vector<144x80xbf16>
    %cst_50 = arith.constant dense<0.000000e+00> : vector<16x80xf32>
    %47 = tpu.matmul %45, %46, %cst_50 {dimension_numbers = #tpu.dot_dimension_numbers<[1], [0], [0], [1], [0, 0, 1, 1], [], []>} : vector<16x144xbf16>, vector<144x80xbf16>, vector<16x80xf32> -> vector<16x80xf32>
    %48 = arith.addf %24, %47 : vector<16x80xf32>
    %c0_51 = arith.constant 0 : index
    %c0_52 = arith.constant 0 : index
    %49 = vector.load %arg5[%c0_51, %c0_52] : memref<16x1xf32, #tpu.memory_space<vmem>>, vector<16x1xf32>
    %50 = vector.broadcast %49 : vector<16x1xf32> to vector<16x80xf32>
    %51 = arith.addf %48, %50 : vector<16x80xf32>
    %cst_53 = arith.constant 0.000000e+00 : f32
    %52 = vector.broadcast %cst_53 : f32 to vector<16x80xf32>
    %53 = arith.maximumf %51, %52 : vector<16x80xf32>
    %c0_54 = arith.constant 0 : index
    %c0_55 = arith.constant 0 : index
    %c0_56 = arith.constant 0 : index
    %54 = vector.load %arg6[%c0_54, %c0_55, %c0_56] : memref<1x16x80xf32, #tpu.memory_space<vmem>>, vector<1x16x80xf32>
    %55 = vector.shape_cast %54 : vector<1x16x80xf32> to vector<16x80xf32>
    %56 = vector.shape_cast %53 : vector<16x80xf32> to vector<1x16x80xf32>
    tpu.vector_store %arg6[%c0_54, %c0_55, %c0_56], %56 {strides = array<i32>} : memref<1x16x80xf32, #tpu.memory_space<vmem>>, vector<1x16x80xf32>,
    return
  }
  func.func @transform_0(%arg0: i32) -> (i32, i32, i32) {
    %c0_i32 = arith.constant 0 : i32
    %c0_i32_0 = arith.constant 0 : i32
    %c0_i32_1 = arith.constant 0 : i32
    return %arg0, %c0_i32, %c0_i32_0 : i32, i32, i32
  }
  func.func @transform_1(%arg0: i32) -> (i32, i32) {
    %c0_i32 = arith.constant 0 : i32
    %c0_i32_0 = arith.constant 0 : i32
    %c0_i32_1 = arith.constant 0 : i32
    return %c0_i32, %c0_i32_0 : i32, i32
  }
  func.func @transform_2(%arg0: i32) -> (i32, i32, i32) {
    %c0_i32 = arith.constant 0 : i32
    %c0_i32_0 = arith.constant 0 : i32
    %c0_i32_1 = arith.constant 0 : i32
    return %arg0, %c0_i32, %c0_i32_0 : i32, i32, i32
  }
  func.func @transform_3(%arg0: i32) -> (i32, i32) {
    %c0_i32 = arith.constant 0 : i32
    %c0_i32_0 = arith.constant 0 : i32
    %c0_i32_1 = arith.constant 0 : i32
    return %c0_i32, %c0_i32_0 : i32, i32
  }
  func.func @transform_4(%arg0: i32) -> (i32, i32) {
    %c0_i32 = arith.constant 0 : i32
    %c0_i32_0 = arith.constant 0 : i32
    %c0_i32_1 = arith.constant 0 : i32
    return %c0_i32, %c0_i32_0 : i32, i32
  }
  func.func @transform_5(%arg0: i32) -> (i32, i32, i32) {
    %c0_i32 = arith.constant 0 : i32
    %c0_i32_0 = arith.constant 0 : i32
    %c0_i32_1 = arith.constant 0 : i32
    return %arg0, %c0_i32, %c0_i32_0 : i32, i32, i32
  }
}

module attributes {stable_mosaic.version = 11 : i64} {
  func.func @_conv_kernel(%arg0: i32, %arg1: memref<1x16x342xf32, #tpu.memory_space<vmem>>, %arg2: memref<8x144xf32, #tpu.memory_space<vmem>>, %arg3: memref<1x8x342xf32, #tpu.memory_space<vmem>>, %arg4: memref<8x72xf32, #tpu.memory_space<vmem>>, %arg5: memref<8x1xf32, #tpu.memory_space<vmem>>, %arg6: memref<1x8x288xf32, #tpu.memory_space<vmem>>) attributes {dimension_semantics = [#tpu.dimension_semantics<parallel>], iteration_bounds = array<i64: 2>, scalar_prefetch = 0 : i64, scratch_operands = 0 : i64, tpu.core_type = #tpu.core_type<tc>, window_params = [{transform_indices = @transform_0, window_bounds = array<i64: 1, 16, 342>}, {pipeline_mode = #tpu.pipeline_mode<synchronous>, transform_indices = @transform_1, window_bounds = array<i64: 8, 144>}, {transform_indices = @transform_2, window_bounds = array<i64: 1, 8, 342>}, {pipeline_mode = #tpu.pipeline_mode<synchronous>, transform_indices = @transform_3, window_bounds = array<i64: 8, 72>}, {pipeline_mode = #tpu.pipeline_mode<synchronous>, transform_indices = @transform_4, window_bounds = array<i64: 8, 1>}, {transform_indices = @transform_5, window_bounds = array<i64: 1, 8, 288>}]} {
    %cst = arith.constant 0.000000e+00 : f32
    %0 = vector.broadcast %cst : f32 to vector<8x288xf32>
    %c0 = arith.constant 0 : index
    %c0_0 = arith.constant 0 : index
    %c0_1 = arith.constant 0 : index
    %1 = vector.load %arg1[%c0, %c0_0, %c0_1] : memref<1x16x342xf32, #tpu.memory_space<vmem>>, vector<1x16x288xf32>
    %2 = vector.shape_cast %1 : vector<1x16x288xf32> to vector<16x288xf32>
    %c0_2 = arith.constant 0 : index
    %c0_3 = arith.constant 0 : index
    %c1 = arith.constant 1 : index
    %3 = vector.load %arg1[%c0_2, %c0_3, %c1] : memref<1x16x342xf32, #tpu.memory_space<vmem>>, vector<1x16x288xf32>
    %4 = vector.shape_cast %3 : vector<1x16x288xf32> to vector<16x288xf32>
    %c0_4 = arith.constant 0 : index
    %c0_5 = arith.constant 0 : index
    %c2 = arith.constant 2 : index
    %5 = vector.load %arg1[%c0_4, %c0_5, %c2] : memref<1x16x342xf32, #tpu.memory_space<vmem>>, vector<1x16x288xf32>
    %6 = vector.shape_cast %5 : vector<1x16x288xf32> to vector<16x288xf32>
    %c0_6 = arith.constant 0 : index
    %c0_7 = arith.constant 0 : index
    %c18 = arith.constant 18 : index
    %7 = vector.load %arg1[%c0_6, %c0_7, %c18] : memref<1x16x342xf32, #tpu.memory_space<vmem>>, vector<1x16x288xf32>
    %8 = vector.shape_cast %7 : vector<1x16x288xf32> to vector<16x288xf32>
    %c0_8 = arith.constant 0 : index
    %c0_9 = arith.constant 0 : index
    %c19 = arith.constant 19 : index
    %9 = vector.load %arg1[%c0_8, %c0_9, %c19] : memref<1x16x342xf32, #tpu.memory_space<vmem>>, vector<1x16x288xf32>
    %10 = vector.shape_cast %9 : vector<1x16x288xf32> to vector<16x288xf32>
    %c0_10 = arith.constant 0 : index
    %c0_11 = arith.constant 0 : index
    %c20 = arith.constant 20 : index
    %11 = vector.load %arg1[%c0_10, %c0_11, %c20] : memref<1x16x342xf32, #tpu.memory_space<vmem>>, vector<1x16x288xf32>
    %12 = vector.shape_cast %11 : vector<1x16x288xf32> to vector<16x288xf32>
    %c0_12 = arith.constant 0 : index
    %c0_13 = arith.constant 0 : index
    %c36 = arith.constant 36 : index
    %13 = vector.load %arg1[%c0_12, %c0_13, %c36] : memref<1x16x342xf32, #tpu.memory_space<vmem>>, vector<1x16x288xf32>
    %14 = vector.shape_cast %13 : vector<1x16x288xf32> to vector<16x288xf32>
    %c0_14 = arith.constant 0 : index
    %c0_15 = arith.constant 0 : index
    %c37 = arith.constant 37 : index
    %15 = vector.load %arg1[%c0_14, %c0_15, %c37] : memref<1x16x342xf32, #tpu.memory_space<vmem>>, vector<1x16x288xf32>
    %16 = vector.shape_cast %15 : vector<1x16x288xf32> to vector<16x288xf32>
    %c0_16 = arith.constant 0 : index
    %c0_17 = arith.constant 0 : index
    %c38 = arith.constant 38 : index
    %17 = vector.load %arg1[%c0_16, %c0_17, %c38] : memref<1x16x342xf32, #tpu.memory_space<vmem>>, vector<1x16x288xf32>
    %18 = vector.shape_cast %17 : vector<1x16x288xf32> to vector<16x288xf32>
    %19 = tpu.concatenate %2, %4, %6, %8, %10, %12, %14, %16, %18 in 0 : vector<16x288xf32>, vector<16x288xf32>, vector<16x288xf32>, vector<16x288xf32>, vector<16x288xf32>, vector<16x288xf32>, vector<16x288xf32>, vector<16x288xf32>, vector<16x288xf32> -> vector<144x288xf32>
    %c0_18 = arith.constant 0 : index
    %c0_19 = arith.constant 0 : index
    %20 = vector.load %arg2[%c0_18, %c0_19] : memref<8x144xf32, #tpu.memory_space<vmem>>, vector<8x144xf32>
    %21 = arith.truncf %20 : vector<8x144xf32> to vector<8x144xbf16>
    %22 = arith.truncf %19 : vector<144x288xf32> to vector<144x288xbf16>
    %cst_20 = arith.constant dense<0.000000e+00> : vector<8x288xf32>
    %23 = tpu.matmul %21, %22, %cst_20 {dimension_numbers = #tpu.dot_dimension_numbers<[1], [0], [0], [1], [0, 0, 1, 1], [], []>} : vector<8x144xbf16>, vector<144x288xbf16>, vector<8x288xf32> -> vector<8x288xf32>
    %24 = arith.addf %0, %23 : vector<8x288xf32>
    %c0_21 = arith.constant 0 : index
    %c0_22 = arith.constant 0 : index
    %c0_23 = arith.constant 0 : index
    %25 = vector.load %arg3[%c0_21, %c0_22, %c0_23] : memref<1x8x342xf32, #tpu.memory_space<vmem>>, vector<1x8x288xf32>
    %26 = vector.shape_cast %25 : vector<1x8x288xf32> to vector<8x288xf32>
    %c0_24 = arith.constant 0 : index
    %c0_25 = arith.constant 0 : index
    %c1_26 = arith.constant 1 : index
    %27 = vector.load %arg3[%c0_24, %c0_25, %c1_26] : memref<1x8x342xf32, #tpu.memory_space<vmem>>, vector<1x8x288xf32>
    %28 = vector.shape_cast %27 : vector<1x8x288xf32> to vector<8x288xf32>
    %c0_27 = arith.constant 0 : index
    %c0_28 = arith.constant 0 : index
    %c2_29 = arith.constant 2 : index
    %29 = vector.load %arg3[%c0_27, %c0_28, %c2_29] : memref<1x8x342xf32, #tpu.memory_space<vmem>>, vector<1x8x288xf32>
    %30 = vector.shape_cast %29 : vector<1x8x288xf32> to vector<8x288xf32>
    %c0_30 = arith.constant 0 : index
    %c0_31 = arith.constant 0 : index
    %c18_32 = arith.constant 18 : index
    %31 = vector.load %arg3[%c0_30, %c0_31, %c18_32] : memref<1x8x342xf32, #tpu.memory_space<vmem>>, vector<1x8x288xf32>
    %32 = vector.shape_cast %31 : vector<1x8x288xf32> to vector<8x288xf32>
    %c0_33 = arith.constant 0 : index
    %c0_34 = arith.constant 0 : index
    %c19_35 = arith.constant 19 : index
    %33 = vector.load %arg3[%c0_33, %c0_34, %c19_35] : memref<1x8x342xf32, #tpu.memory_space<vmem>>, vector<1x8x288xf32>
    %34 = vector.shape_cast %33 : vector<1x8x288xf32> to vector<8x288xf32>
    %c0_36 = arith.constant 0 : index
    %c0_37 = arith.constant 0 : index
    %c20_38 = arith.constant 20 : index
    %35 = vector.load %arg3[%c0_36, %c0_37, %c20_38] : memref<1x8x342xf32, #tpu.memory_space<vmem>>, vector<1x8x288xf32>
    %36 = vector.shape_cast %35 : vector<1x8x288xf32> to vector<8x288xf32>
    %c0_39 = arith.constant 0 : index
    %c0_40 = arith.constant 0 : index
    %c36_41 = arith.constant 36 : index
    %37 = vector.load %arg3[%c0_39, %c0_40, %c36_41] : memref<1x8x342xf32, #tpu.memory_space<vmem>>, vector<1x8x288xf32>
    %38 = vector.shape_cast %37 : vector<1x8x288xf32> to vector<8x288xf32>
    %c0_42 = arith.constant 0 : index
    %c0_43 = arith.constant 0 : index
    %c37_44 = arith.constant 37 : index
    %39 = vector.load %arg3[%c0_42, %c0_43, %c37_44] : memref<1x8x342xf32, #tpu.memory_space<vmem>>, vector<1x8x288xf32>
    %40 = vector.shape_cast %39 : vector<1x8x288xf32> to vector<8x288xf32>
    %c0_45 = arith.constant 0 : index
    %c0_46 = arith.constant 0 : index
    %c38_47 = arith.constant 38 : index
    %41 = vector.load %arg3[%c0_45, %c0_46, %c38_47] : memref<1x8x342xf32, #tpu.memory_space<vmem>>, vector<1x8x288xf32>
    %42 = vector.shape_cast %41 : vector<1x8x288xf32> to vector<8x288xf32>
    %43 = tpu.concatenate %26, %28, %30, %32, %34, %36, %38, %40, %42 in 0 : vector<8x288xf32>, vector<8x288xf32>, vector<8x288xf32>, vector<8x288xf32>, vector<8x288xf32>, vector<8x288xf32>, vector<8x288xf32>, vector<8x288xf32>, vector<8x288xf32> -> vector<72x288xf32>
    %c0_48 = arith.constant 0 : index
    %c0_49 = arith.constant 0 : index
    %44 = vector.load %arg4[%c0_48, %c0_49] : memref<8x72xf32, #tpu.memory_space<vmem>>, vector<8x72xf32>
    %45 = arith.truncf %44 : vector<8x72xf32> to vector<8x72xbf16>
    %46 = arith.truncf %43 : vector<72x288xf32> to vector<72x288xbf16>
    %cst_50 = arith.constant dense<0.000000e+00> : vector<8x288xf32>
    %47 = tpu.matmul %45, %46, %cst_50 {dimension_numbers = #tpu.dot_dimension_numbers<[1], [0], [0], [1], [0, 0, 1, 1], [], []>} : vector<8x72xbf16>, vector<72x288xbf16>, vector<8x288xf32> -> vector<8x288xf32>
    %48 = arith.addf %24, %47 : vector<8x288xf32>
    %c0_51 = arith.constant 0 : index
    %c0_52 = arith.constant 0 : index
    %49 = vector.load %arg5[%c0_51, %c0_52] : memref<8x1xf32, #tpu.memory_space<vmem>>, vector<8x1xf32>
    %50 = vector.broadcast %49 : vector<8x1xf32> to vector<8x288xf32>
    %51 = arith.addf %48, %50 : vector<8x288xf32>
    %cst_53 = arith.constant 0.000000e+00 : f32
    %52 = vector.broadcast %cst_53 : f32 to vector<8x288xf32>
    %53 = arith.maximumf %51, %52 : vector<8x288xf32>
    %c0_54 = arith.constant 0 : index
    %c0_55 = arith.constant 0 : index
    %c0_56 = arith.constant 0 : index
    %54 = vector.load %arg6[%c0_54, %c0_55, %c0_56] : memref<1x8x288xf32, #tpu.memory_space<vmem>>, vector<1x8x288xf32>
    %55 = vector.shape_cast %54 : vector<1x8x288xf32> to vector<8x288xf32>
    %56 = vector.shape_cast %53 : vector<8x288xf32> to vector<1x8x288xf32>
    tpu.vector_store %arg6[%c0_54, %c0_55, %c0_56], %56 {strides = array<i32>} : memref<1x8x288xf32, #tpu.memory_space<vmem>>, vector<1x8x288xf32>,
    return
  }
  func.func @transform_0(%arg0: i32) -> (i32, i32, i32) {
    %c0_i32 = arith.constant 0 : i32
    %c0_i32_0 = arith.constant 0 : i32
    %c0_i32_1 = arith.constant 0 : i32
    return %arg0, %c0_i32, %c0_i32_0 : i32, i32, i32
  }
  func.func @transform_1(%arg0: i32) -> (i32, i32) {
    %c0_i32 = arith.constant 0 : i32
    %c0_i32_0 = arith.constant 0 : i32
    %c0_i32_1 = arith.constant 0 : i32
    return %c0_i32, %c0_i32_0 : i32, i32
  }
  func.func @transform_2(%arg0: i32) -> (i32, i32, i32) {
    %c0_i32 = arith.constant 0 : i32
    %c0_i32_0 = arith.constant 0 : i32
    %c0_i32_1 = arith.constant 0 : i32
    return %arg0, %c0_i32, %c0_i32_0 : i32, i32, i32
  }
  func.func @transform_3(%arg0: i32) -> (i32, i32) {
    %c0_i32 = arith.constant 0 : i32
    %c0_i32_0 = arith.constant 0 : i32
    %c0_i32_1 = arith.constant 0 : i32
    return %c0_i32, %c0_i32_0 : i32, i32
  }
  func.func @transform_4(%arg0: i32) -> (i32, i32) {
    %c0_i32 = arith.constant 0 : i32
    %c0_i32_0 = arith.constant 0 : i32
    %c0_i32_1 = arith.constant 0 : i32
    return %c0_i32, %c0_i32_0 : i32, i32
  }
  func.func @transform_5(%arg0: i32) -> (i32, i32, i32) {
    %c0_i32 = arith.constant 0 : i32
    %c0_i32_0 = arith.constant 0 : i32
    %c0_i32_1 = arith.constant 0 : i32
    return %arg0, %c0_i32, %c0_i32_0 : i32, i32, i32
  }
}

module attributes {stable_mosaic.version = 11 : i64} {
  func.func @_conv_kernel(%arg0: i32, %arg1: memref<1x8x256xf32, #tpu.memory_space<vmem>>, %arg2: memref<3x8xf32, #tpu.memory_space<vmem>>, %arg3: memref<3x1xf32, #tpu.memory_space<vmem>>, %arg4: memref<1x3x256xf32, #tpu.memory_space<vmem>>) attributes {dimension_semantics = [#tpu.dimension_semantics<parallel>], iteration_bounds = array<i64: 2>, scalar_prefetch = 0 : i64, scratch_operands = 0 : i64, tpu.core_type = #tpu.core_type<tc>, window_params = [{transform_indices = @transform_0, window_bounds = array<i64: 1, 8, 256>}, {pipeline_mode = #tpu.pipeline_mode<synchronous>, transform_indices = @transform_1, window_bounds = array<i64: 3, 8>}, {pipeline_mode = #tpu.pipeline_mode<synchronous>, transform_indices = @transform_2, window_bounds = array<i64: 3, 1>}, {transform_indices = @transform_3, window_bounds = array<i64: 1, 3, 256>}]} {
    %cst = arith.constant 0.000000e+00 : f32
    %0 = vector.broadcast %cst : f32 to vector<3x256xf32>
    %c0 = arith.constant 0 : index
    %c0_0 = arith.constant 0 : index
    %c0_1 = arith.constant 0 : index
    %1 = vector.load %arg1[%c0, %c0_0, %c0_1] : memref<1x8x256xf32, #tpu.memory_space<vmem>>, vector<1x8x256xf32>
    %2 = vector.shape_cast %1 : vector<1x8x256xf32> to vector<8x256xf32>
    %c0_2 = arith.constant 0 : index
    %c0_3 = arith.constant 0 : index
    %3 = vector.load %arg2[%c0_2, %c0_3] : memref<3x8xf32, #tpu.memory_space<vmem>>, vector<3x8xf32>
    %4 = arith.truncf %3 : vector<3x8xf32> to vector<3x8xbf16>
    %5 = arith.truncf %2 : vector<8x256xf32> to vector<8x256xbf16>
    %cst_4 = arith.constant dense<0.000000e+00> : vector<3x256xf32>
    %6 = tpu.matmul %4, %5, %cst_4 {dimension_numbers = #tpu.dot_dimension_numbers<[1], [0], [0], [1], [0, 0, 1, 1], [], []>} : vector<3x8xbf16>, vector<8x256xbf16>, vector<3x256xf32> -> vector<3x256xf32>
    %7 = arith.addf %0, %6 : vector<3x256xf32>
    %c0_5 = arith.constant 0 : index
    %c0_6 = arith.constant 0 : index
    %8 = vector.load %arg3[%c0_5, %c0_6] : memref<3x1xf32, #tpu.memory_space<vmem>>, vector<3x1xf32>
    %9 = vector.broadcast %8 : vector<3x1xf32> to vector<3x256xf32>
    %10 = arith.addf %7, %9 : vector<3x256xf32>
    %c0_7 = arith.constant 0 : index
    %c0_8 = arith.constant 0 : index
    %c0_9 = arith.constant 0 : index
    %11 = vector.load %arg4[%c0_7, %c0_8, %c0_9] : memref<1x3x256xf32, #tpu.memory_space<vmem>>, vector<1x3x256xf32>
    %12 = vector.shape_cast %11 : vector<1x3x256xf32> to vector<3x256xf32>
    %13 = vector.shape_cast %10 : vector<3x256xf32> to vector<1x3x256xf32>
    tpu.vector_store %arg4[%c0_7, %c0_8, %c0_9], %13 {strides = array<i32>} : memref<1x3x256xf32, #tpu.memory_space<vmem>>, vector<1x3x256xf32>,
    return
  }
  func.func @transform_0(%arg0: i32) -> (i32, i32, i32) {
    %c0_i32 = arith.constant 0 : i32
    %c0_i32_0 = arith.constant 0 : i32
    %c0_i32_1 = arith.constant 0 : i32
    return %arg0, %c0_i32, %c0_i32_0 : i32, i32, i32
  }
  func.func @transform_1(%arg0: i32) -> (i32, i32) {
    %c0_i32 = arith.constant 0 : i32
    %c0_i32_0 = arith.constant 0 : i32
    %c0_i32_1 = arith.constant 0 : i32
    return %c0_i32, %c0_i32_0 : i32, i32
  }
  func.func @transform_2(%arg0: i32) -> (i32, i32) {
    %c0_i32 = arith.constant 0 : i32
    %c0_i32_0 = arith.constant 0 : i32
    %c0_i32_1 = arith.constant 0 : i32
    return %c0_i32, %c0_i32_0 : i32, i32
  }
  func.func @transform_3(%arg0: i32) -> (i32, i32, i32) {
    %c0_i32 = arith.constant 0 : i32
    %c0_i32_0 = arith.constant 0 : i32
    %c0_i32_1 = arith.constant 0 : i32
    return %arg0, %c0_i32, %c0_i32_0 : i32, i32, i32
  }
}

</mosaic_0001>

<llo_original>
// kernel: posnet_forward.6
$region0: #{posnet_forward.6}
  #allocation0 [shape = 'u32[]', space=smem, size = 0x4, offset = 0x4, fixed_abs, tag = 'smem constant byte address 0x4 - core index']
  #allocation1 [shape = 'u32[72,128]{1,0:T(1,128)}', space=vmem, size = 0x9000, scoped, tag = 'internal scratch']
  %s0 = inlined_call_operand.vmem [shape: f32[2,8,342], index: 0, kind: input, shape index: {}]
  %s1 = inlined_call_operand.vmem [shape: f32[8,72], index: 1, kind: input, shape index: {}]
  %s2 = inlined_call_operand.vmem [shape: f32[8,1], index: 2, kind: input, shape index: {}]
  %s3 = inlined_call_operand.vmem [shape: f32[2,8,288], index: 3, kind: output, shape index: {}]
  %s4 = sld [smem:[#allocation0]]
  $region45: #{posnet_forward.6} parent=0
    _
  %s6 = ssub.s32 1, %s4
  %s7 = scalar_select 0, %s6, %s4
  loop: start=0, step=1, limit=4
  $region2: #{posnet_forward.6} parent=0 // loop_pre_header
    _
  $region3: #{posnet_forward.6} parent=0 // loop_header
    %s9 = sphi 0, %s13
    %p10 = scmp.ge.s32.totalorder %s9, 4
    %s19 = sphi 0, %s21
    %s22 = sphi 0, %s19
    %s23 = sphi 0, %s22
    %s39 = sphi 0, %s23
    %s43 = sphi 0, %s43
    %s45 = sphi 0, %s43
    %s46 = sphi 0, %s45
    %s60 = sphi 0, %s46
    %s64 = sphi 0, %s64
    %s66 = sphi 0, %s64
    %s67 = sphi 0, %s66
    %s81 = sphi 0, %s67
    %s87 = sphi 0, %s89
    %s90 = sphi 0, %s87
    %s91 = sphi 0, %s90
    %s107 = sphi 0, %s91
  $region4: #{posnet_forward.6} parent=0 // loop_header_branch
    %12 = sbr.rel (%p10) target = $region8
  $region5: #{posnet_forward.6} parent=0 // loop_body
    %s14 = ssub.s32 %s9, 1
    %s15 = ssub.s32 %s9, 2
    %s16 = sadd.s32 %s9, 1
    %s17 = ssub.s32 %s9, %s16
    %p18 = scmp.eq.s32.totalorder %s17, 0
    %s20 = sadd.s32 %s19, 1
    %s21 = scalar_select %p18, %s19, %s20
    %p24 = pneg %p18
    %p25 = scmp.eq.s32.totalorder %s9, 1
    %p26 = por %p24, %p25
    %p27 = scmp.ne.s32.totalorder %s19, %s22
    %p28 = scmp.eq.s32.totalorder %s9, 0
    %p29 = por %p27, %p28
    %p30 = scmp.ne.s32.totalorder %s19, %s22
    %p31 = scmp.eq.s32.totalorder %s14, 1
    %p32 = por %p30, %p31
    %p33 = scmp.ne.s32.totalorder %s22, %s23
    %p34 = scmp.eq.s32.totalorder %s14, 0
    %p35 = por %p33, %p34
    %p36 = scmp.ne.s32.totalorder %s22, %s23
    %p37 = scmp.eq.s32.totalorder %s15, 1
    %p38 = por %p36, %p37
    %p40 = scmp.ne.s32.totalorder %s23, %s39
    %p41 = scmp.eq.s32.totalorder %s15, 0
    %p42 = por %p40, %p41
    %s44 = sadd.s32 %s43, 1
    %p47 = scmp.eq.s32.totalorder %s9, 1
    %p48 = scmp.ne.s32.totalorder %s43, %s45
    %p49 = scmp.eq.s32.totalorder %s9, 0
    %p50 = por %p48, %p49
    %p51 = scmp.ne.s32.totalorder %s43, %s45
    %p52 = scmp.eq.s32.totalorder %s14, 1
    %p53 = por %p51, %p52
    %p54 = scmp.ne.s32.totalorder %s45, %s46
    %p55 = scmp.eq.s32.totalorder %s14, 0
    %p56 = por %p54, %p55
    %p57 = scmp.ne.s32.totalorder %s45, %s46
    %p58 = scmp.eq.s32.totalorder %s15, 1
    %p59 = por %p57, %p58
    %p61 = scmp.ne.s32.totalorder %s46, %s60
    %p62 = scmp.eq.s32.totalorder %s15, 0
    %p63 = por %p61, %p62
    %s65 = sadd.s32 %s64, 1
    %p68 = scmp.eq.s32.totalorder %s9, 1
    %p69 = scmp.ne.s32.totalorder %s64, %s66
    %p70 = scmp.eq.s32.totalorder %s9, 0
    %p71 = por %p69, %p70
    %p72 = scmp.ne.s32.totalorder %s64, %s66
    %p73 = scmp.eq.s32.totalorder %s14, 1
    %p74 = por %p72, %p73
    %p75 = scmp.ne.s32.totalorder %s66, %s67
    %p76 = scmp.eq.s32.totalorder %s14, 0
    %p77 = por %p75, %p76
    %p78 = scmp.ne.s32.totalorder %s66, %s67
    %p79 = scmp.eq.s32.totalorder %s15, 1
    %p80 = por %p78, %p79
    %p82 = scmp.ne.s32.totalorder %s67, %s81
    %p83 = scmp.eq.s32.totalorder %s15, 0
    %p84 = por %p82, %p83
    %s85 = ssub.s32 %s9, %s16
    %p86 = scmp.eq.s32.totalorder %s85, 0
    %s88 = sadd.s32 %s87, 1
    %s89 = scalar_select %p86, %s87, %s88
    %p92 = pneg %p86
    %p93 = scmp.eq.s32.totalorder %s9, 1
    %p94 = por %p92, %p93
    %p95 = scmp.ne.s32.totalorder %s87, %s90
    %p96 = scmp.eq.s32.totalorder %s9, 0
    %p97 = por %p95, %p96
    %p98 = scmp.ne.s32.totalorder %s87, %s90
    %p99 = scmp.eq.s32.totalorder %s14, 1
    %p100 = por %p98, %p99
    %p101 = scmp.ne.s32.totalorder %s90, %s91
    %p102 = scmp.eq.s32.totalorder %s14, 0
    %p103 = por %p101, %p102
    %p104 = scmp.ne.s32.totalorder %s90, %s91
    %p105 = scmp.eq.s32.totalorder %s15, 1
    %p106 = por %p104, %p105
    %p108 = scmp.ne.s32.totalorder %s91, %s107
    %p109 = scmp.eq.s32.totalorder %s15, 0
    %p110 = por %p108, %p109
    %p111 = scmp.le.s32.totalorder 1, %s9
    %p112 = scmp.lt.s32.totalorder %s9, 3
    %p113 = pnand %p111, %p112
    %p114 = pneg %p113
    // Predicated region
    $region9: #{posnet_forward.6} parent=5 // pred_check
      _
    $region10: #{posnet_forward.6} parent=5 // pred_check_branch
      %116 = sbr.rel (%p113) target = $region12
    $region11: #{posnet_forward.6} parent=5 // pred_region
      %s117 = ssub.s32 %s9, 1
      // Predicated region
      $region13: #{posnet_forward.6} parent=11 // pred_check
        %p118 = pneg %p56
      $region14: #{posnet_forward.6} parent=11 // pred_check_branch
        %120 = sbr.rel (%p118) target = $region16
      $region15: #{posnet_forward.6} parent=11 // pred_region
        _
      $region16: #{posnet_forward.6} parent=11 // pred_fallthru
        _
      // Predicated region
      $region17: #{posnet_forward.6} parent=11 // pred_check
        %p121 = pneg %p77
      $region18: #{posnet_forward.6} parent=11 // pred_check_branch
        %123 = sbr.rel (%p121) target = $region20
      $region19: #{posnet_forward.6} parent=11 // pred_region
        _
      $region20: #{posnet_forward.6} parent=11 // pred_fallthru
        _
    $region12: #{posnet_forward.6} parent=5 // pred_fallthru
      _
    %p124 = scmp.lt.s32.totalorder %s9, 2
    // Predicated region
    $region21: #{posnet_forward.6} parent=5 // pred_check
      %p125 = pneg %p124
    $region22: #{posnet_forward.6} parent=5 // pred_check_branch
      %127 = sbr.rel (%p125) target = $region24
    $region23: #{posnet_forward.6} parent=5 // pred_region
      // Predicated region
      $region25: #{posnet_forward.6} parent=23 // pred_check
        %p128 = pneg %p29
      $region26: #{posnet_forward.6} parent=23 // pred_check_branch
        %130 = sbr.rel (%p128) target = $region28
      $region27: #{posnet_forward.6} parent=23 // pred_region
        %p131 = scmp.lt.s32.totalorder %s9, 1
        %s132 = scalar_select %p131, %s9, 1
        %s133 = smul.addr %s132, 3
        %s134 = smul.addr %s133, 8
        %s135 = scalar_lea.vmem %s0, %s134
      $region28: #{posnet_forward.6} parent=23 // pred_fallthru
        _
    $region24: #{posnet_forward.6} parent=5 // pred_fallthru
      _
    %p136 = scmp.le.s32.totalorder 1, %s9
    %p137 = scmp.lt.s32.totalorder %s9, 3
    %p138 = pnand %p136, %p137
    %p139 = pneg %p138
    // Predicated region
    $region29: #{posnet_forward.6} parent=5 // pred_check
      _
    $region30: #{posnet_forward.6} parent=5 // pred_check_branch
      %141 = sbr.rel (%p138) target = $region32
    $region31: #{posnet_forward.6} parent=5 // pred_region
      %s142 = ssub.s32 %s9, 1
      %p143 = scmp.lt.s32.totalorder %s14, 1
      %s144 = scalar_select %p143, %s14, 1
      %s145 = smul.addr %s144, 3
      %s146 = smul.addr %s145, 8
      %s147 = scalar_lea.vmem %s0, %s146
      %p148 = pneg %p35
      %p149 = pneg %p32
      %p150 = pneg %p56
      %p151 = pneg %p53
      %p152 = pneg %p77
      %p153 = pneg %p74
      %p154 = pneg %p103
      %p155 = pneg %p100
      %p156 = scmp.lt.s32.totalorder %s14, 1
      %s157 = scalar_select %p156, %s14, 1
      %s158 = smul.addr %s157, 3
      %s159 = smul.addr %s158, 8
      %s160 = scalar_lea.vmem %s3, %s159
      %p161 = scmp.lt.s32.totalorder %s14, 1
      %s162 = scalar_select %p161, %s14, 1
      %s163 = smul.addr %s162, 3
      %s164 = smul.addr %s163, 8
      %s165 = scalar_lea.vmem %s0, %s164
      %p166 = scmp.lt.s32.totalorder %s14, 1
      %s167 = scalar_select %p166, %s14, 1
      %s168 = smul.addr %s167, 3
      %s169 = smul.addr %s168, 8
      %s170 = scalar_lea.vmem %s3, %s169
      %v172 = vld [vmem:[%s165] sm:$0xff]
      %v173 = vld [vmem:[%s165 + $0x8] sm:$0xff]
      %v174 = vld [vmem:[%s165 + $0x10] sm:$0xff]
      %178 = vrot.lane.b32.xlu0 %v172, 127
      %v179 = vpop.permute.xlu0 %178
      %180 = vrot.lane.b32.xlu0 %v173, 127
      %v181 = vpop.permute.xlu0 %180
      %182 = vrot.lane.b32.xlu0 %v174, 127
      %v183 = vpop.permute.xlu0 %182
      %vm184 = vcmask 1039360
      %v185 = vsel %vm184, %v179, %v181
      %v186 = vsel %vm184, %v181, %v183
      %190 = vrot.lane.b32.xlu0 %v172, 126
      %v191 = vpop.permute.xlu0 %190
      %192 = vrot.lane.b32.xlu0 %v173, 126
      %v193 = vpop.permute.xlu0 %192
      %194 = vrot.lane.b32.xlu0 %v174, 126
      %v195 = vpop.permute.xlu0 %194
      %vm196 = vcmask 1031168
      %v197 = vsel %vm196, %v191, %v193
      %v198 = vsel %vm196, %v193, %v195
      %202 = vrot.lane.b32.xlu0 %v172, 110
      %v203 = vpop.permute.xlu0 %202
      %204 = vrot.lane.b32.xlu0 %v173, 110
      %v205 = vpop.permute.xlu0 %204
      %206 = vrot.lane.b32.xlu0 %v174, 110
      %v207 = vpop.permute.xlu0 %206
      %vm208 = vcmask 900096
      %v209 = vsel %vm208, %v203, %v205
      %v210 = vsel %vm208, %v205, %v207
      %214 = vrot.lane.b32.xlu0 %v172, 109
      %v215 = vpop.permute.xlu0 %214
      %216 = vrot.lane.b32.xlu0 %v173, 109
      %v217 = vpop.permute.xlu0 %216
      %218 = vrot.lane.b32.xlu0 %v174, 109
      %v219 = vpop.permute.xlu0 %218
      %vm220 = vcmask 891904
      %v221 = vsel %vm220, %v215, %v217
      %v222 = vsel %vm220, %v217, %v219
      %226 = vrot.lane.b32.xlu0 %v172, 108
      %v227 = vpop.permute.xlu0 %226
      %228 = vrot.lane.b32.xlu0 %v173, 108
      %v229 = vpop.permute.xlu0 %228
      %230 = vrot.lane.b32.xlu0 %v174, 108
      %v231 = vpop.permute.xlu0 %230
      %vm232 = vcmask 883712
      %v233 = vsel %vm232, %v227, %v229
      %v234 = vsel %vm232, %v229, %v231
      %238 = vrot.lane.b32.xlu0 %v172, 92
      %v239 = vpop.permute.xlu0 %238
      %240 = vrot.lane.b32.xlu0 %v173, 92
      %v241 = vpop.permute.xlu0 %240
      %242 = vrot.lane.b32.xlu0 %v174, 92
      %v243 = vpop.permute.xlu0 %242
      %vm244 = vcmask 752640
      %v245 = vsel %vm244, %v239, %v241
      %v246 = vsel %vm244, %v241, %v243
      %250 = vrot.lane.b32.xlu0 %v172, 91
      %v251 = vpop.permute.xlu0 %250
      %252 = vrot.lane.b32.xlu0 %v173, 91
      %v253 = vpop.permute.xlu0 %252
      %254 = vrot.lane.b32.xlu0 %v174, 91
      %v255 = vpop.permute.xlu0 %254
      %vm256 = vcmask 744448
      %v257 = vsel %vm256, %v251, %v253
      %v258 = vsel %vm256, %v253, %v255
      %262 = vrot.lane.b32.xlu0 %v172, 90
      %v263 = vpop.permute.xlu0 %262
      %264 = vrot.lane.b32.xlu0 %v173, 90
      %v265 = vpop.permute.xlu0 %264
      %266 = vrot.lane.b32.xlu0 %v174, 90
      %v267 = vpop.permute.xlu0 %266
      %vm268 = vcmask 736256
      %v269 = vsel %vm268, %v263, %v265
      %v270 = vsel %vm268, %v265, %v267
      %v274 = vld [vmem:[%s1] sm:$0xff]
      %v275 = vpack.c.bf16 %v274, %v274
      %v276 = vpack.c.bf16 %v185, %v172
      %v277 = vpack.c.bf16 %v186, %v173
      %v278 = vpack.c.bf16 %v183, %v174
      %v279 = vpack.c.bf16 %v209, %v197
      %v280 = vpack.c.bf16 %v210, %v198
      %v281 = vpack.c.bf16 %v207, %v195
      %v282 = vpack.c.bf16 %v233, %v221
      %v283 = vpack.c.bf16 %v234, %v222
      %v284 = vpack.c.bf16 %v231, %v219
      %v285 = vpack.c.bf16 %v257, %v245
      %v286 = vpack.c.bf16 %v258, %v246
      %v287 = vpack.c.bf16 %v255, %v243
      %v288 = vpack.c.bf16 %v269, %v269
      %v289 = vpack.c.bf16 %v270, %v270
      %v290 = vpack.c.bf16 %v267, %v267
      %v291 = vld [vmem:[%s2] sm:$0xff]
      %293 = vset.pattern.permute.xlu0 0
      %294 = vperm.xlu0 %293, %v291
      %v295 = vpop.permute.xlu0 %294
      %vm297 = vcmask 588800
      %v299 = vsel %vm297, %v275, 0
      %vm301 = vcmask 1043456
      %v303 = vsel %vm301, %v288, 0
      %v306 = vsel %vm301, %v289, 0
      %v309 = vsel %vm301, %v290, 0
      %311 = vmatpush.bf16.msra.mxu0 0
      %312 = vmatpush.bf16.msra.mxu0 0
      %313 = vmatpush.bf16.msra.mxu0 0
      %314 = vmatpush.bf16.msra.mxu0 %v303
      %315 = vmatpush.bf16.msra.mxu0 %v285
      %316 = vmatpush.bf16.msra.mxu0 %v282
      %317 = vmatpush.bf16.msra.mxu0 %v279
      %318 = vmatpush.bf16.msra.mxu0 %v276
      %319 = vmatmul.bf16.gmra.mxu0 %v299
      %v320 = vpop.f32.mrf.mxu0
      %v321 = vadd.f32 %v295, %v320
      %v322 = vpop.f32.mrf.mxu0
      %323 = vdwg.mxu0
      %324 = vmatpush.bf16.msra.mxu0 0
      %325 = vmatpush.bf16.msra.mxu0 0
      %326 = vmatpush.bf16.msra.mxu0 0
      %327 = vmatpush.bf16.msra.mxu0 %v306
      %328 = vmatpush.bf16.msra.mxu0 %v286
      %329 = vmatpush.bf16.msra.mxu0 %v283
      %330 = vmatpush.bf16.msra.mxu0 %v280
      %331 = vmatpush.bf16.msra.mxu0 %v277
      %332 = vmatmul.bf16.gmra.mxu0 %v299
      %v333 = vpop.f32.mrf.mxu0
      %v334 = vadd.f32 %v295, %v333
      %v335 = vpop.f32.mrf.mxu0
      %336 = vdwg.mxu0
      %337 = vmatpush.bf16.msra.mxu0 0
      %338 = vmatpush.bf16.msra.mxu0 0
      %339 = vmatpush.bf16.msra.mxu0 0
      %340 = vmatpush.bf16.msra.mxu0 %v309
      %341 = vmatpush.bf16.msra.mxu0 %v287
      %342 = vmatpush.bf16.msra.mxu0 %v284
      %343 = vmatpush.bf16.msra.mxu0 %v281
      %344 = vmatpush.bf16.msra.mxu0 %v278
      %345 = vmatmul.bf16.gmra.mxu0 %v299
      %v346 = vpop.f32.mrf.mxu0
      %v347 = vadd.f32 %v295, %v346
      %v348 = vpop.f32.mrf.mxu0
      %349 = vdwg.mxu0
      %v350 = vmax.f32 %v321, 0.0
      %v351 = vmax.f32 %v334, 0.0
      %v352 = vmax.f32 %v347, 0.0
      %353 = vst [vmem:[%s170] sm:$0xff] %v350
      %354 = vst [vmem:[%s170 + $0x8] sm:$0xff] %v351
      %vm355 = vcmask 261120
      %356 = vst.msk [vmem:[%s170 + $0x10] sm:$0xff] %vm355, %v352
      %p357 = scmp.lt.s32.totalorder %s14, 1
      %s358 = scalar_select %p357, %s14, 1
      %s359 = smul.addr %s358, 3
      %s360 = smul.addr %s359, 8
      %s361 = scalar_lea.vmem %s3, %s360
      // Predicated region
      $region33: #{posnet_forward.6} parent=31 // pred_check
        %p362 = pneg %p100
      $region34: #{posnet_forward.6} parent=31 // pred_check_branch
        %364 = sbr.rel (%p362) target = $region36
      $region35: #{posnet_forward.6} parent=31 // pred_region
        _
      $region36: #{posnet_forward.6} parent=31 // pred_fallthru
        _
    $region32: #{posnet_forward.6} parent=5 // pred_fallthru
      _
    %p365 = scmp.le.s32.totalorder 2, %s9
    // Predicated region
    $region37: #{posnet_forward.6} parent=5 // pred_check
      %p366 = pneg %p365
    $region38: #{posnet_forward.6} parent=5 // pred_check_branch
      %368 = sbr.rel (%p366) target = $region40
    $region39: #{posnet_forward.6} parent=5 // pred_region
      %s369 = ssub.s32 %s9, 2
      // Predicated region
      $region41: #{posnet_forward.6} parent=39 // pred_check
        %p370 = pneg %p106
      $region42: #{posnet_forward.6} parent=39 // pred_check_branch
        %372 = sbr.rel (%p370) target = $region44
      $region43: #{posnet_forward.6} parent=39 // pred_region
        %p373 = scmp.lt.s32.totalorder %s15, 1
        %s374 = scalar_select %p373, %s15, 1
        %s375 = smul.addr %s374, 3
        %s376 = smul.addr %s375, 8
        %s377 = scalar_lea.vmem %s3, %s376
      $region44: #{posnet_forward.6} parent=39 // pred_fallthru
        _
    $region40: #{posnet_forward.6} parent=5 // pred_fallthru
      _
  $region6: #{posnet_forward.6} parent=0 // loop_footer
    %s13 = sadd.s32 1, %s9
  $region7: #{posnet_forward.6} parent=0 // loop_footer_branch
    %8 = sbr.rel target = $region3
  $region8: #{posnet_forward.6} parent=0 // loop_exit
    _

// kernel: posnet_forward.7
$region0: #{posnet_forward.7}
  #allocation0 [shape = 'u32[]', space=smem, size = 0x4, offset = 0x4, fixed_abs, tag = 'smem constant byte address 0x4 - core index']
  #allocation1 [shape = 'u32[72,128]{1,0:T(1,128)}', space=vmem, size = 0x9000, scoped, tag = 'internal scratch']
  %s0 = inlined_call_operand.vmem [shape: f32[2,8,110], index: 0, kind: input, shape index: {}]
  %s1 = inlined_call_operand.vmem [shape: f32[16,72], index: 1, kind: input, shape index: {}]
  %s2 = inlined_call_operand.vmem [shape: f32[16,1], index: 2, kind: input, shape index: {}]
  %s3 = inlined_call_operand.vmem [shape: f32[2,16,80], index: 3, kind: output, shape index: {}]
  %s4 = sld [smem:[#allocation0]]
  $region45: #{posnet_forward.7} parent=0
    _
  %s6 = ssub.s32 1, %s4
  %s7 = scalar_select 0, %s6, %s4
  loop: start=0, step=1, limit=4
  $region2: #{posnet_forward.7} parent=0 // loop_pre_header
    _
  $region3: #{posnet_forward.7} parent=0 // loop_header
    %s9 = sphi 0, %s13
    %p10 = scmp.ge.s32.totalorder %s9, 4
    %s19 = sphi 0, %s21
    %s22 = sphi 0, %s19
    %s23 = sphi 0, %s22
    %s39 = sphi 0, %s23
    %s43 = sphi 0, %s43
    %s45 = sphi 0, %s43
    %s46 = sphi 0, %s45
    %s60 = sphi 0, %s46
    %s64 = sphi 0, %s64
    %s66 = sphi 0, %s64
    %s67 = sphi 0, %s66
    %s81 = sphi 0, %s67
    %s87 = sphi 0, %s89
    %s90 = sphi 0, %s87
    %s91 = sphi 0, %s90
    %s107 = sphi 0, %s91
  $region4: #{posnet_forward.7} parent=0 // loop_header_branch
    %12 = sbr.rel (%p10) target = $region8
  $region5: #{posnet_forward.7} parent=0 // loop_body
    %s14 = ssub.s32 %s9, 1
    %s15 = ssub.s32 %s9, 2
    %s16 = sadd.s32 %s9, 1
    %s17 = ssub.s32 %s9, %s16
    %p18 = scmp.eq.s32.totalorder %s17, 0
    %s20 = sadd.s32 %s19, 1
    %s21 = scalar_select %p18, %s19, %s20
    %p24 = pneg %p18
    %p25 = scmp.eq.s32.totalorder %s9, 1
    %p26 = por %p24, %p25
    %p27 = scmp.ne.s32.totalorder %s19, %s22
    %p28 = scmp.eq.s32.totalorder %s9, 0
    %p29 = por %p27, %p28
    %p30 = scmp.ne.s32.totalorder %s19, %s22
    %p31 = scmp.eq.s32.totalorder %s14, 1
    %p32 = por %p30, %p31
    %p33 = scmp.ne.s32.totalorder %s22, %s23
    %p34 = scmp.eq.s32.totalorder %s14, 0
    %p35 = por %p33, %p34
    %p36 = scmp.ne.s32.totalorder %s22, %s23
    %p37 = scmp.eq.s32.totalorder %s15, 1
    %p38 = por %p36, %p37
    %p40 = scmp.ne.s32.totalorder %s23, %s39
    %p41 = scmp.eq.s32.totalorder %s15, 0
    %p42 = por %p40, %p41
    %s44 = sadd.s32 %s43, 1
    %p47 = scmp.eq.s32.totalorder %s9, 1
    %p48 = scmp.ne.s32.totalorder %s43, %s45
    %p49 = scmp.eq.s32.totalorder %s9, 0
    %p50 = por %p48, %p49
    %p51 = scmp.ne.s32.totalorder %s43, %s45
    %p52 = scmp.eq.s32.totalorder %s14, 1
    %p53 = por %p51, %p52
    %p54 = scmp.ne.s32.totalorder %s45, %s46
    %p55 = scmp.eq.s32.totalorder %s14, 0
    %p56 = por %p54, %p55
    %p57 = scmp.ne.s32.totalorder %s45, %s46
    %p58 = scmp.eq.s32.totalorder %s15, 1
    %p59 = por %p57, %p58
    %p61 = scmp.ne.s32.totalorder %s46, %s60
    %p62 = scmp.eq.s32.totalorder %s15, 0
    %p63 = por %p61, %p62
    %s65 = sadd.s32 %s64, 1
    %p68 = scmp.eq.s32.totalorder %s9, 1
    %p69 = scmp.ne.s32.totalorder %s64, %s66
    %p70 = scmp.eq.s32.totalorder %s9, 0
    %p71 = por %p69, %p70
    %p72 = scmp.ne.s32.totalorder %s64, %s66
    %p73 = scmp.eq.s32.totalorder %s14, 1
    %p74 = por %p72, %p73
    %p75 = scmp.ne.s32.totalorder %s66, %s67
    %p76 = scmp.eq.s32.totalorder %s14, 0
    %p77 = por %p75, %p76
    %p78 = scmp.ne.s32.totalorder %s66, %s67
    %p79 = scmp.eq.s32.totalorder %s15, 1
    %p80 = por %p78, %p79
    %p82 = scmp.ne.s32.totalorder %s67, %s81
    %p83 = scmp.eq.s32.totalorder %s15, 0
    %p84 = por %p82, %p83
    %s85 = ssub.s32 %s9, %s16
    %p86 = scmp.eq.s32.totalorder %s85, 0
    %s88 = sadd.s32 %s87, 1
    %s89 = scalar_select %p86, %s87, %s88
    %p92 = pneg %p86
    %p93 = scmp.eq.s32.totalorder %s9, 1
    %p94 = por %p92, %p93
    %p95 = scmp.ne.s32.totalorder %s87, %s90
    %p96 = scmp.eq.s32.totalorder %s9, 0
    %p97 = por %p95, %p96
    %p98 = scmp.ne.s32.totalorder %s87, %s90
    %p99 = scmp.eq.s32.totalorder %s14, 1
    %p100 = por %p98, %p99
    %p101 = scmp.ne.s32.totalorder %s90, %s91
    %p102 = scmp.eq.s32.totalorder %s14, 0
    %p103 = por %p101, %p102
    %p104 = scmp.ne.s32.totalorder %s90, %s91
    %p105 = scmp.eq.s32.totalorder %s15, 1
    %p106 = por %p104, %p105
    %p108 = scmp.ne.s32.totalorder %s91, %s107
    %p109 = scmp.eq.s32.totalorder %s15, 0
    %p110 = por %p108, %p109
    %p111 = scmp.le.s32.totalorder 1, %s9
    %p112 = scmp.lt.s32.totalorder %s9, 3
    %p113 = pnand %p111, %p112
    %p114 = pneg %p113
    // Predicated region
    $region9: #{posnet_forward.7} parent=5 // pred_check
      _
    $region10: #{posnet_forward.7} parent=5 // pred_check_branch
      %116 = sbr.rel (%p113) target = $region12
    $region11: #{posnet_forward.7} parent=5 // pred_region
      %s117 = ssub.s32 %s9, 1
      // Predicated region
      $region13: #{posnet_forward.7} parent=11 // pred_check
        %p118 = pneg %p56
      $region14: #{posnet_forward.7} parent=11 // pred_check_branch
        %120 = sbr.rel (%p118) target = $region16
      $region15: #{posnet_forward.7} parent=11 // pred_region
        _
      $region16: #{posnet_forward.7} parent=11 // pred_fallthru
        _
      // Predicated region
      $region17: #{posnet_forward.7} parent=11 // pred_check
        %p121 = pneg %p77
      $region18: #{posnet_forward.7} parent=11 // pred_check_branch
        %123 = sbr.rel (%p121) target = $region20
      $region19: #{posnet_forward.7} parent=11 // pred_region
        _
      $region20: #{posnet_forward.7} parent=11 // pred_fallthru
        _
    $region12: #{posnet_forward.7} parent=5 // pred_fallthru
      _
    %p124 = scmp.lt.s32.totalorder %s9, 2
    // Predicated region
    $region21: #{posnet_forward.7} parent=5 // pred_check
      %p125 = pneg %p124
    $region22: #{posnet_forward.7} parent=5 // pred_check_branch
      %127 = sbr.rel (%p125) target = $region24
    $region23: #{posnet_forward.7} parent=5 // pred_region
      // Predicated region
      $region25: #{posnet_forward.7} parent=23 // pred_check
        %p128 = pneg %p29
      $region26: #{posnet_forward.7} parent=23 // pred_check_branch
        %130 = sbr.rel (%p128) target = $region28
      $region27: #{posnet_forward.7} parent=23 // pred_region
        %p131 = scmp.lt.s32.totalorder %s9, 1
        %s132 = scalar_select %p131, %s9, 1
        %s133 = smul.addr %s132, 8
        %s134 = scalar_lea.vmem %s0, %s133
      $region28: #{posnet_forward.7} parent=23 // pred_fallthru
        _
    $region24: #{posnet_forward.7} parent=5 // pred_fallthru
      _
    %p135 = scmp.le.s32.totalorder 1, %s9
    %p136 = scmp.lt.s32.totalorder %s9, 3
    %p137 = pnand %p135, %p136
    %p138 = pneg %p137
    // Predicated region
    $region29: #{posnet_forward.7} parent=5 // pred_check
      _
    $region30: #{posnet_forward.7} parent=5 // pred_check_branch
      %140 = sbr.rel (%p137) target = $region32
    $region31: #{posnet_forward.7} parent=5 // pred_region
      %s141 = ssub.s32 %s9, 1
      %p142 = scmp.lt.s32.totalorder %s14, 1
      %s143 = scalar_select %p142, %s14, 1
      %s144 = smul.addr %s143, 8
      %s145 = scalar_lea.vmem %s0, %s144
      %p146 = pneg %p35
      %p147 = pneg %p32
      %p148 = pneg %p56
      %p149 = pneg %p53
      %p150 = pneg %p77
      %p151 = pneg %p74
      %p152 = pneg %p103
      %p153 = pneg %p100
      %p154 = scmp.lt.s32.totalorder %s14, 1
      %s155 = scalar_select %p154, %s14, 1
      %s156 = smul.addr %s155, 2
      %s157 = smul.addr %s156, 8
      %s158 = scalar_lea.vmem %s3, %s157
      %p159 = scmp.lt.s32.totalorder %s14, 1
      %s160 = scalar_select %p159, %s14, 1
      %s161 = smul.addr %s160, 8
      %s162 = scalar_lea.vmem %s0, %s161
      %p163 = scmp.lt.s32.totalorder %s14, 1
      %s164 = scalar_select %p163, %s14, 1
      %s165 = smul.addr %s164, 2
      %s166 = smul.addr %s165, 8
      %s167 = scalar_lea.vmem %s3, %s166
      %v169 = vld [vmem:[%s162] sm:$0xff]
      %171 = vrot.lane.b32.xlu0 %v169, 127
      %v172 = vpop.permute.xlu0 %171
      %174 = vrot.lane.b32.xlu0 %v169, 126
      %v175 = vpop.permute.xlu0 %174
      %177 = vrot.lane.b32.xlu0 %v169, 118
      %v178 = vpop.permute.xlu0 %177
      %180 = vrot.lane.b32.xlu0 %v169, 117
      %v181 = vpop.permute.xlu0 %180
      %183 = vrot.lane.b32.xlu0 %v169, 116
      %v184 = vpop.permute.xlu0 %183
      %186 = vrot.lane.b32.xlu0 %v169, 108
      %v187 = vpop.permute.xlu0 %186
      %189 = vrot.lane.b32.xlu0 %v169, 107
      %v190 = vpop.permute.xlu0 %189
      %192 = vrot.lane.b32.xlu0 %v169, 106
      %v193 = vpop.permute.xlu0 %192
      %v195 = vld [vmem:[%s1] sm:$0xff]
      %v196 = vld [vmem:[%s1 + $0x8] sm:$0xff]
      %v197 = vpack.c.bf16 %v196, %v195
      %v198 = vpack.c.bf16 %v172, %v169
      %v199 = vpack.c.bf16 %v178, %v175
      %v200 = vpack.c.bf16 %v184, %v181
      %v201 = vpack.c.bf16 %v190, %v187
      %v202 = vpack.c.bf16 %v193, %v193
      %v203 = vld [vmem:[%s2] sm:$0xff]
      %v204 = vld [vmem:[%s2 + $0x8] sm:$0xff]
      %206 = vset.pattern.permute.xlu0 0
      %207 = vperm.xlu0 %206, %v203
      %v208 = vpop.permute.xlu0 %207
      %211 = vset.pattern.permute.xlu0 0
      %212 = vperm.xlu0 %211, %v204
      %v213 = vpop.permute.xlu0 %212
      %vm215 = vcmask 588800
      %v217 = vsel %vm215, %v197, 0
      %vm219 = vcmask 1043456
      %v221 = vsel %vm219, %v202, 0
      %223 = vmatpush.bf16.msra.mxu0 0
      %224 = vmatpush.bf16.msra.mxu0 0
      %225 = vmatpush.bf16.msra.mxu0 0
      %226 = vmatpush.bf16.msra.mxu0 %v221
      %227 = vmatpush.bf16.msra.mxu0 %v201
      %228 = vmatpush.bf16.msra.mxu0 %v200
      %229 = vmatpush.bf16.msra.mxu0 %v199
      %230 = vmatpush.bf16.msra.mxu0 %v198
      %231 = vmatmul.bf16.gmra.mxu0 %v217
      %v232 = vpop.f32.mrf.mxu0
      %v233 = vadd.f32 %v208, %v232
      %v234 = vpop.f32.mrf.mxu0
      %v235 = vadd.f32 %v213, %v234
      %236 = vdwg.mxu0
      %v237 = vmax.f32 %v233, 0.0
      %v238 = vmax.f32 %v235, 0.0
      %vm239 = vcmask 654336
      %240 = vst.msk [vmem:[%s167] sm:$0xff] %vm239, %v237
      %241 = vst.msk [vmem:[%s167 + $0x8] sm:$0xff] %vm239, %v238
      %p242 = scmp.lt.s32.totalorder %s14, 1
      %s243 = scalar_select %p242, %s14, 1
      %s244 = smul.addr %s243, 2
      %s245 = smul.addr %s244, 8
      %s246 = scalar_lea.vmem %s3, %s245
      // Predicated region
      $region33: #{posnet_forward.7} parent=31 // pred_check
        %p247 = pneg %p100
      $region34: #{posnet_forward.7} parent=31 // pred_check_branch
        %249 = sbr.rel (%p247) target = $region36
      $region35: #{posnet_forward.7} parent=31 // pred_region
        _
      $region36: #{posnet_forward.7} parent=31 // pred_fallthru
        _
    $region32: #{posnet_forward.7} parent=5 // pred_fallthru
      _
    %p250 = scmp.le.s32.totalorder 2, %s9
    // Predicated region
    $region37: #{posnet_forward.7} parent=5 // pred_check
      %p251 = pneg %p250
    $region38: #{posnet_forward.7} parent=5 // pred_check_branch
      %253 = sbr.rel (%p251) target = $region40
    $region39: #{posnet_forward.7} parent=5 // pred_region
      %s254 = ssub.s32 %s9, 2
      // Predicated region
      $region41: #{posnet_forward.7} parent=39 // pred_check
        %p255 = pneg %p106
      $region42: #{posnet_forward.7} parent=39 // pred_check_branch
        %257 = sbr.rel (%p255) target = $region44
      $region43: #{posnet_forward.7} parent=39 // pred_region
        %p258 = scmp.lt.s32.totalorder %s15, 1
        %s259 = scalar_select %p258, %s15, 1
        %s260 = smul.addr %s259, 2
        %s261 = smul.addr %s260, 8
        %s262 = scalar_lea.vmem %s3, %s261
      $region44: #{posnet_forward.7} parent=39 // pred_fallthru
        _
    $region40: #{posnet_forward.7} parent=5 // pred_fallthru
      _
  $region6: #{posnet_forward.7} parent=0 // loop_footer
    %s13 = sadd.s32 1, %s9
  $region7: #{posnet_forward.7} parent=0 // loop_footer_branch
    %8 = sbr.rel target = $region3
  $region8: #{posnet_forward.7} parent=0 // loop_exit
    _

// kernel: posnet_forward.8
$region0: #{posnet_forward.8}
  #allocation0 [shape = 'u32[]', space=smem, size = 0x4, offset = 0x4, fixed_abs, tag = 'smem constant byte address 0x4 - core index']
  #allocation1 [shape = 'u32[72,128]{1,0:T(1,128)}', space=vmem, size = 0x9000, scoped, tag = 'internal scratch']
  %s0 = inlined_call_operand.vmem [shape: f32[2,16,42], index: 0, kind: input, shape index: {}]
  %s1 = inlined_call_operand.vmem [shape: f32[32,144], index: 1, kind: input, shape index: {}]
  %s2 = inlined_call_operand.vmem [shape: f32[32,1], index: 2, kind: input, shape index: {}]
  %s3 = inlined_call_operand.vmem [shape: f32[2,32,24], index: 3, kind: output, shape index: {}]
  %s4 = sld [smem:[#allocation0]]
  $region45: #{posnet_forward.8} parent=0
    _
  %s6 = ssub.s32 1, %s4
  %s7 = scalar_select 0, %s6, %s4
  loop: start=0, step=1, limit=4
  $region2: #{posnet_forward.8} parent=0 // loop_pre_header
    _
  $region3: #{posnet_forward.8} parent=0 // loop_header
    %s9 = sphi 0, %s13
    %p10 = scmp.ge.s32.totalorder %s9, 4
    %s19 = sphi 0, %s21
    %s22 = sphi 0, %s19
    %s23 = sphi 0, %s22
    %s39 = sphi 0, %s23
    %s43 = sphi 0, %s43
    %s45 = sphi 0, %s43
    %s46 = sphi 0, %s45
    %s60 = sphi 0, %s46
    %s64 = sphi 0, %s64
    %s66 = sphi 0, %s64
    %s67 = sphi 0, %s66
    %s81 = sphi 0, %s67
    %s87 = sphi 0, %s89
    %s90 = sphi 0, %s87
    %s91 = sphi 0, %s90
    %s107 = sphi 0, %s91
  $region4: #{posnet_forward.8} parent=0 // loop_header_branch
    %12 = sbr.rel (%p10) target = $region8
  $region5: #{posnet_forward.8} parent=0 // loop_body
    %s14 = ssub.s32 %s9, 1
    %s15 = ssub.s32 %s9, 2
    %s16 = sadd.s32 %s9, 1
    %s17 = ssub.s32 %s9, %s16
    %p18 = scmp.eq.s32.totalorder %s17, 0
    %s20 = sadd.s32 %s19, 1
    %s21 = scalar_select %p18, %s19, %s20
    %p24 = pneg %p18
    %p25 = scmp.eq.s32.totalorder %s9, 1
    %p26 = por %p24, %p25
    %p27 = scmp.ne.s32.totalorder %s19, %s22
    %p28 = scmp.eq.s32.totalorder %s9, 0
    %p29 = por %p27, %p28
    %p30 = scmp.ne.s32.totalorder %s19, %s22
    %p31 = scmp.eq.s32.totalorder %s14, 1
    %p32 = por %p30, %p31
    %p33 = scmp.ne.s32.totalorder %s22, %s23
    %p34 = scmp.eq.s32.totalorder %s14, 0
    %p35 = por %p33, %p34
    %p36 = scmp.ne.s32.totalorder %s22, %s23
    %p37 = scmp.eq.s32.totalorder %s15, 1
    %p38 = por %p36, %p37
    %p40 = scmp.ne.s32.totalorder %s23, %s39
    %p41 = scmp.eq.s32.totalorder %s15, 0
    %p42 = por %p40, %p41
    %s44 = sadd.s32 %s43, 1
    %p47 = scmp.eq.s32.totalorder %s9, 1
    %p48 = scmp.ne.s32.totalorder %s43, %s45
    %p49 = scmp.eq.s32.totalorder %s9, 0
    %p50 = por %p48, %p49
    %p51 = scmp.ne.s32.totalorder %s43, %s45
    %p52 = scmp.eq.s32.totalorder %s14, 1
    %p53 = por %p51, %p52
    %p54 = scmp.ne.s32.totalorder %s45, %s46
    %p55 = scmp.eq.s32.totalorder %s14, 0
    %p56 = por %p54, %p55
    %p57 = scmp.ne.s32.totalorder %s45, %s46
    %p58 = scmp.eq.s32.totalorder %s15, 1
    %p59 = por %p57, %p58
    %p61 = scmp.ne.s32.totalorder %s46, %s60
    %p62 = scmp.eq.s32.totalorder %s15, 0
    %p63 = por %p61, %p62
    %s65 = sadd.s32 %s64, 1
    %p68 = scmp.eq.s32.totalorder %s9, 1
    %p69 = scmp.ne.s32.totalorder %s64, %s66
    %p70 = scmp.eq.s32.totalorder %s9, 0
    %p71 = por %p69, %p70
    %p72 = scmp.ne.s32.totalorder %s64, %s66
    %p73 = scmp.eq.s32.totalorder %s14, 1
    %p74 = por %p72, %p73
    %p75 = scmp.ne.s32.totalorder %s66, %s67
    %p76 = scmp.eq.s32.totalorder %s14, 0
    %p77 = por %p75, %p76
    %p78 = scmp.ne.s32.totalorder %s66, %s67
    %p79 = scmp.eq.s32.totalorder %s15, 1
    %p80 = por %p78, %p79
    %p82 = scmp.ne.s32.totalorder %s67, %s81
    %p83 = scmp.eq.s32.totalorder %s15, 0
    %p84 = por %p82, %p83
    %s85 = ssub.s32 %s9, %s16
    %p86 = scmp.eq.s32.totalorder %s85, 0
    %s88 = sadd.s32 %s87, 1
    %s89 = scalar_select %p86, %s87, %s88
    %p92 = pneg %p86
    %p93 = scmp.eq.s32.totalorder %s9, 1
    %p94 = por %p92, %p93
    %p95 = scmp.ne.s32.totalorder %s87, %s90
    %p96 = scmp.eq.s32.totalorder %s9, 0
    %p97 = por %p95, %p96
    %p98 = scmp.ne.s32.totalorder %s87, %s90
    %p99 = scmp.eq.s32.totalorder %s14, 1
    %p100 = por %p98, %p99
    %p101 = scmp.ne.s32.totalorder %s90, %s91
    %p102 = scmp.eq.s32.totalorder %s14, 0
    %p103 = por %p101, %p102
    %p104 = scmp.ne.s32.totalorder %s90, %s91
    %p105 = scmp.eq.s32.totalorder %s15, 1
    %p106 = por %p104, %p105
    %p108 = scmp.ne.s32.totalorder %s91, %s107
    %p109 = scmp.eq.s32.totalorder %s15, 0
    %p110 = por %p108, %p109
    %p111 = scmp.le.s32.totalorder 1, %s9
    %p112 = scmp.lt.s32.totalorder %s9, 3
    %p113 = pnand %p111, %p112
    %p114 = pneg %p113
    // Predicated region
    $region9: #{posnet_forward.8} parent=5 // pred_check
      _
    $region10: #{posnet_forward.8} parent=5 // pred_check_branch
      %116 = sbr.rel (%p113) target = $region12
    $region11: #{posnet_forward.8} parent=5 // pred_region
      %s117 = ssub.s32 %s9, 1
      // Predicated region
      $region13: #{posnet_forward.8} parent=11 // pred_check
        %p118 = pneg %p56
      $region14: #{posnet_forward.8} parent=11 // pred_check_branch
        %120 = sbr.rel (%p118) target = $region16
      $region15: #{posnet_forward.8} parent=11 // pred_region
        _
      $region16: #{posnet_forward.8} parent=11 // pred_fallthru
        _
      // Predicated region
      $region17: #{posnet_forward.8} parent=11 // pred_check
        %p121 = pneg %p77
      $region18: #{posnet_forward.8} parent=11 // pred_check_branch
        %123 = sbr.rel (%p121) target = $region20
      $region19: #{posnet_forward.8} parent=11 // pred_region
        _
      $region20: #{posnet_forward.8} parent=11 // pred_fallthru
        _
    $region12: #{posnet_forward.8} parent=5 // pred_fallthru
      _
    %p124 = scmp.lt.s32.totalorder %s9, 2
    // Predicated region
    $region21: #{posnet_forward.8} parent=5 // pred_check
      %p125 = pneg %p124
    $region22: #{posnet_forward.8} parent=5 // pred_check_branch
      %127 = sbr.rel (%p125) target = $region24
    $region23: #{posnet_forward.8} parent=5 // pred_region
      // Predicated region
      $region25: #{posnet_forward.8} parent=23 // pred_check
        %p128 = pneg %p29
      $region26: #{posnet_forward.8} parent=23 // pred_check_branch
        %130 = sbr.rel (%p128) target = $region28
      $region27: #{posnet_forward.8} parent=23 // pred_region
        %p131 = scmp.lt.s32.totalorder %s9, 1
        %s132 = scalar_select %p131, %s9, 1
        %s133 = smul.addr %s132, 2
        %s134 = smul.addr %s133, 8
        %s135 = scalar_lea.vmem %s0, %s134
      $region28: #{posnet_forward.8} parent=23 // pred_fallthru
        _
    $region24: #{posnet_forward.8} parent=5 // pred_fallthru
      _
    %p136 = scmp.le.s32.totalorder 1, %s9
    %p137 = scmp.lt.s32.totalorder %s9, 3
    %p138 = pnand %p136, %p137
    %p139 = pneg %p138
    // Predicated region
    $region29: #{posnet_forward.8} parent=5 // pred_check
      _
    $region30: #{posnet_forward.8} parent=5 // pred_check_branch
      %141 = sbr.rel (%p138) target = $region32
    $region31: #{posnet_forward.8} parent=5 // pred_region
      %s142 = ssub.s32 %s9, 1
      %p143 = scmp.lt.s32.totalorder %s14, 1
      %s144 = scalar_select %p143, %s14, 1
      %s145 = smul.addr %s144, 2
      %s146 = smul.addr %s145, 8
      %s147 = scalar_lea.vmem %s0, %s146
      %p148 = pneg %p35
      %p149 = pneg %p32
      %p150 = pneg %p56
      %p151 = pneg %p53
      %p152 = pneg %p77
      %p153 = pneg %p74
      %p154 = pneg %p103
      %p155 = pneg %p100
      %p156 = scmp.lt.s32.totalorder %s14, 1
      %s157 = scalar_select %p156, %s14, 1
      %s158 = smul.addr %s157, 4
      %s159 = smul.addr %s158, 8
      %s160 = scalar_lea.vmem %s3, %s159
      %p161 = scmp.lt.s32.totalorder %s14, 1
      %s162 = scalar_select %p161, %s14, 1
      %s163 = smul.addr %s162, 2
      %s164 = smul.addr %s163, 8
      %s165 = scalar_lea.vmem %s0, %s164
      %p166 = scmp.lt.s32.totalorder %s14, 1
      %s167 = scalar_select %p166, %s14, 1
      %s168 = smul.addr %s167, 4
      %s169 = smul.addr %s168, 8
      %s170 = scalar_lea.vmem %s3, %s169
      %v172 = vld [vmem:[%s165] sm:$0xff]
      %v173 = vld [vmem:[%s165 + $0x8] sm:$0xff]
      %176 = vrot.lane.b32.xlu0 %v172, 127
      %v177 = vpop.permute.xlu0 %176
      %178 = vrot.lane.b32.xlu0 %v173, 127
      %v179 = vpop.permute.xlu0 %178
      %182 = vrot.lane.b32.xlu0 %v172, 126
      %v183 = vpop.permute.xlu0 %182
      %184 = vrot.lane.b32.xlu0 %v173, 126
      %v185 = vpop.permute.xlu0 %184
      %188 = vrot.lane.b32.xlu0 %v172, 122
      %v189 = vpop.permute.xlu0 %188
      %190 = vrot.lane.b32.xlu0 %v173, 122
      %v191 = vpop.permute.xlu0 %190
      %194 = vrot.lane.b32.xlu0 %v172, 121
      %v195 = vpop.permute.xlu0 %194
      %196 = vrot.lane.b32.xlu0 %v173, 121
      %v197 = vpop.permute.xlu0 %196
      %200 = vrot.lane.b32.xlu0 %v172, 120
      %v201 = vpop.permute.xlu0 %200
      %202 = vrot.lane.b32.xlu0 %v173, 120
      %v203 = vpop.permute.xlu0 %202
      %206 = vrot.lane.b32.xlu0 %v172, 116
      %v207 = vpop.permute.xlu0 %206
      %208 = vrot.lane.b32.xlu0 %v173, 116
      %v209 = vpop.permute.xlu0 %208
      %212 = vrot.lane.b32.xlu0 %v172, 115
      %v213 = vpop.permute.xlu0 %212
      %214 = vrot.lane.b32.xlu0 %v173, 115
      %v215 = vpop.permute.xlu0 %214
      %218 = vrot.lane.b32.xlu0 %v172, 114
      %v219 = vpop.permute.xlu0 %218
      %220 = vrot.lane.b32.xlu0 %v173, 114
      %v221 = vpop.permute.xlu0 %220
      %v224 = vld [vmem:[%s1] sm:$0xff]
      %v225 = vld [vmem:[%s1 + $0x8] sm:$0xff]
      %v226 = vld [vmem:[%s1 + $0x10] sm:$0xff]
      %v227 = vld [vmem:[%s1 + $0x18] sm:$0xff]
      %v228 = vld [vmem:[%s1 + $0x20] sm:$0xff]
      %v229 = vld [vmem:[%s1 + $0x28] sm:$0xff]
      %v230 = vld [vmem:[%s1 + $0x30] sm:$0xff]
      %v231 = vld [vmem:[%s1 + $0x38] sm:$0xff]
      %v232 = vpack.c.bf16 %v226, %v224
      %v233 = vpack.c.bf16 %v227, %v225
      %v234 = vpack.c.bf16 %v230, %v228
      %v235 = vpack.c.bf16 %v231, %v229
      %v236 = vpack.c.bf16 %v173, %v172
      %v237 = vpack.c.bf16 %v179, %v177
      %v238 = vpack.c.bf16 %v185, %v183
      %v239 = vpack.c.bf16 %v191, %v189
      %v240 = vpack.c.bf16 %v197, %v195
      %v241 = vpack.c.bf16 %v203, %v201
      %v242 = vpack.c.bf16 %v209, %v207
      %v243 = vpack.c.bf16 %v215, %v213
      %v244 = vpack.c.bf16 %v221, %v219
      %v245 = vld [vmem:[%s2] sm:$0xff]
      %v246 = vld [vmem:[%s2 + $0x8] sm:$0xff]
      %v247 = vld [vmem:[%s2 + $0x10] sm:$0xff]
      %v248 = vld [vmem:[%s2 + $0x18] sm:$0xff]
      %250 = vset.pattern.permute.xlu0 0
      %251 = vperm.xlu0 %250, %v245
      %v252 = vpop.permute.xlu0 %251
      %255 = vset.pattern.permute.xlu0 0
      %256 = vperm.xlu0 %255, %v246
      %v257 = vpop.permute.xlu0 %256
      %260 = vset.pattern.permute.xlu0 0
      %261 = vperm.xlu0 %260, %v247
      %v262 = vpop.permute.xlu0 %261
      %265 = vset.pattern.permute.xlu0 0
      %266 = vperm.xlu0 %265, %v248
      %v267 = vpop.permute.xlu0 %266
      %vm269 = vcmask 130048
      %v271 = vsel %vm269, %v233, 0
      %v274 = vsel %vm269, %v235, 0
      %276 = vmatpush.bf16.msra.mxu0 %v243
      %277 = vmatpush.bf16.msra.mxu0 %v242
      %278 = vmatpush.bf16.msra.mxu0 %v241
      %279 = vmatpush.bf16.msra.mxu0 %v240
      %280 = vmatpush.bf16.msra.mxu0 %v239
      %281 = vmatpush.bf16.msra.mxu0 %v238
      %282 = vmatpush.bf16.msra.mxu0 %v237
      %283 = vmatpush.bf16.msra.mxu0 %v236
      %284 = vmatmul.bf16.gmra.mxu0 %v232
      %v285 = vpop.f32.mrf.mxu0
      %v286 = vadd.f32 %v252, %v285
      %v287 = vpop.f32.mrf.mxu0
      %v288 = vadd.f32 %v257, %v287
      %289 = vmatmul.bf16.gmra.mxu0 %v234
      %v290 = vpop.f32.mrf.mxu0
      %v291 = vadd.f32 %v262, %v290
      %v292 = vpop.f32.mrf.mxu0
      %v293 = vadd.f32 %v267, %v292
      %294 = vdwg.mxu0
      %295 = vmatpush.bf16.msra.mxu0 0
      %296 = vmatpush.bf16.msra.mxu0 0
      %297 = vmatpush.bf16.msra.mxu0 0
      %298 = vmatpush.bf16.msra.mxu0 0
      %299 = vmatpush.bf16.msra.mxu0 0
      %300 = vmatpush.bf16.msra.mxu0 0
      %301 = vmatpush.bf16.msra.mxu0 0
      %302 = vmatpush.bf16.msra.mxu0 %v244
      %303 = vmatmul.bf16.gmra.mxu0 %v271
      %v304 = vpop.f32.mrf.mxu0
      %v305 = vadd.f32 %v286, %v304
      %v306 = vpop.f32.mrf.mxu0
      %v307 = vadd.f32 %v288, %v306
      %308 = vmatmul.bf16.gmra.mxu0 %v274
      %v309 = vpop.f32.mrf.mxu0
      %v310 = vadd.f32 %v291, %v309
      %v311 = vpop.f32.mrf.mxu0
      %v312 = vadd.f32 %v293, %v311
      %313 = vdwg.mxu0
      %v314 = vmax.f32 %v305, 0.0
      %v315 = vmax.f32 %v307, 0.0
      %v316 = vmax.f32 %v310, 0.0
      %v317 = vmax.f32 %v312, 0.0
      %vm318 = vcmask 195584
      %319 = vst.msk [vmem:[%s170] sm:$0xff] %vm318, %v314
      %320 = vst.msk [vmem:[%s170 + $0x8] sm:$0xff] %vm318, %v315
      %321 = vst.msk [vmem:[%s170 + $0x10] sm:$0xff] %vm318, %v316
      %322 = vst.msk [vmem:[%s170 + $0x18] sm:$0xff] %vm318, %v317
      %p323 = scmp.lt.s32.totalorder %s14, 1
      %s324 = scalar_select %p323, %s14, 1
      %s325 = smul.addr %s324, 4
      %s326 = smul.addr %s325, 8
      %s327 = scalar_lea.vmem %s3, %s326
      // Predicated region
      $region33: #{posnet_forward.8} parent=31 // pred_check
        %p328 = pneg %p100
      $region34: #{posnet_forward.8} parent=31 // pred_check_branch
        %330 = sbr.rel (%p328) target = $region36
      $region35: #{posnet_forward.8} parent=31 // pred_region
        _
      $region36: #{posnet_forward.8} parent=31 // pred_fallthru
        _
    $region32: #{posnet_forward.8} parent=5 // pred_fallthru
      _
    %p331 = scmp.le.s32.totalorder 2, %s9
    // Predicated region
    $region37: #{posnet_forward.8} parent=5 // pred_check
      %p332 = pneg %p331
    $region38: #{posnet_forward.8} parent=5 // pred_check_branch
      %334 = sbr.rel (%p332) target = $region40
    $region39: #{posnet_forward.8} parent=5 // pred_region
      %s335 = ssub.s32 %s9, 2
      // Predicated region
      $region41: #{posnet_forward.8} parent=39 // pred_check
        %p336 = pneg %p106
      $region42: #{posnet_forward.8} parent=39 // pred_check_branch
        %338 = sbr.rel (%p336) target = $region44
      $region43: #{posnet_forward.8} parent=39 // pred_region
        %p339 = scmp.lt.s32.totalorder %s15, 1
        %s340 = scalar_select %p339, %s15, 1
        %s341 = smul.addr %s340, 4
        %s342 = smul.addr %s341, 8
        %s343 = scalar_lea.vmem %s3, %s342
      $region44: #{posnet_forward.8} parent=39 // pred_fallthru
        _
    $region40: #{posnet_forward.8} parent=5 // pred_fallthru
      _
  $region6: #{posnet_forward.8} parent=0 // loop_footer
    %s13 = sadd.s32 1, %s9
  $region7: #{posnet_forward.8} parent=0 // loop_footer_branch
    %8 = sbr.rel target = $region3
  $region8: #{posnet_forward.8} parent=0 // loop_exit
    _

// kernel: posnet_forward.9
$region0: #{posnet_forward.9}
  #allocation0 [shape = 'u32[]', space=smem, size = 0x4, offset = 0x4, fixed_abs, tag = 'smem constant byte address 0x4 - core index']
  #allocation1 [shape = 'u32[72,128]{1,0:T(1,128)}', space=vmem, size = 0x9000, scoped, tag = 'internal scratch']
  %s0 = inlined_call_operand.vmem [shape: f32[2,32,110], index: 0, kind: input, shape index: {}]
  %s1 = inlined_call_operand.vmem [shape: f32[16,288], index: 1, kind: input, shape index: {}]
  %s2 = inlined_call_operand.vmem [shape: f32[2,16,110], index: 2, kind: input, shape index: {}]
  %s3 = inlined_call_operand.vmem [shape: f32[16,144], index: 3, kind: input, shape index: {}]
  %s4 = inlined_call_operand.vmem [shape: f32[16,1], index: 4, kind: input, shape index: {}]
  %s5 = inlined_call_operand.vmem [shape: f32[2,16,80], index: 5, kind: output, shape index: {}]
  %s6 = sld [smem:[#allocation0]]
  $region53: #{posnet_forward.9} parent=0
    _
  %s8 = ssub.s32 1, %s6
  %s9 = scalar_select 0, %s8, %s6
  loop: start=0, step=1, limit=4
  $region2: #{posnet_forward.9} parent=0 // loop_pre_header
    _
  $region3: #{posnet_forward.9} parent=0 // loop_header
    %s11 = sphi 0, %s15
    %p12 = scmp.ge.s32.totalorder %s11, 4
    %s21 = sphi 0, %s23
    %s24 = sphi 0, %s21
    %s25 = sphi 0, %s24
    %s41 = sphi 0, %s25
    %s45 = sphi 0, %s45
    %s47 = sphi 0, %s45
    %s48 = sphi 0, %s47
    %s62 = sphi 0, %s48
    %s68 = sphi 0, %s70
    %s71 = sphi 0, %s68
    %s72 = sphi 0, %s71
    %s88 = sphi 0, %s72
    %s92 = sphi 0, %s92
    %s94 = sphi 0, %s92
    %s95 = sphi 0, %s94
    %s109 = sphi 0, %s95
    %s113 = sphi 0, %s113
    %s115 = sphi 0, %s113
    %s116 = sphi 0, %s115
    %s130 = sphi 0, %s116
    %s136 = sphi 0, %s138
    %s139 = sphi 0, %s136
    %s140 = sphi 0, %s139
    %s156 = sphi 0, %s140
  $region4: #{posnet_forward.9} parent=0 // loop_header_branch
    %14 = sbr.rel (%p12) target = $region8
  $region5: #{posnet_forward.9} parent=0 // loop_body
    %s16 = ssub.s32 %s11, 1
    %s17 = ssub.s32 %s11, 2
    %s18 = sadd.s32 %s11, 1
    %s19 = ssub.s32 %s11, %s18
    %p20 = scmp.eq.s32.totalorder %s19, 0
    %s22 = sadd.s32 %s21, 1
    %s23 = scalar_select %p20, %s21, %s22
    %p26 = pneg %p20
    %p27 = scmp.eq.s32.totalorder %s11, 1
    %p28 = por %p26, %p27
    %p29 = scmp.ne.s32.totalorder %s21, %s24
    %p30 = scmp.eq.s32.totalorder %s11, 0
    %p31 = por %p29, %p30
    %p32 = scmp.ne.s32.totalorder %s21, %s24
    %p33 = scmp.eq.s32.totalorder %s16, 1
    %p34 = por %p32, %p33
    %p35 = scmp.ne.s32.totalorder %s24, %s25
    %p36 = scmp.eq.s32.totalorder %s16, 0
    %p37 = por %p35, %p36
    %p38 = scmp.ne.s32.totalorder %s24, %s25
    %p39 = scmp.eq.s32.totalorder %s17, 1
    %p40 = por %p38, %p39
    %p42 = scmp.ne.s32.totalorder %s25, %s41
    %p43 = scmp.eq.s32.totalorder %s17, 0
    %p44 = por %p42, %p43
    %s46 = sadd.s32 %s45, 1
    %p49 = scmp.eq.s32.totalorder %s11, 1
    %p50 = scmp.ne.s32.totalorder %s45, %s47
    %p51 = scmp.eq.s32.totalorder %s11, 0
    %p52 = por %p50, %p51
    %p53 = scmp.ne.s32.totalorder %s45, %s47
    %p54 = scmp.eq.s32.totalorder %s16, 1
    %p55 = por %p53, %p54
    %p56 = scmp.ne.s32.totalorder %s47, %s48
    %p57 = scmp.eq.s32.totalorder %s16, 0
    %p58 = por %p56, %p57
    %p59 = scmp.ne.s32.totalorder %s47, %s48
    %p60 = scmp.eq.s32.totalorder %s17, 1
    %p61 = por %p59, %p60
    %p63 = scmp.ne.s32.totalorder %s48, %s62
    %p64 = scmp.eq.s32.totalorder %s17, 0
    %p65 = por %p63, %p64
    %s66 = ssub.s32 %s11, %s18
    %p67 = scmp.eq.s32.totalorder %s66, 0
    %s69 = sadd.s32 %s68, 1
    %s70 = scalar_select %p67, %s68, %s69
    %p73 = pneg %p67
    %p74 = scmp.eq.s32.totalorder %s11, 1
    %p75 = por %p73, %p74
    %p76 = scmp.ne.s32.totalorder %s68, %s71
    %p77 = scmp.eq.s32.totalorder %s11, 0
    %p78 = por %p76, %p77
    %p79 = scmp.ne.s32.totalorder %s68, %s71
    %p80 = scmp.eq.s32.totalorder %s16, 1
    %p81 = por %p79, %p80
    %p82 = scmp.ne.s32.totalorder %s71, %s72
    %p83 = scmp.eq.s32.totalorder %s16, 0
    %p84 = por %p82, %p83
    %p85 = scmp.ne.s32.totalorder %s71, %s72
    %p86 = scmp.eq.s32.totalorder %s17, 1
    %p87 = por %p85, %p86
    %p89 = scmp.ne.s32.totalorder %s72, %s88
    %p90 = scmp.eq.s32.totalorder %s17, 0
    %p91 = por %p89, %p90
    %s93 = sadd.s32 %s92, 1
    %p96 = scmp.eq.s32.totalorder %s11, 1
    %p97 = scmp.ne.s32.totalorder %s92, %s94
    %p98 = scmp.eq.s32.totalorder %s11, 0
    %p99 = por %p97, %p98
    %p100 = scmp.ne.s32.totalorder %s92, %s94
    %p101 = scmp.eq.s32.totalorder %s16, 1
    %p102 = por %p100, %p101
    %p103 = scmp.ne.s32.totalorder %s94, %s95
    %p104 = scmp.eq.s32.totalorder %s16, 0
    %p105 = por %p103, %p104
    %p106 = scmp.ne.s32.totalorder %s94, %s95
    %p107 = scmp.eq.s32.totalorder %s17, 1
    %p108 = por %p106, %p107
    %p110 = scmp.ne.s32.totalorder %s95, %s109
    %p111 = scmp.eq.s32.totalorder %s17, 0
    %p112 = por %p110, %p111
    %s114 = sadd.s32 %s113, 1
    %p117 = scmp.eq.s32.totalorder %s11, 1
    %p118 = scmp.ne.s32.totalorder %s113, %s115
    %p119 = scmp.eq.s32.totalorder %s11, 0
    %p120 = por %p118, %p119
    %p121 = scmp.ne.s32.totalorder %s113, %s115
    %p122 = scmp.eq.s32.totalorder %s16, 1
    %p123 = por %p121, %p122
    %p124 = scmp.ne.s32.totalorder %s115, %s116
    %p125 = scmp.eq.s32.totalorder %s16, 0
    %p126 = por %p124, %p125
    %p127 = scmp.ne.s32.totalorder %s115, %s116
    %p128 = scmp.eq.s32.totalorder %s17, 1
    %p129 = por %p127, %p128
    %p131 = scmp.ne.s32.totalorder %s116, %s130
    %p132 = scmp.eq.s32.totalorder %s17, 0
    %p133 = por %p131, %p132
    %s134 = ssub.s32 %s11, %s18
    %p135 = scmp.eq.s32.totalorder %s134, 0
    %s137 = sadd.s32 %s136, 1
    %s138 = scalar_select %p135, %s136, %s137
    %p141 = pneg %p135
    %p142 = scmp.eq.s32.totalorder %s11, 1
    %p143 = por %p141, %p142
    %p144 = scmp.ne.s32.totalorder %s136, %s139
    %p145 = scmp.eq.s32.totalorder %s11, 0
    %p146 = por %p144, %p145
    %p147 = scmp.ne.s32.totalorder %s136, %s139
    %p148 = scmp.eq.s32.totalorder %s16, 1
    %p149 = por %p147, %p148
    %p150 = scmp.ne.s32.totalorder %s139, %s140
    %p151 = scmp.eq.s32.totalorder %s16, 0
    %p152 = por %p150, %p151
    %p153 = scmp.ne.s32.totalorder %s139, %s140
    %p154 = scmp.eq.s32.totalorder %s17, 1
    %p155 = por %p153, %p154
    %p157 = scmp.ne.s32.totalorder %s140, %s156
    %p158 = scmp.eq.s32.totalorder %s17, 0
    %p159 = por %p157, %p158
    %p160 = scmp.le.s32.totalorder 1, %s11
    %p161 = scmp.lt.s32.totalorder %s11, 3
    %p162 = pnand %p160, %p161
    %p163 = pneg %p162
    // Predicated region
    $region9: #{posnet_forward.9} parent=5 // pred_check
      _
    $region10: #{posnet_forward.9} parent=5 // pred_check_branch
      %165 = sbr.rel (%p162) target = $region12
    $region11: #{posnet_forward.9} parent=5 // pred_region
      %s166 = ssub.s32 %s11, 1
      // Predicated region
      $region13: #{posnet_forward.9} parent=11 // pred_check
        %p167 = pneg %p58
      $region14: #{posnet_forward.9} parent=11 // pred_check_branch
        %169 = sbr.rel (%p167) target = $region16
      $region15: #{posnet_forward.9} parent=11 // pred_region
        _
      $region16: #{posnet_forward.9} parent=11 // pred_fallthru
        _
      // Predicated region
      $region17: #{posnet_forward.9} parent=11 // pred_check
        %p170 = pneg %p105
      $region18: #{posnet_forward.9} parent=11 // pred_check_branch
        %172 = sbr.rel (%p170) target = $region20
      $region19: #{posnet_forward.9} parent=11 // pred_region
        _
      $region20: #{posnet_forward.9} parent=11 // pred_fallthru
        _
      // Predicated region
      $region21: #{posnet_forward.9} parent=11 // pred_check
        %p173 = pneg %p126
      $region22: #{posnet_forward.9} parent=11 // pred_check_branch
        %175 = sbr.rel (%p173) target = $region24
      $region23: #{posnet_forward.9} parent=11 // pred_region
        _
      $region24: #{posnet_forward.9} parent=11 // pred_fallthru
        _
    $region12: #{posnet_forward.9} parent=5 // pred_fallthru
      _
    %p176 = scmp.lt.s32.totalorder %s11, 2
    // Predicated region
    $region25: #{posnet_forward.9} parent=5 // pred_check
      %p177 = pneg %p176
    $region26: #{posnet_forward.9} parent=5 // pred_check_branch
      %179 = sbr.rel (%p177) target = $region28
    $region27: #{posnet_forward.9} parent=5 // pred_region
      // Predicated region
      $region29: #{posnet_forward.9} parent=27 // pred_check
        %p180 = pneg %p31
      $region30: #{posnet_forward.9} parent=27 // pred_check_branch
        %182 = sbr.rel (%p180) target = $region32
      $region31: #{posnet_forward.9} parent=27 // pred_region
        %p183 = scmp.lt.s32.totalorder %s11, 1
        %s184 = scalar_select %p183, %s11, 1
        %s185 = smul.addr %s184, 4
        %s186 = smul.addr %s185, 8
        %s187 = scalar_lea.vmem %s0, %s186
      $region32: #{posnet_forward.9} parent=27 // pred_fallthru
        _
      // Predicated region
      $region33: #{posnet_forward.9} parent=27 // pred_check
        %p188 = pneg %p78
      $region34: #{posnet_forward.9} parent=27 // pred_check_branch
        %190 = sbr.rel (%p188) target = $region36
      $region35: #{posnet_forward.9} parent=27 // pred_region
        %p191 = scmp.lt.s32.totalorder %s11, 1
        %s192 = scalar_select %p191, %s11, 1
        %s193 = smul.addr %s192, 2
        %s194 = smul.addr %s193, 8
        %s195 = scalar_lea.vmem %s2, %s194
      $region36: #{posnet_forward.9} parent=27 // pred_fallthru
        _
    $region28: #{posnet_forward.9} parent=5 // pred_fallthru
      _
    %p196 = scmp.le.s32.totalorder 1, %s11
    %p197 = scmp.lt.s32.totalorder %s11, 3
    %p198 = pnand %p196, %p197
    %p199 = pneg %p198
    // Predicated region
    $region37: #{posnet_forward.9} parent=5 // pred_check
      _
    $region38: #{posnet_forward.9} parent=5 // pred_check_branch
      %201 = sbr.rel (%p198) target = $region40
    $region39: #{posnet_forward.9} parent=5 // pred_region
      %s202 = ssub.s32 %s11, 1
      %p203 = scmp.lt.s32.totalorder %s16, 1
      %s204 = scalar_select %p203, %s16, 1
      %s205 = smul.addr %s204, 4
      %s206 = smul.addr %s205, 8
      %s207 = scalar_lea.vmem %s0, %s206
      %p208 = pneg %p37
      %p209 = pneg %p34
      %p210 = pneg %p58
      %p211 = pneg %p55
      %p212 = scmp.lt.s32.totalorder %s16, 1
      %s213 = scalar_select %p212, %s16, 1
      %s214 = smul.addr %s213, 2
      %s215 = smul.addr %s214, 8
      %s216 = scalar_lea.vmem %s2, %s215
      %p217 = pneg %p84
      %p218 = pneg %p81
      %p219 = pneg %p105
      %p220 = pneg %p102
      %p221 = pneg %p126
      %p222 = pneg %p123
      %p223 = pneg %p152
      %p224 = pneg %p149
      %p225 = scmp.lt.s32.totalorder %s16, 1
      %s226 = scalar_select %p225, %s16, 1
      %s227 = smul.addr %s226, 2
      %s228 = smul.addr %s227, 8
      %s229 = scalar_lea.vmem %s5, %s228
      %p230 = scmp.lt.s32.totalorder %s16, 1
      %s231 = scalar_select %p230, %s16, 1
      %s232 = smul.addr %s231, 4
      %s233 = smul.addr %s232, 8
      %s234 = scalar_lea.vmem %s0, %s233
      %p235 = scmp.lt.s32.totalorder %s16, 1
      %s236 = scalar_select %p235, %s16, 1
      %s237 = smul.addr %s236, 2
      %s238 = smul.addr %s237, 8
      %s239 = scalar_lea.vmem %s2, %s238
      %p240 = scmp.lt.s32.totalorder %s16, 1
      %s241 = scalar_select %p240, %s16, 1
      %s242 = smul.addr %s241, 2
      %s243 = smul.addr %s242, 8
      %s244 = scalar_lea.vmem %s5, %s243
      %v246 = vld [vmem:[%s234] sm:$0xff]
      %v247 = vld [vmem:[%s234 + $0x8] sm:$0xff]
      %v248 = vld [vmem:[%s234 + $0x10] sm:$0xff]
      %v249 = vld [vmem:[%s234 + $0x18] sm:$0xff]
      %254 = vrot.lane.b32.xlu0 %v246, 127
      %v255 = vpop.permute.xlu0 %254
      %256 = vrot.lane.b32.xlu0 %v247, 127
      %v257 = vpop.permute.xlu0 %256
      %258 = vrot.lane.b32.xlu0 %v248, 127
      %v259 = vpop.permute.xlu0 %258
      %260 = vrot.lane.b32.xlu0 %v249, 127
      %v261 = vpop.permute.xlu0 %260
      %266 = vrot.lane.b32.xlu0 %v246, 126
      %v267 = vpop.permute.xlu0 %266
      %268 = vrot.lane.b32.xlu0 %v247, 126
      %v269 = vpop.permute.xlu0 %268
      %270 = vrot.lane.b32.xlu0 %v248, 126
      %v271 = vpop.permute.xlu0 %270
      %272 = vrot.lane.b32.xlu0 %v249, 126
      %v273 = vpop.permute.xlu0 %272
      %278 = vrot.lane.b32.xlu0 %v246, 118
      %v279 = vpop.permute.xlu0 %278
      %280 = vrot.lane.b32.xlu0 %v247, 118
      %v281 = vpop.permute.xlu0 %280
      %282 = vrot.lane.b32.xlu0 %v248, 118
      %v283 = vpop.permute.xlu0 %282
      %284 = vrot.lane.b32.xlu0 %v249, 118
      %v285 = vpop.permute.xlu0 %284
      %290 = vrot.lane.b32.xlu0 %v246, 117
      %v291 = vpop.permute.xlu0 %290
      %292 = vrot.lane.b32.xlu0 %v247, 117
      %v293 = vpop.permute.xlu0 %292
      %294 = vrot.lane.b32.xlu0 %v248, 117
      %v295 = vpop.permute.xlu0 %294
      %296 = vrot.lane.b32.xlu0 %v249, 117
      %v297 = vpop.permute.xlu0 %296
      %302 = vrot.lane.b32.xlu0 %v246, 116
      %v303 = vpop.permute.xlu0 %302
      %304 = vrot.lane.b32.xlu0 %v247, 116
      %v305 = vpop.permute.xlu0 %304
      %306 = vrot.lane.b32.xlu0 %v248, 116
      %v307 = vpop.permute.xlu0 %306
      %308 = vrot.lane.b32.xlu0 %v249, 116
      %v309 = vpop.permute.xlu0 %308
      %314 = vrot.lane.b32.xlu0 %v246, 108
      %v315 = vpop.permute.xlu0 %314
      %316 = vrot.lane.b32.xlu0 %v247, 108
      %v317 = vpop.permute.xlu0 %316
      %318 = vrot.lane.b32.xlu0 %v248, 108
      %v319 = vpop.permute.xlu0 %318
      %320 = vrot.lane.b32.xlu0 %v249, 108
      %v321 = vpop.permute.xlu0 %320
      %326 = vrot.lane.b32.xlu0 %v246, 107
      %v327 = vpop.permute.xlu0 %326
      %328 = vrot.lane.b32.xlu0 %v247, 107
      %v329 = vpop.permute.xlu0 %328
      %330 = vrot.lane.b32.xlu0 %v248, 107
      %v331 = vpop.permute.xlu0 %330
      %332 = vrot.lane.b32.xlu0 %v249, 107
      %v333 = vpop.permute.xlu0 %332
      %338 = vrot.lane.b32.xlu0 %v246, 106
      %v339 = vpop.permute.xlu0 %338
      %340 = vrot.lane.b32.xlu0 %v247, 106
      %v341 = vpop.permute.xlu0 %340
      %342 = vrot.lane.b32.xlu0 %v248, 106
      %v343 = vpop.permute.xlu0 %342
      %344 = vrot.lane.b32.xlu0 %v249, 106
      %v345 = vpop.permute.xlu0 %344
      %v350 = vld [vmem:[%s1] sm:$0xff]
      %v351 = vld [vmem:[%s1 + $0x8] sm:$0xff]
      %v352 = vld [vmem:[%s1 + $0x10] sm:$0xff]
      %v353 = vld [vmem:[%s1 + $0x18] sm:$0xff]
      %v354 = vld [vmem:[%s1 + $0x20] sm:$0xff]
      %v355 = vld [vmem:[%s1 + $0x28] sm:$0xff]
      %v356 = vpack.c.bf16 %v353, %v350
      %v357 = vpack.c.bf16 %v354, %v351
      %v358 = vpack.c.bf16 %v355, %v352
      %v359 = vpack.c.bf16 %v247, %v246
      %v360 = vpack.c.bf16 %v249, %v248
      %v361 = vpack.c.bf16 %v257, %v255
      %v362 = vpack.c.bf16 %v261, %v259
      %v363 = vpack.c.bf16 %v269, %v267
      %v364 = vpack.c.bf16 %v273, %v271
      %v365 = vpack.c.bf16 %v281, %v279
      %v366 = vpack.c.bf16 %v285, %v283
      %v367 = vpack.c.bf16 %v293, %v291
      %v368 = vpack.c.bf16 %v297, %v295
      %v369 = vpack.c.bf16 %v305, %v303
      %v370 = vpack.c.bf16 %v309, %v307
      %v371 = vpack.c.bf16 %v317, %v315
      %v372 = vpack.c.bf16 %v321, %v319
      %v373 = vpack.c.bf16 %v329, %v327
      %v374 = vpack.c.bf16 %v333, %v331
      %v375 = vpack.c.bf16 %v341, %v339
      %v376 = vpack.c.bf16 %v345, %v343
      %v377 = vld [vmem:[%s239] sm:$0xff]
      %v378 = vld [vmem:[%s239 + $0x8] sm:$0xff]
      %381 = vrot.lane.b32.xlu0 %v377, 127
      %v382 = vpop.permute.xlu0 %381
      %383 = vrot.lane.b32.xlu0 %v378, 127
      %v384 = vpop.permute.xlu0 %383
      %387 = vrot.lane.b32.xlu0 %v377, 126
      %v388 = vpop.permute.xlu0 %387
      %389 = vrot.lane.b32.xlu0 %v378, 126
      %v390 = vpop.permute.xlu0 %389
      %393 = vrot.lane.b32.xlu0 %v377, 118
      %v394 = vpop.permute.xlu0 %393
      %395 = vrot.lane.b32.xlu0 %v378, 118
      %v396 = vpop.permute.xlu0 %395
      %399 = vrot.lane.b32.xlu0 %v377, 117
      %v400 = vpop.permute.xlu0 %399
      %401 = vrot.lane.b32.xlu0 %v378, 117
      %v402 = vpop.permute.xlu0 %401
      %405 = vrot.lane.b32.xlu0 %v377, 116
      %v406 = vpop.permute.xlu0 %405
      %407 = vrot.lane.b32.xlu0 %v378, 116
      %v408 = vpop.permute.xlu0 %407
      %411 = vrot.lane.b32.xlu0 %v377, 108
      %v412 = vpop.permute.xlu0 %411
      %413 = vrot.lane.b32.xlu0 %v378, 108
      %v414 = vpop.permute.xlu0 %413
      %417 = vrot.lane.b32.xlu0 %v377, 107
      %v418 = vpop.permute.xlu0 %417
      %419 = vrot.lane.b32.xlu0 %v378, 107
      %v420 = vpop.permute.xlu0 %419
      %423 = vrot.lane.b32.xlu0 %v377, 106
      %v424 = vpop.permute.xlu0 %423
      %425 = vrot.lane.b32.xlu0 %v378, 106
      %v426 = vpop.permute.xlu0 %425
      %v429 = vld [vmem:[%s3] sm:$0xff]
      %v430 = vld [vmem:[%s3 + $0x8] sm:$0xff]
      %v431 = vld [vmem:[%s3 + $0x10] sm:$0xff]
      %v432 = vld [vmem:[%s3 + $0x18] sm:$0xff]
      %v433 = vpack.c.bf16 %v431, %v429
      %v434 = vpack.c.bf16 %v432, %v430
      %v435 = vpack.c.bf16 %v378, %v377
      %v436 = vpack.c.bf16 %v384, %v382
      %v437 = vpack.c.bf16 %v390, %v388
      %v438 = vpack.c.bf16 %v396, %v394
      %v439 = vpack.c.bf16 %v402, %v400
      %v440 = vpack.c.bf16 %v408, %v406
      %v441 = vpack.c.bf16 %v414, %v412
      %v442 = vpack.c.bf16 %v420, %v418
      %v443 = vpack.c.bf16 %v426, %v424
      %vm444 = vcmask 130048
      %v446 = vsel %vm444, %v434, 0
      %448 = vmatpush.bf16.msra.mxu0 %v442
      %449 = vmatpush.bf16.msra.mxu0 %v441
      %450 = vmatpush.bf16.msra.mxu0 %v440
      %451 = vmatpush.bf16.msra.mxu0 %v439
      %452 = vmatpush.bf16.msra.mxu0 %v438
      %453 = vmatpush.bf16.msra.mxu0 %v437
      %454 = vmatpush.bf16.msra.mxu0 %v436
      %455 = vmatpush.bf16.msra.mxu0 %v435
      %456 = vmatmul.bf16.gmra.mxu0 %v433
      %v457 = vpop.f32.mrf.mxu0
      %v458 = vadd.f32 0.0, %v457
      %v459 = vpop.f32.mrf.mxu0
      %v460 = vadd.f32 0.0, %v459
      %461 = vdwg.mxu0
      %462 = vmatpush.bf16.msra.mxu0 0
      %463 = vmatpush.bf16.msra.mxu0 0
      %464 = vmatpush.bf16.msra.mxu0 0
      %465 = vmatpush.bf16.msra.mxu0 0
      %466 = vmatpush.bf16.msra.mxu0 0
      %467 = vmatpush.bf16.msra.mxu0 0
      %468 = vmatpush.bf16.msra.mxu0 0
      %469 = vmatpush.bf16.msra.mxu0 %v443
      %470 = vmatmul.bf16.gmra.mxu0 %v446
      %v471 = vpop.f32.mrf.mxu0
      %v472 = vadd.f32 %v458, %v471
      %v473 = vpop.f32.mrf.mxu0
      %v474 = vadd.f32 %v460, %v473
      %475 = vdwg.mxu0
      %vm476 = vcmask 261120
      %v478 = vsel %vm476, %v358, 0
      %480 = vmatpush.bf16.msra.mxu0 %v366
      %481 = vmatpush.bf16.msra.mxu0 %v365
      %482 = vmatpush.bf16.msra.mxu0 %v364
      %483 = vmatpush.bf16.msra.mxu0 %v363
      %484 = vmatpush.bf16.msra.mxu0 %v362
      %485 = vmatpush.bf16.msra.mxu0 %v361
      %486 = vmatpush.bf16.msra.mxu0 %v360
      %487 = vmatpush.bf16.msra.mxu0 %v359
      %488 = vmatmul.bf16.gmra.mxu0 %v356
      %v489 = vpop.f32.mrf.mxu0
      %v490 = vadd.f32 %v472, %v489
      %v491 = vpop.f32.mrf.mxu0
      %v492 = vadd.f32 %v474, %v491
      %493 = vdwg.mxu0
      %494 = vmatpush.bf16.msra.mxu0 %v374
      %495 = vmatpush.bf16.msra.mxu0 %v373
      %496 = vmatpush.bf16.msra.mxu0 %v372
      %497 = vmatpush.bf16.msra.mxu0 %v371
      %498 = vmatpush.bf16.msra.mxu0 %v370
      %499 = vmatpush.bf16.msra.mxu0 %v369
      %500 = vmatpush.bf16.msra.mxu0 %v368
      %501 = vmatpush.bf16.msra.mxu0 %v367
      %502 = vmatmul.bf16.gmra.mxu0 %v357
      %v503 = vpop.f32.mrf.mxu0
      %v504 = vadd.f32 %v490, %v503
      %v505 = vpop.f32.mrf.mxu0
      %v506 = vadd.f32 %v492, %v505
      %507 = vdwg.mxu0
      %508 = vmatpush.bf16.msra.mxu0 0
      %509 = vmatpush.bf16.msra.mxu0 0
      %510 = vmatpush.bf16.msra.mxu0 0
      %511 = vmatpush.bf16.msra.mxu0 0
      %512 = vmatpush.bf16.msra.mxu0 0
      %513 = vmatpush.bf16.msra.mxu0 0
      %514 = vmatpush.bf16.msra.mxu0 %v376
      %515 = vmatpush.bf16.msra.mxu0 %v375
      %516 = vmatmul.bf16.gmra.mxu0 %v478
      %v517 = vpop.f32.mrf.mxu0
      %v518 = vadd.f32 %v504, %v517
      %v519 = vpop.f32.mrf.mxu0
      %v520 = vadd.f32 %v506, %v519
      %521 = vdwg.mxu0
      %v522 = vld [vmem:[%s4] sm:$0xff]
      %v523 = vld [vmem:[%s4 + $0x8] sm:$0xff]
      %525 = vset.pattern.permute.xlu0 0
      %526 = vperm.xlu0 %525, %v522
      %v527 = vpop.permute.xlu0 %526
      %530 = vset.pattern.permute.xlu0 0
      %531 = vperm.xlu0 %530, %v523
      %v532 = vpop.permute.xlu0 %531
      %v534 = vadd.f32 %v518, %v527
      %v535 = vadd.f32 %v520, %v532
      %v536 = vmax.f32 %v534, 0.0
      %v537 = vmax.f32 %v535, 0.0
      %vm538 = vcmask 654336
      %539 = vst.msk [vmem:[%s244] sm:$0xff] %vm538, %v536
      %540 = vst.msk [vmem:[%s244 + $0x8] sm:$0xff] %vm538, %v537
      %p541 = scmp.lt.s32.totalorder %s16, 1
      %s542 = scalar_select %p541, %s16, 1
      %s543 = smul.addr %s542, 2
      %s544 = smul.addr %s543, 8
      %s545 = scalar_lea.vmem %s5, %s544
      // Predicated region
      $region41: #{posnet_forward.9} parent=39 // pred_check
        %p546 = pneg %p149
      $region42: #{posnet_forward.9} parent=39 // pred_check_branch
        %548 = sbr.rel (%p546) target = $region44
      $region43: #{posnet_forward.9} parent=39 // pred_region
        _
      $region44: #{posnet_forward.9} parent=39 // pred_fallthru
        _
    $region40: #{posnet_forward.9} parent=5 // pred_fallthru
      _
    %p549 = scmp.le.s32.totalorder 2, %s11
    // Predicated region
    $region45: #{posnet_forward.9} parent=5 // pred_check
      %p550 = pneg %p549
    $region46: #{posnet_forward.9} parent=5 // pred_check_branch
      %552 = sbr.rel (%p550) target = $region48
    $region47: #{posnet_forward.9} parent=5 // pred_region
      %s553 = ssub.s32 %s11, 2
      // Predicated region
      $region49: #{posnet_forward.9} parent=47 // pred_check
        %p554 = pneg %p155
      $region50: #{posnet_forward.9} parent=47 // pred_check_branch
        %556 = sbr.rel (%p554) target = $region52
      $region51: #{posnet_forward.9} parent=47 // pred_region
        %p557 = scmp.lt.s32.totalorder %s17, 1
        %s558 = scalar_select %p557, %s17, 1
        %s559 = smul.addr %s558, 2
        %s560 = smul.addr %s559, 8
        %s561 = scalar_lea.vmem %s5, %s560
      $region52: #{posnet_forward.9} parent=47 // pred_fallthru
        _
    $region48: #{posnet_forward.9} parent=5 // pred_fallthru
      _
  $region6: #{posnet_forward.9} parent=0 // loop_footer
    %s15 = sadd.s32 1, %s11
  $region7: #{posnet_forward.9} parent=0 // loop_footer_branch
    %10 = sbr.rel target = $region3
  $region8: #{posnet_forward.9} parent=0 // loop_exit
    _

// kernel: posnet_forward.11
$region0: #{posnet_forward.11}
  #allocation0 [shape = 'u32[]', space=smem, size = 0x4, offset = 0x4, fixed_abs, tag = 'smem constant byte address 0x4 - core index']
  #allocation1 [shape = 'u32[72,128]{1,0:T(1,128)}', space=vmem, size = 0x9000, scoped, tag = 'internal scratch']
  %s0 = inlined_call_operand.vmem [shape: f32[2,8,256], index: 0, kind: input, shape index: {}]
  %s1 = inlined_call_operand.vmem [shape: f32[3,8], index: 1, kind: input, shape index: {}]
  %s2 = inlined_call_operand.vmem [shape: f32[3,1], index: 2, kind: input, shape index: {}]
  %s3 = inlined_call_operand.vmem [shape: f32[2,3,256], index: 3, kind: output, shape index: {}]
  %s4 = sld [smem:[#allocation0]]
  $region45: #{posnet_forward.11} parent=0
    _
  %s6 = ssub.s32 1, %s4
  %s7 = scalar_select 0, %s6, %s4
  loop: start=0, step=1, limit=4
  $region2: #{posnet_forward.11} parent=0 // loop_pre_header
    _
  $region3: #{posnet_forward.11} parent=0 // loop_header
    %s9 = sphi 0, %s13
    %p10 = scmp.ge.s32.totalorder %s9, 4
    %s19 = sphi 0, %s21
    %s22 = sphi 0, %s19
    %s23 = sphi 0, %s22
    %s39 = sphi 0, %s23
    %s43 = sphi 0, %s43
    %s45 = sphi 0, %s43
    %s46 = sphi 0, %s45
    %s60 = sphi 0, %s46
    %s64 = sphi 0, %s64
    %s66 = sphi 0, %s64
    %s67 = sphi 0, %s66
    %s81 = sphi 0, %s67
    %s87 = sphi 0, %s89
    %s90 = sphi 0, %s87
    %s91 = sphi 0, %s90
    %s107 = sphi 0, %s91
  $region4: #{posnet_forward.11} parent=0 // loop_header_branch
    %12 = sbr.rel (%p10) target = $region8
  $region5: #{posnet_forward.11} parent=0 // loop_body
    %s14 = ssub.s32 %s9, 1
    %s15 = ssub.s32 %s9, 2
    %s16 = sadd.s32 %s9, 1
    %s17 = ssub.s32 %s9, %s16
    %p18 = scmp.eq.s32.totalorder %s17, 0
    %s20 = sadd.s32 %s19, 1
    %s21 = scalar_select %p18, %s19, %s20
    %p24 = pneg %p18
    %p25 = scmp.eq.s32.totalorder %s9, 1
    %p26 = por %p24, %p25
    %p27 = scmp.ne.s32.totalorder %s19, %s22
    %p28 = scmp.eq.s32.totalorder %s9, 0
    %p29 = por %p27, %p28
    %p30 = scmp.ne.s32.totalorder %s19, %s22
    %p31 = scmp.eq.s32.totalorder %s14, 1
    %p32 = por %p30, %p31
    %p33 = scmp.ne.s32.totalorder %s22, %s23
    %p34 = scmp.eq.s32.totalorder %s14, 0
    %p35 = por %p33, %p34
    %p36 = scmp.ne.s32.totalorder %s22, %s23
    %p37 = scmp.eq.s32.totalorder %s15, 1
    %p38 = por %p36, %p37
    %p40 = scmp.ne.s32.totalorder %s23, %s39
    %p41 = scmp.eq.s32.totalorder %s15, 0
    %p42 = por %p40, %p41
    %s44 = sadd.s32 %s43, 1
    %p47 = scmp.eq.s32.totalorder %s9, 1
    %p48 = scmp.ne.s32.totalorder %s43, %s45
    %p49 = scmp.eq.s32.totalorder %s9, 0
    %p50 = por %p48, %p49
    %p51 = scmp.ne.s32.totalorder %s43, %s45
    %p52 = scmp.eq.s32.totalorder %s14, 1
    %p53 = por %p51, %p52
    %p54 = scmp.ne.s32.totalorder %s45, %s46
    %p55 = scmp.eq.s32.totalorder %s14, 0
    %p56 = por %p54, %p55
    %p57 = scmp.ne.s32.totalorder %s45, %s46
    %p58 = scmp.eq.s32.totalorder %s15, 1
    %p59 = por %p57, %p58
    %p61 = scmp.ne.s32.totalorder %s46, %s60
    %p62 = scmp.eq.s32.totalorder %s15, 0
    %p63 = por %p61, %p62
    %s65 = sadd.s32 %s64, 1
    %p68 = scmp.eq.s32.totalorder %s9, 1
    %p69 = scmp.ne.s32.totalorder %s64, %s66
    %p70 = scmp.eq.s32.totalorder %s9, 0
    %p71 = por %p69, %p70
    %p72 = scmp.ne.s32.totalorder %s64, %s66
    %p73 = scmp.eq.s32.totalorder %s14, 1
    %p74 = por %p72, %p73
    %p75 = scmp.ne.s32.totalorder %s66, %s67
    %p76 = scmp.eq.s32.totalorder %s14, 0
    %p77 = por %p75, %p76
    %p78 = scmp.ne.s32.totalorder %s66, %s67
    %p79 = scmp.eq.s32.totalorder %s15, 1
    %p80 = por %p78, %p79
    %p82 = scmp.ne.s32.totalorder %s67, %s81
    %p83 = scmp.eq.s32.totalorder %s15, 0
    %p84 = por %p82, %p83
    %s85 = ssub.s32 %s9, %s16
    %p86 = scmp.eq.s32.totalorder %s85, 0
    %s88 = sadd.s32 %s87, 1
    %s89 = scalar_select %p86, %s87, %s88
    %p92 = pneg %p86
    %p93 = scmp.eq.s32.totalorder %s9, 1
    %p94 = por %p92, %p93
    %p95 = scmp.ne.s32.totalorder %s87, %s90
    %p96 = scmp.eq.s32.totalorder %s9, 0
    %p97 = por %p95, %p96
    %p98 = scmp.ne.s32.totalorder %s87, %s90
    %p99 = scmp.eq.s32.totalorder %s14, 1
    %p100 = por %p98, %p99
    %p101 = scmp.ne.s32.totalorder %s90, %s91
    %p102 = scmp.eq.s32.totalorder %s14, 0
    %p103 = por %p101, %p102
    %p104 = scmp.ne.s32.totalorder %s90, %s91
    %p105 = scmp.eq.s32.totalorder %s15, 1
    %p106 = por %p104, %p105
    %p108 = scmp.ne.s32.totalorder %s91, %s107
    %p109 = scmp.eq.s32.totalorder %s15, 0
    %p110 = por %p108, %p109
    %p111 = scmp.le.s32.totalorder 1, %s9
    %p112 = scmp.lt.s32.totalorder %s9, 3
    %p113 = pnand %p111, %p112
    %p114 = pneg %p113
    // Predicated region
    $region9: #{posnet_forward.11} parent=5 // pred_check
      _
    $region10: #{posnet_forward.11} parent=5 // pred_check_branch
      %116 = sbr.rel (%p113) target = $region12
    $region11: #{posnet_forward.11} parent=5 // pred_region
      %s117 = ssub.s32 %s9, 1
      // Predicated region
      $region13: #{posnet_forward.11} parent=11 // pred_check
        %p118 = pneg %p56
      $region14: #{posnet_forward.11} parent=11 // pred_check_branch
        %120 = sbr.rel (%p118) target = $region16
      $region15: #{posnet_forward.11} parent=11 // pred_region
        _
      $region16: #{posnet_forward.11} parent=11 // pred_fallthru
        _
      // Predicated region
      $region17: #{posnet_forward.11} parent=11 // pred_check
        %p121 = pneg %p77
      $region18: #{posnet_forward.11} parent=11 // pred_check_branch
        %123 = sbr.rel (%p121) target = $region20
      $region19: #{posnet_forward.11} parent=11 // pred_region
        _
      $region20: #{posnet_forward.11} parent=11 // pred_fallthru
        _
    $region12: #{posnet_forward.11} parent=5 // pred_fallthru
      _
    %p124 = scmp.lt.s32.totalorder %s9, 2
    // Predicated region
    $region21: #{posnet_forward.11} parent=5 // pred_check
      %p125 = pneg %p124
    $region22: #{posnet_forward.11} parent=5 // pred_check_branch
      %127 = sbr.rel (%p125) target = $region24
    $region23: #{posnet_forward.11} parent=5 // pred_region
      // Predicated region
      $region25: #{posnet_forward.11} parent=23 // pred_check
        %p128 = pneg %p29
      $region26: #{posnet_forward.11} parent=23 // pred_check_branch
        %130 = sbr.rel (%p128) target = $region28
      $region27: #{posnet_forward.11} parent=23 // pred_region
        %p131 = scmp.lt.s32.totalorder %s9, 1
        %s132 = scalar_select %p131, %s9, 1
        %s133 = smul.addr %s132, 2
        %s134 = smul.addr %s133, 8
        %s135 = scalar_lea.vmem %s0, %s134
      $region28: #{posnet_forward.11} parent=23 // pred_fallthru
        _
    $region24: #{posnet_forward.11} parent=5 // pred_fallthru
      _
    %p136 = scmp.le.s32.totalorder 1, %s9
    %p137 = scmp.lt.s32.totalorder %s9, 3
    %p138 = pnand %p136, %p137
    %p139 = pneg %p138
    // Predicated region
    $region29: #{posnet_forward.11} parent=5 // pred_check
      _
    $region30: #{posnet_forward.11} parent=5 // pred_check_branch
      %141 = sbr.rel (%p138) target = $region32
    $region31: #{posnet_forward.11} parent=5 // pred_region
      %s142 = ssub.s32 %s9, 1
      %p143 = scmp.lt.s32.totalorder %s14, 1
      %s144 = scalar_select %p143, %s14, 1
      %s145 = smul.addr %s144, 2
      %s146 = smul.addr %s145, 8
      %s147 = scalar_lea.vmem %s0, %s146
      %p148 = pneg %p35
      %p149 = pneg %p32
      %p150 = pneg %p56
      %p151 = pneg %p53
      %p152 = pneg %p77
      %p153 = pneg %p74
      %p154 = pneg %p103
      %p155 = pneg %p100
      %p156 = scmp.lt.s32.totalorder %s14, 1
      %s157 = scalar_select %p156, %s14, 1
      %s158 = smul.addr %s157, 2
      %s159 = smul.addr %s158, 4
      %s160 = scalar_lea.vmem %s3, %s159
      %p161 = scmp.lt.s32.totalorder %s14, 1
      %s162 = scalar_select %p161, %s14, 1
      %s163 = smul.addr %s162, 2
      %s164 = smul.addr %s163, 8
      %s165 = scalar_lea.vmem %s0, %s164
      %p166 = scmp.lt.s32.totalorder %s14, 1
      %s167 = scalar_select %p166, %s14, 1
      %s168 = smul.addr %s167, 2
      %s169 = smul.addr %s168, 4
      %s170 = scalar_lea.vmem %s3, %s169
      %v172 = vld [vmem:[%s165] sm:$0xff]
      %v173 = vld [vmem:[%s165 + $0x8] sm:$0xff]
      %v174 = vld [vmem:[%s1] sm:$0x7]
      %v175 = vpack.c.bf16 %v174, %v174
      %v176 = vpack.c.bf16 %v172, %v172
      %v177 = vpack.c.bf16 %v173, %v173
      %v178 = vld [vmem:[%s2] sm:$0x7]
      %180 = vset.pattern.permute.xlu0 0
      %181 = vperm.xlu0 %180, %v178
      %v182 = vpop.permute.xlu0 %181
      %vm184 = vcmask 64512
      %v186 = vsel %vm184, %v175, 0
      %vm188 = vcmask 1043456
      %v190 = vsel %vm188, %v176, 0
      %v193 = vsel %vm188, %v177, 0
      %195 = vmatpush.bf16.msra.mxu0 0
      %196 = vmatpush.bf16.msra.mxu0 0
      %197 = vmatpush.bf16.msra.mxu0 0
      %198 = vmatpush.bf16.msra.mxu0 0
      %199 = vmatpush.bf16.msra.mxu0 0
      %200 = vmatpush.bf16.msra.mxu0 0
      %201 = vmatpush.bf16.msra.mxu0 0
      %202 = vmatpush.bf16.msra.mxu0 %v190
      %203 = vmatmul.bf16.gmra.mxu0 %v186
      %v204 = vpop.f32.mrf.mxu0
      %v205 = vadd.f32 %v182, %v204
      %v206 = vpop.f32.mrf.mxu0
      %207 = vdwg.mxu0
      %208 = vmatpush.bf16.msra.mxu0 0
      %209 = vmatpush.bf16.msra.mxu0 0
      %210 = vmatpush.bf16.msra.mxu0 0
      %211 = vmatpush.bf16.msra.mxu0 0
      %212 = vmatpush.bf16.msra.mxu0 0
      %213 = vmatpush.bf16.msra.mxu0 0
      %214 = vmatpush.bf16.msra.mxu0 0
      %215 = vmatpush.bf16.msra.mxu0 %v193
      %216 = vmatmul.bf16.gmra.mxu0 %v186
      %v217 = vpop.f32.mrf.mxu0
      %v218 = vadd.f32 %v182, %v217
      %v219 = vpop.f32.mrf.mxu0
      %220 = vdwg.mxu0
      %v223 = vrot.slane %v218, 4
      %v224 = vsel %vm188, %v205, %v223
      %226 = vst [vmem:[%s170] sm:$0x77] %v224
      %p227 = scmp.lt.s32.totalorder %s14, 1
      %s228 = scalar_select %p227, %s14, 1
      %s229 = smul.addr %s228, 2
      %s230 = smul.addr %s229, 4
      %s231 = scalar_lea.vmem %s3, %s230
      // Predicated region
      $region33: #{posnet_forward.11} parent=31 // pred_check
        %p232 = pneg %p100
      $region34: #{posnet_forward.11} parent=31 // pred_check_branch
        %234 = sbr.rel (%p232) target = $region36
      $region35: #{posnet_forward.11} parent=31 // pred_region
        _
      $region36: #{posnet_forward.11} parent=31 // pred_fallthru
        _
    $region32: #{posnet_forward.11} parent=5 // pred_fallthru
      _
    %p235 = scmp.le.s32.totalorder 2, %s9
    // Predicated region
    $region37: #{posnet_forward.11} parent=5 // pred_check
      %p236 = pneg %p235
    $region38: #{posnet_forward.11} parent=5 // pred_check_branch
      %238 = sbr.rel (%p236) target = $region40
    $region39: #{posnet_forward.11} parent=5 // pred_region
      %s239 = ssub.s32 %s9, 2
      // Predicated region
      $region41: #{posnet_forward.11} parent=39 // pred_check
        %p240 = pneg %p106
      $region42: #{posnet_forward.11} parent=39 // pred_check_branch
        %242 = sbr.rel (%p240) target = $region44
      $region43: #{posnet_forward.11} parent=39 // pred_region
        %p243 = scmp.lt.s32.totalorder %s15, 1
        %s244 = scalar_select %p243, %s15, 1
        %s245 = smul.addr %s244, 2
        %s246 = smul.addr %s245, 4
        %s247 = scalar_lea.vmem %s3, %s246
      $region44: #{posnet_forward.11} parent=39 // pred_fallthru
        _
    $region40: #{posnet_forward.11} parent=5 // pred_fallthru
      _
  $region6: #{posnet_forward.11} parent=0 // loop_footer
    %s13 = sadd.s32 1, %s9
  $region7: #{posnet_forward.11} parent=0 // loop_footer_branch
    %8 = sbr.rel target = $region3
  $region8: #{posnet_forward.11} parent=0 // loop_exit
    _

// kernel: posnet_forward.10
$region0: #{posnet_forward.10}
  #allocation0 [shape = 'u32[]', space=smem, size = 0x4, offset = 0x4, fixed_abs, tag = 'smem constant byte address 0x4 - core index']
  #allocation1 [shape = 'u32[72,128]{1,0:T(1,128)}', space=vmem, size = 0x9000, scoped, tag = 'internal scratch']
  %s0 = inlined_call_operand.vmem [shape: f32[2,16,342], index: 0, kind: input, shape index: {}]
  %s1 = inlined_call_operand.vmem [shape: f32[8,144], index: 1, kind: input, shape index: {}]
  %s2 = inlined_call_operand.vmem [shape: f32[2,8,342], index: 2, kind: input, shape index: {}]
  %s3 = inlined_call_operand.vmem [shape: f32[8,72], index: 3, kind: input, shape index: {}]
  %s4 = inlined_call_operand.vmem [shape: f32[8,1], index: 4, kind: input, shape index: {}]
  %s5 = inlined_call_operand.vmem [shape: f32[2,8,288], index: 5, kind: output, shape index: {}]
  %s6 = sld [smem:[#allocation0]]
  $region53: #{posnet_forward.10} parent=0
    _
  %s8 = ssub.s32 1, %s6
  %s9 = scalar_select 0, %s8, %s6
  loop: start=0, step=1, limit=4
  $region2: #{posnet_forward.10} parent=0 // loop_pre_header
    _
  $region3: #{posnet_forward.10} parent=0 // loop_header
    %s11 = sphi 0, %s15
    %p12 = scmp.ge.s32.totalorder %s11, 4
    %s21 = sphi 0, %s23
    %s24 = sphi 0, %s21
    %s25 = sphi 0, %s24
    %s41 = sphi 0, %s25
    %s45 = sphi 0, %s45
    %s47 = sphi 0, %s45
    %s48 = sphi 0, %s47
    %s62 = sphi 0, %s48
    %s68 = sphi 0, %s70
    %s71 = sphi 0, %s68
    %s72 = sphi 0, %s71
    %s88 = sphi 0, %s72
    %s92 = sphi 0, %s92
    %s94 = sphi 0, %s92
    %s95 = sphi 0, %s94
    %s109 = sphi 0, %s95
    %s113 = sphi 0, %s113
    %s115 = sphi 0, %s113
    %s116 = sphi 0, %s115
    %s130 = sphi 0, %s116
    %s136 = sphi 0, %s138
    %s139 = sphi 0, %s136
    %s140 = sphi 0, %s139
    %s156 = sphi 0, %s140
  $region4: #{posnet_forward.10} parent=0 // loop_header_branch
    %14 = sbr.rel (%p12) target = $region8
  $region5: #{posnet_forward.10} parent=0 // loop_body
    %s16 = ssub.s32 %s11, 1
    %s17 = ssub.s32 %s11, 2
    %s18 = sadd.s32 %s11, 1
    %s19 = ssub.s32 %s11, %s18
    %p20 = scmp.eq.s32.totalorder %s19, 0
    %s22 = sadd.s32 %s21, 1
    %s23 = scalar_select %p20, %s21, %s22
    %p26 = pneg %p20
    %p27 = scmp.eq.s32.totalorder %s11, 1
    %p28 = por %p26, %p27
    %p29 = scmp.ne.s32.totalorder %s21, %s24
    %p30 = scmp.eq.s32.totalorder %s11, 0
    %p31 = por %p29, %p30
    %p32 = scmp.ne.s32.totalorder %s21, %s24
    %p33 = scmp.eq.s32.totalorder %s16, 1
    %p34 = por %p32, %p33
    %p35 = scmp.ne.s32.totalorder %s24, %s25
    %p36 = scmp.eq.s32.totalorder %s16, 0
    %p37 = por %p35, %p36
    %p38 = scmp.ne.s32.totalorder %s24, %s25
    %p39 = scmp.eq.s32.totalorder %s17, 1
    %p40 = por %p38, %p39
    %p42 = scmp.ne.s32.totalorder %s25, %s41
    %p43 = scmp.eq.s32.totalorder %s17, 0
    %p44 = por %p42, %p43
    %s46 = sadd.s32 %s45, 1
    %p49 = scmp.eq.s32.totalorder %s11, 1
    %p50 = scmp.ne.s32.totalorder %s45, %s47
    %p51 = scmp.eq.s32.totalorder %s11, 0
    %p52 = por %p50, %p51
    %p53 = scmp.ne.s32.totalorder %s45, %s47
    %p54 = scmp.eq.s32.totalorder %s16, 1
    %p55 = por %p53, %p54
    %p56 = scmp.ne.s32.totalorder %s47, %s48
    %p57 = scmp.eq.s32.totalorder %s16, 0
    %p58 = por %p56, %p57
    %p59 = scmp.ne.s32.totalorder %s47, %s48
    %p60 = scmp.eq.s32.totalorder %s17, 1
    %p61 = por %p59, %p60
    %p63 = scmp.ne.s32.totalorder %s48, %s62
    %p64 = scmp.eq.s32.totalorder %s17, 0
    %p65 = por %p63, %p64
    %s66 = ssub.s32 %s11, %s18
    %p67 = scmp.eq.s32.totalorder %s66, 0
    %s69 = sadd.s32 %s68, 1
    %s70 = scalar_select %p67, %s68, %s69
    %p73 = pneg %p67
    %p74 = scmp.eq.s32.totalorder %s11, 1
    %p75 = por %p73, %p74
    %p76 = scmp.ne.s32.totalorder %s68, %s71
    %p77 = scmp.eq.s32.totalorder %s11, 0
    %p78 = por %p76, %p77
    %p79 = scmp.ne.s32.totalorder %s68, %s71
    %p80 = scmp.eq.s32.totalorder %s16, 1
    %p81 = por %p79, %p80
    %p82 = scmp.ne.s32.totalorder %s71, %s72
    %p83 = scmp.eq.s32.totalorder %s16, 0
    %p84 = por %p82, %p83
    %p85 = scmp.ne.s32.totalorder %s71, %s72
    %p86 = scmp.eq.s32.totalorder %s17, 1
    %p87 = por %p85, %p86
    %p89 = scmp.ne.s32.totalorder %s72, %s88
    %p90 = scmp.eq.s32.totalorder %s17, 0
    %p91 = por %p89, %p90
    %s93 = sadd.s32 %s92, 1
    %p96 = scmp.eq.s32.totalorder %s11, 1
    %p97 = scmp.ne.s32.totalorder %s92, %s94
    %p98 = scmp.eq.s32.totalorder %s11, 0
    %p99 = por %p97, %p98
    %p100 = scmp.ne.s32.totalorder %s92, %s94
    %p101 = scmp.eq.s32.totalorder %s16, 1
    %p102 = por %p100, %p101
    %p103 = scmp.ne.s32.totalorder %s94, %s95
    %p104 = scmp.eq.s32.totalorder %s16, 0
    %p105 = por %p103, %p104
    %p106 = scmp.ne.s32.totalorder %s94, %s95
    %p107 = scmp.eq.s32.totalorder %s17, 1
    %p108 = por %p106, %p107
    %p110 = scmp.ne.s32.totalorder %s95, %s109
    %p111 = scmp.eq.s32.totalorder %s17, 0
    %p112 = por %p110, %p111
    %s114 = sadd.s32 %s113, 1
    %p117 = scmp.eq.s32.totalorder %s11, 1
    %p118 = scmp.ne.s32.totalorder %s113, %s115
    %p119 = scmp.eq.s32.totalorder %s11, 0
    %p120 = por %p118, %p119
    %p121 = scmp.ne.s32.totalorder %s113, %s115
    %p122 = scmp.eq.s32.totalorder %s16, 1
    %p123 = por %p121, %p122
    %p124 = scmp.ne.s32.totalorder %s115, %s116
    %p125 = scmp.eq.s32.totalorder %s16, 0
    %p126 = por %p124, %p125
    %p127 = scmp.ne.s32.totalorder %s115, %s116
    %p128 = scmp.eq.s32.totalorder %s17, 1
    %p129 = por %p127, %p128
    %p131 = scmp.ne.s32.totalorder %s116, %s130
    %p132 = scmp.eq.s32.totalorder %s17, 0
    %p133 = por %p131, %p132
    %s134 = ssub.s32 %s11, %s18
    %p135 = scmp.eq.s32.totalorder %s134, 0
    %s137 = sadd.s32 %s136, 1
    %s138 = scalar_select %p135, %s136, %s137
    %p141 = pneg %p135
    %p142 = scmp.eq.s32.totalorder %s11, 1
    %p143 = por %p141, %p142
    %p144 = scmp.ne.s32.totalorder %s136, %s139
    %p145 = scmp.eq.s32.totalorder %s11, 0
    %p146 = por %p144, %p145
    %p147 = scmp.ne.s32.totalorder %s136, %s139
    %p148 = scmp.eq.s32.totalorder %s16, 1
    %p149 = por %p147, %p148
    %p150 = scmp.ne.s32.totalorder %s139, %s140
    %p151 = scmp.eq.s32.totalorder %s16, 0
    %p152 = por %p150, %p151
    %p153 = scmp.ne.s32.totalorder %s139, %s140
    %p154 = scmp.eq.s32.totalorder %s17, 1
    %p155 = por %p153, %p154
    %p157 = scmp.ne.s32.totalorder %s140, %s156
    %p158 = scmp.eq.s32.totalorder %s17, 0
    %p159 = por %p157, %p158
    %p160 = scmp.le.s32.totalorder 1, %s11
    %p161 = scmp.lt.s32.totalorder %s11, 3
    %p162 = pnand %p160, %p161
    %p163 = pneg %p162
    // Predicated region
    $region9: #{posnet_forward.10} parent=5 // pred_check
      _
    $region10: #{posnet_forward.10} parent=5 // pred_check_branch
      %165 = sbr.rel (%p162) target = $region12
    $region11: #{posnet_forward.10} parent=5 // pred_region
      %s166 = ssub.s32 %s11, 1
      // Predicated region
      $region13: #{posnet_forward.10} parent=11 // pred_check
        %p167 = pneg %p58
      $region14: #{posnet_forward.10} parent=11 // pred_check_branch
        %169 = sbr.rel (%p167) target = $region16
      $region15: #{posnet_forward.10} parent=11 // pred_region
        _
      $region16: #{posnet_forward.10} parent=11 // pred_fallthru
        _
      // Predicated region
      $region17: #{posnet_forward.10} parent=11 // pred_check
        %p170 = pneg %p105
      $region18: #{posnet_forward.10} parent=11 // pred_check_branch
        %172 = sbr.rel (%p170) target = $region20
      $region19: #{posnet_forward.10} parent=11 // pred_region
        _
      $region20: #{posnet_forward.10} parent=11 // pred_fallthru
        _
      // Predicated region
      $region21: #{posnet_forward.10} parent=11 // pred_check
        %p173 = pneg %p126
      $region22: #{posnet_forward.10} parent=11 // pred_check_branch
        %175 = sbr.rel (%p173) target = $region24
      $region23: #{posnet_forward.10} parent=11 // pred_region
        _
      $region24: #{posnet_forward.10} parent=11 // pred_fallthru
        _
    $region12: #{posnet_forward.10} parent=5 // pred_fallthru
      _
    %p176 = scmp.lt.s32.totalorder %s11, 2
    // Predicated region
    $region25: #{posnet_forward.10} parent=5 // pred_check
      %p177 = pneg %p176
    $region26: #{posnet_forward.10} parent=5 // pred_check_branch
      %179 = sbr.rel (%p177) target = $region28
    $region27: #{posnet_forward.10} parent=5 // pred_region
      // Predicated region
      $region29: #{posnet_forward.10} parent=27 // pred_check
        %p180 = pneg %p31
      $region30: #{posnet_forward.10} parent=27 // pred_check_branch
        %182 = sbr.rel (%p180) target = $region32
      $region31: #{posnet_forward.10} parent=27 // pred_region
        %p183 = scmp.lt.s32.totalorder %s11, 1
        %s184 = scalar_select %p183, %s11, 1
        %s185 = smul.addr %s184, 6
        %s186 = smul.addr %s185, 8
        %s187 = scalar_lea.vmem %s0, %s186
      $region32: #{posnet_forward.10} parent=27 // pred_fallthru
        _
      // Predicated region
      $region33: #{posnet_forward.10} parent=27 // pred_check
        %p188 = pneg %p78
      $region34: #{posnet_forward.10} parent=27 // pred_check_branch
        %190 = sbr.rel (%p188) target = $region36
      $region35: #{posnet_forward.10} parent=27 // pred_region
        %p191 = scmp.lt.s32.totalorder %s11, 1
        %s192 = scalar_select %p191, %s11, 1
        %s193 = smul.addr %s192, 3
        %s194 = smul.addr %s193, 8
        %s195 = scalar_lea.vmem %s2, %s194
      $region36: #{posnet_forward.10} parent=27 // pred_fallthru
        _
    $region28: #{posnet_forward.10} parent=5 // pred_fallthru
      _
    %p196 = scmp.le.s32.totalorder 1, %s11
    %p197 = scmp.lt.s32.totalorder %s11, 3
    %p198 = pnand %p196, %p197
    %p199 = pneg %p198
    // Predicated region
    $region37: #{posnet_forward.10} parent=5 // pred_check
      _
    $region38: #{posnet_forward.10} parent=5 // pred_check_branch
      %201 = sbr.rel (%p198) target = $region40
    $region39: #{posnet_forward.10} parent=5 // pred_region
      %s202 = ssub.s32 %s11, 1
      %p203 = scmp.lt.s32.totalorder %s16, 1
      %s204 = scalar_select %p203, %s16, 1
      %s205 = smul.addr %s204, 6
      %s206 = smul.addr %s205, 8
      %s207 = scalar_lea.vmem %s0, %s206
      %p208 = pneg %p37
      %p209 = pneg %p34
      %p210 = pneg %p58
      %p211 = pneg %p55
      %p212 = scmp.lt.s32.totalorder %s16, 1
      %s213 = scalar_select %p212, %s16, 1
      %s214 = smul.addr %s213, 3
      %s215 = smul.addr %s214, 8
      %s216 = scalar_lea.vmem %s2, %s215
      %p217 = pneg %p84
      %p218 = pneg %p81
      %p219 = pneg %p105
      %p220 = pneg %p102
      %p221 = pneg %p126
      %p222 = pneg %p123
      %p223 = pneg %p152
      %p224 = pneg %p149
      %p225 = scmp.lt.s32.totalorder %s16, 1
      %s226 = scalar_select %p225, %s16, 1
      %s227 = smul.addr %s226, 3
      %s228 = smul.addr %s227, 8
      %s229 = scalar_lea.vmem %s5, %s228
      %p230 = scmp.lt.s32.totalorder %s16, 1
      %s231 = scalar_select %p230, %s16, 1
      %s232 = smul.addr %s231, 6
      %s233 = smul.addr %s232, 8
      %s234 = scalar_lea.vmem %s0, %s233
      %p235 = scmp.lt.s32.totalorder %s16, 1
      %s236 = scalar_select %p235, %s16, 1
      %s237 = smul.addr %s236, 3
      %s238 = smul.addr %s237, 8
      %s239 = scalar_lea.vmem %s2, %s238
      %p240 = scmp.lt.s32.totalorder %s16, 1
      %s241 = scalar_select %p240, %s16, 1
      %s242 = smul.addr %s241, 3
      %s243 = smul.addr %s242, 8
      %s244 = scalar_lea.vmem %s5, %s243
      %v246 = vld [vmem:[%s234] sm:$0xff]
      %v247 = vld [vmem:[%s234 + $0x8] sm:$0xff]
      %v248 = vld [vmem:[%s234 + $0x10] sm:$0xff]
      %v249 = vld [vmem:[%s234 + $0x18] sm:$0xff]
      %v250 = vld [vmem:[%s234 + $0x20] sm:$0xff]
      %v251 = vld [vmem:[%s234 + $0x28] sm:$0xff]
      %258 = vrot.lane.b32.xlu0 %v246, 127
      %v259 = vpop.permute.xlu0 %258
      %260 = vrot.lane.b32.xlu0 %v247, 127
      %v261 = vpop.permute.xlu0 %260
      %262 = vrot.lane.b32.xlu0 %v248, 127
      %v263 = vpop.permute.xlu0 %262
      %264 = vrot.lane.b32.xlu0 %v249, 127
      %v265 = vpop.permute.xlu0 %264
      %266 = vrot.lane.b32.xlu0 %v250, 127
      %v267 = vpop.permute.xlu0 %266
      %268 = vrot.lane.b32.xlu0 %v251, 127
      %v269 = vpop.permute.xlu0 %268
      %vm270 = vcmask 1039360
      %v271 = vsel %vm270, %v259, %v261
      %v272 = vsel %vm270, %v261, %v263
      %v273 = vsel %vm270, %v265, %v267
      %v274 = vsel %vm270, %v267, %v269
      %281 = vrot.lane.b32.xlu0 %v246, 126
      %v282 = vpop.permute.xlu0 %281
      %283 = vrot.lane.b32.xlu0 %v247, 126
      %v284 = vpop.permute.xlu0 %283
      %285 = vrot.lane.b32.xlu0 %v248, 126
      %v286 = vpop.permute.xlu0 %285
      %287 = vrot.lane.b32.xlu0 %v249, 126
      %v288 = vpop.permute.xlu0 %287
      %289 = vrot.lane.b32.xlu0 %v250, 126
      %v290 = vpop.permute.xlu0 %289
      %291 = vrot.lane.b32.xlu0 %v251, 126
      %v292 = vpop.permute.xlu0 %291
      %vm293 = vcmask 1031168
      %v294 = vsel %vm293, %v282, %v284
      %v295 = vsel %vm293, %v284, %v286
      %v296 = vsel %vm293, %v288, %v290
      %v297 = vsel %vm293, %v290, %v292
      %304 = vrot.lane.b32.xlu0 %v246, 110
      %v305 = vpop.permute.xlu0 %304
      %306 = vrot.lane.b32.xlu0 %v247, 110
      %v307 = vpop.permute.xlu0 %306
      %308 = vrot.lane.b32.xlu0 %v248, 110
      %v309 = vpop.permute.xlu0 %308
      %310 = vrot.lane.b32.xlu0 %v249, 110
      %v311 = vpop.permute.xlu0 %310
      %312 = vrot.lane.b32.xlu0 %v250, 110
      %v313 = vpop.permute.xlu0 %312
      %314 = vrot.lane.b32.xlu0 %v251, 110
      %v315 = vpop.permute.xlu0 %314
      %vm316 = vcmask 900096
      %v317 = vsel %vm316, %v305, %v307
      %v318 = vsel %vm316, %v307, %v309
      %v319 = vsel %vm316, %v311, %v313
      %v320 = vsel %vm316, %v313, %v315
      %327 = vrot.lane.b32.xlu0 %v246, 109
      %v328 = vpop.permute.xlu0 %327
      %329 = vrot.lane.b32.xlu0 %v247, 109
      %v330 = vpop.permute.xlu0 %329
      %331 = vrot.lane.b32.xlu0 %v248, 109
      %v332 = vpop.permute.xlu0 %331
      %333 = vrot.lane.b32.xlu0 %v249, 109
      %v334 = vpop.permute.xlu0 %333
      %335 = vrot.lane.b32.xlu0 %v250, 109
      %v336 = vpop.permute.xlu0 %335
      %337 = vrot.lane.b32.xlu0 %v251, 109
      %v338 = vpop.permute.xlu0 %337
      %vm339 = vcmask 891904
      %v340 = vsel %vm339, %v328, %v330
      %v341 = vsel %vm339, %v330, %v332
      %v342 = vsel %vm339, %v334, %v336
      %v343 = vsel %vm339, %v336, %v338
      %350 = vrot.lane.b32.xlu0 %v246, 108
      %v351 = vpop.permute.xlu0 %350
      %352 = vrot.lane.b32.xlu0 %v247, 108
      %v353 = vpop.permute.xlu0 %352
      %354 = vrot.lane.b32.xlu0 %v248, 108
      %v355 = vpop.permute.xlu0 %354
      %356 = vrot.lane.b32.xlu0 %v249, 108
      %v357 = vpop.permute.xlu0 %356
      %358 = vrot.lane.b32.xlu0 %v250, 108
      %v359 = vpop.permute.xlu0 %358
      %360 = vrot.lane.b32.xlu0 %v251, 108
      %v361 = vpop.permute.xlu0 %360
      %vm362 = vcmask 883712
      %v363 = vsel %vm362, %v351, %v353
      %v364 = vsel %vm362, %v353, %v355
      %v365 = vsel %vm362, %v357, %v359
      %v366 = vsel %vm362, %v359, %v361
      %373 = vrot.lane.b32.xlu0 %v246, 92
      %v374 = vpop.permute.xlu0 %373
      %375 = vrot.lane.b32.xlu0 %v247, 92
      %v376 = vpop.permute.xlu0 %375
      %377 = vrot.lane.b32.xlu0 %v248, 92
      %v378 = vpop.permute.xlu0 %377
      %379 = vrot.lane.b32.xlu0 %v249, 92
      %v380 = vpop.permute.xlu0 %379
      %381 = vrot.lane.b32.xlu0 %v250, 92
      %v382 = vpop.permute.xlu0 %381
      %383 = vrot.lane.b32.xlu0 %v251, 92
      %v384 = vpop.permute.xlu0 %383
      %vm385 = vcmask 752640
      %v386 = vsel %vm385, %v374, %v376
      %v387 = vsel %vm385, %v376, %v378
      %v388 = vsel %vm385, %v380, %v382
      %v389 = vsel %vm385, %v382, %v384
      %396 = vrot.lane.b32.xlu0 %v246, 91
      %v397 = vpop.permute.xlu0 %396
      %398 = vrot.lane.b32.xlu0 %v247, 91
      %v399 = vpop.permute.xlu0 %398
      %400 = vrot.lane.b32.xlu0 %v248, 91
      %v401 = vpop.permute.xlu0 %400
      %402 = vrot.lane.b32.xlu0 %v249, 91
      %v403 = vpop.permute.xlu0 %402
      %404 = vrot.lane.b32.xlu0 %v250, 91
      %v405 = vpop.permute.xlu0 %404
      %406 = vrot.lane.b32.xlu0 %v251, 91
      %v407 = vpop.permute.xlu0 %406
      %vm408 = vcmask 744448
      %v409 = vsel %vm408, %v397, %v399
      %v410 = vsel %vm408, %v399, %v401
      %v411 = vsel %vm408, %v403, %v405
      %v412 = vsel %vm408, %v405, %v407
      %419 = vrot.lane.b32.xlu0 %v246, 90
      %v420 = vpop.permute.xlu0 %419
      %421 = vrot.lane.b32.xlu0 %v247, 90
      %v422 = vpop.permute.xlu0 %421
      %423 = vrot.lane.b32.xlu0 %v248, 90
      %v424 = vpop.permute.xlu0 %423
      %425 = vrot.lane.b32.xlu0 %v249, 90
      %v426 = vpop.permute.xlu0 %425
      %427 = vrot.lane.b32.xlu0 %v250, 90
      %v428 = vpop.permute.xlu0 %427
      %429 = vrot.lane.b32.xlu0 %v251, 90
      %v430 = vpop.permute.xlu0 %429
      %vm431 = vcmask 736256
      %v432 = vsel %vm431, %v420, %v422
      %v433 = vsel %vm431, %v422, %v424
      %v434 = vsel %vm431, %v426, %v428
      %v435 = vsel %vm431, %v428, %v430
      %v442 = vld [vmem:[%s1] sm:$0xff]
      %v443 = vld [vmem:[%s1 + $0x8] sm:$0xff]
      %v444 = vpack.c.bf16 %v442, %v442
      %v445 = vpack.c.bf16 %v443, %v443
      %v446 = vpack.c.bf16 %v249, %v246
      %v447 = vpack.c.bf16 %v250, %v247
      %v448 = vpack.c.bf16 %v251, %v248
      %v449 = vpack.c.bf16 %v273, %v271
      %v450 = vpack.c.bf16 %v274, %v272
      %v451 = vpack.c.bf16 %v269, %v263
      %v452 = vpack.c.bf16 %v296, %v294
      %v453 = vpack.c.bf16 %v297, %v295
      %v454 = vpack.c.bf16 %v292, %v286
      %v455 = vpack.c.bf16 %v319, %v317
      %v456 = vpack.c.bf16 %v320, %v318
      %v457 = vpack.c.bf16 %v315, %v309
      %v458 = vpack.c.bf16 %v342, %v340
      %v459 = vpack.c.bf16 %v343, %v341
      %v460 = vpack.c.bf16 %v338, %v332
      %v461 = vpack.c.bf16 %v365, %v363
      %v462 = vpack.c.bf16 %v366, %v364
      %v463 = vpack.c.bf16 %v361, %v355
      %v464 = vpack.c.bf16 %v388, %v386
      %v465 = vpack.c.bf16 %v389, %v387
      %v466 = vpack.c.bf16 %v384, %v378
      %v467 = vpack.c.bf16 %v411, %v409
      %v468 = vpack.c.bf16 %v412, %v410
      %v469 = vpack.c.bf16 %v407, %v401
      %v470 = vpack.c.bf16 %v434, %v432
      %v471 = vpack.c.bf16 %v435, %v433
      %v472 = vpack.c.bf16 %v430, %v424
      %v473 = vld [vmem:[%s239] sm:$0xff]
      %v474 = vld [vmem:[%s239 + $0x8] sm:$0xff]
      %v475 = vld [vmem:[%s239 + $0x10] sm:$0xff]
      %479 = vrot.lane.b32.xlu0 %v473, 127
      %v480 = vpop.permute.xlu0 %479
      %481 = vrot.lane.b32.xlu0 %v474, 127
      %v482 = vpop.permute.xlu0 %481
      %483 = vrot.lane.b32.xlu0 %v475, 127
      %v484 = vpop.permute.xlu0 %483
      %v485 = vsel %vm270, %v480, %v482
      %v486 = vsel %vm270, %v482, %v484
      %490 = vrot.lane.b32.xlu0 %v473, 126
      %v491 = vpop.permute.xlu0 %490
      %492 = vrot.lane.b32.xlu0 %v474, 126
      %v493 = vpop.permute.xlu0 %492
      %494 = vrot.lane.b32.xlu0 %v475, 126
      %v495 = vpop.permute.xlu0 %494
      %v496 = vsel %vm293, %v491, %v493
      %v497 = vsel %vm293, %v493, %v495
      %501 = vrot.lane.b32.xlu0 %v473, 110
      %v502 = vpop.permute.xlu0 %501
      %503 = vrot.lane.b32.xlu0 %v474, 110
      %v504 = vpop.permute.xlu0 %503
      %505 = vrot.lane.b32.xlu0 %v475, 110
      %v506 = vpop.permute.xlu0 %505
      %v507 = vsel %vm316, %v502, %v504
      %v508 = vsel %vm316, %v504, %v506
      %512 = vrot.lane.b32.xlu0 %v473, 109
      %v513 = vpop.permute.xlu0 %512
      %514 = vrot.lane.b32.xlu0 %v474, 109
      %v515 = vpop.permute.xlu0 %514
      %516 = vrot.lane.b32.xlu0 %v475, 109
      %v517 = vpop.permute.xlu0 %516
      %v518 = vsel %vm339, %v513, %v515
      %v519 = vsel %vm339, %v515, %v517
      %523 = vrot.lane.b32.xlu0 %v473, 108
      %v524 = vpop.permute.xlu0 %523
      %525 = vrot.lane.b32.xlu0 %v474, 108
      %v526 = vpop.permute.xlu0 %525
      %527 = vrot.lane.b32.xlu0 %v475, 108
      %v528 = vpop.permute.xlu0 %527
      %v529 = vsel %vm362, %v524, %v526
      %v530 = vsel %vm362, %v526, %v528
      %534 = vrot.lane.b32.xlu0 %v473, 92
      %v535 = vpop.permute.xlu0 %534
      %536 = vrot.lane.b32.xlu0 %v474, 92
      %v537 = vpop.permute.xlu0 %536
      %538 = vrot.lane.b32.xlu0 %v475, 92
      %v539 = vpop.permute.xlu0 %538
      %v540 = vsel %vm385, %v535, %v537
      %v541 = vsel %vm385, %v537, %v539
      %545 = vrot.lane.b32.xlu0 %v473, 91
      %v546 = vpop.permute.xlu0 %545
      %547 = vrot.lane.b32.xlu0 %v474, 91
      %v548 = vpop.permute.xlu0 %547
      %549 = vrot.lane.b32.xlu0 %v475, 91
      %v550 = vpop.permute.xlu0 %549
      %v551 = vsel %vm408, %v546, %v548
      %v552 = vsel %vm408, %v548, %v550
      %556 = vrot.lane.b32.xlu0 %v473, 90
      %v557 = vpop.permute.xlu0 %556
      %558 = vrot.lane.b32.xlu0 %v474, 90
      %v559 = vpop.permute.xlu0 %558
      %560 = vrot.lane.b32.xlu0 %v475, 90
      %v561 = vpop.permute.xlu0 %560
      %v562 = vsel %vm431, %v557, %v559
      %v563 = vsel %vm431, %v559, %v561
      %v567 = vld [vmem:[%s3] sm:$0xff]
      %v568 = vpack.c.bf16 %v567, %v567
      %v569 = vpack.c.bf16 %v485, %v473
      %v570 = vpack.c.bf16 %v486, %v474
      %v571 = vpack.c.bf16 %v484, %v475
      %v572 = vpack.c.bf16 %v507, %v496
      %v573 = vpack.c.bf16 %v508, %v497
      %v574 = vpack.c.bf16 %v506, %v495
      %v575 = vpack.c.bf16 %v529, %v518
      %v576 = vpack.c.bf16 %v530, %v519
      %v577 = vpack.c.bf16 %v528, %v517
      %v578 = vpack.c.bf16 %v551, %v540
      %v579 = vpack.c.bf16 %v552, %v541
      %v580 = vpack.c.bf16 %v550, %v539
      %v581 = vpack.c.bf16 %v562, %v562
      %v582 = vpack.c.bf16 %v563, %v563
      %v583 = vpack.c.bf16 %v561, %v561
      %vm584 = vcmask 588800
      %v586 = vsel %vm584, %v568, 0
      %vm588 = vcmask 1043456
      %v590 = vsel %vm588, %v581, 0
      %v593 = vsel %vm588, %v582, 0
      %v596 = vsel %vm588, %v583, 0
      %598 = vmatpush.bf16.msra.mxu0 0
      %599 = vmatpush.bf16.msra.mxu0 0
      %600 = vmatpush.bf16.msra.mxu0 0
      %601 = vmatpush.bf16.msra.mxu0 %v590
      %602 = vmatpush.bf16.msra.mxu0 %v578
      %603 = vmatpush.bf16.msra.mxu0 %v575
      %604 = vmatpush.bf16.msra.mxu0 %v572
      %605 = vmatpush.bf16.msra.mxu0 %v569
      %606 = vmatmul.bf16.gmra.mxu0 %v586
      %v607 = vpop.f32.mrf.mxu0
      %v608 = vadd.f32 0.0, %v607
      %v609 = vpop.f32.mrf.mxu0
      %610 = vdwg.mxu0
      %611 = vmatpush.bf16.msra.mxu0 0
      %612 = vmatpush.bf16.msra.mxu0 0
      %613 = vmatpush.bf16.msra.mxu0 0
      %614 = vmatpush.bf16.msra.mxu0 %v593
      %615 = vmatpush.bf16.msra.mxu0 %v579
      %616 = vmatpush.bf16.msra.mxu0 %v576
      %617 = vmatpush.bf16.msra.mxu0 %v573
      %618 = vmatpush.bf16.msra.mxu0 %v570
      %619 = vmatmul.bf16.gmra.mxu0 %v586
      %v620 = vpop.f32.mrf.mxu0
      %v621 = vadd.f32 0.0, %v620
      %v622 = vpop.f32.mrf.mxu0
      %623 = vdwg.mxu0
      %624 = vmatpush.bf16.msra.mxu0 0
      %625 = vmatpush.bf16.msra.mxu0 0
      %626 = vmatpush.bf16.msra.mxu0 0
      %627 = vmatpush.bf16.msra.mxu0 %v596
      %628 = vmatpush.bf16.msra.mxu0 %v580
      %629 = vmatpush.bf16.msra.mxu0 %v577
      %630 = vmatpush.bf16.msra.mxu0 %v574
      %631 = vmatpush.bf16.msra.mxu0 %v571
      %632 = vmatmul.bf16.gmra.mxu0 %v586
      %v633 = vpop.f32.mrf.mxu0
      %v634 = vadd.f32 0.0, %v633
      %v635 = vpop.f32.mrf.mxu0
      %636 = vdwg.mxu0
      %vm637 = vcmask 130048
      %v639 = vsel %vm637, %v445, 0
      %641 = vmatpush.bf16.msra.mxu0 %v467
      %642 = vmatpush.bf16.msra.mxu0 %v464
      %643 = vmatpush.bf16.msra.mxu0 %v461
      %644 = vmatpush.bf16.msra.mxu0 %v458
      %645 = vmatpush.bf16.msra.mxu0 %v455
      %646 = vmatpush.bf16.msra.mxu0 %v452
      %647 = vmatpush.bf16.msra.mxu0 %v449
      %648 = vmatpush.bf16.msra.mxu0 %v446
      %649 = vmatmul.bf16.gmra.mxu0 %v444
      %v650 = vpop.f32.mrf.mxu0
      %v651 = vadd.f32 %v608, %v650
      %v652 = vpop.f32.mrf.mxu0
      %653 = vdwg.mxu0
      %654 = vmatpush.bf16.msra.mxu0 0
      %655 = vmatpush.bf16.msra.mxu0 0
      %656 = vmatpush.bf16.msra.mxu0 0
      %657 = vmatpush.bf16.msra.mxu0 0
      %658 = vmatpush.bf16.msra.mxu0 0
      %659 = vmatpush.bf16.msra.mxu0 0
      %660 = vmatpush.bf16.msra.mxu0 0
      %661 = vmatpush.bf16.msra.mxu0 %v470
      %662 = vmatmul.bf16.gmra.mxu0 %v639
      %v663 = vpop.f32.mrf.mxu0
      %v664 = vadd.f32 %v651, %v663
      %v665 = vpop.f32.mrf.mxu0
      %666 = vdwg.mxu0
      %667 = vmatpush.bf16.msra.mxu0 %v468
      %668 = vmatpush.bf16.msra.mxu0 %v465
      %669 = vmatpush.bf16.msra.mxu0 %v462
      %670 = vmatpush.bf16.msra.mxu0 %v459
      %671 = vmatpush.bf16.msra.mxu0 %v456
      %672 = vmatpush.bf16.msra.mxu0 %v453
      %673 = vmatpush.bf16.msra.mxu0 %v450
      %674 = vmatpush.bf16.msra.mxu0 %v447
      %675 = vmatmul.bf16.gmra.mxu0 %v444
      %v676 = vpop.f32.mrf.mxu0
      %v677 = vadd.f32 %v621, %v676
      %v678 = vpop.f32.mrf.mxu0
      %679 = vdwg.mxu0
      %680 = vmatpush.bf16.msra.mxu0 0
      %681 = vmatpush.bf16.msra.mxu0 0
      %682 = vmatpush.bf16.msra.mxu0 0
      %683 = vmatpush.bf16.msra.mxu0 0
      %684 = vmatpush.bf16.msra.mxu0 0
      %685 = vmatpush.bf16.msra.mxu0 0
      %686 = vmatpush.bf16.msra.mxu0 0
      %687 = vmatpush.bf16.msra.mxu0 %v471
      %688 = vmatmul.bf16.gmra.mxu0 %v639
      %v689 = vpop.f32.mrf.mxu0
      %v690 = vadd.f32 %v677, %v689
      %v691 = vpop.f32.mrf.mxu0
      %692 = vdwg.mxu0
      %693 = vmatpush.bf16.msra.mxu0 %v469
      %694 = vmatpush.bf16.msra.mxu0 %v466
      %695 = vmatpush.bf16.msra.mxu0 %v463
      %696 = vmatpush.bf16.msra.mxu0 %v460
      %697 = vmatpush.bf16.msra.mxu0 %v457
      %698 = vmatpush.bf16.msra.mxu0 %v454
      %699 = vmatpush.bf16.msra.mxu0 %v451
      %700 = vmatpush.bf16.msra.mxu0 %v448
      %701 = vmatmul.bf16.gmra.mxu0 %v444
      %v702 = vpop.f32.mrf.mxu0
      %v703 = vadd.f32 %v634, %v702
      %v704 = vpop.f32.mrf.mxu0
      %705 = vdwg.mxu0
      %706 = vmatpush.bf16.msra.mxu0 0
      %707 = vmatpush.bf16.msra.mxu0 0
      %708 = vmatpush.bf16.msra.mxu0 0
      %709 = vmatpush.bf16.msra.mxu0 0
      %710 = vmatpush.bf16.msra.mxu0 0
      %711 = vmatpush.bf16.msra.mxu0 0
      %712 = vmatpush.bf16.msra.mxu0 0
      %713 = vmatpush.bf16.msra.mxu0 %v472
      %714 = vmatmul.bf16.gmra.mxu0 %v639
      %v715 = vpop.f32.mrf.mxu0
      %v716 = vadd.f32 %v703, %v715
      %v717 = vpop.f32.mrf.mxu0
      %718 = vdwg.mxu0
      %v719 = vld [vmem:[%s4] sm:$0xff]
      %721 = vset.pattern.permute.xlu0 0
      %722 = vperm.xlu0 %721, %v719
      %v723 = vpop.permute.xlu0 %722
      %v725 = vadd.f32 %v664, %v723
      %v726 = vadd.f32 %v690, %v723
      %v727 = vadd.f32 %v716, %v723
      %v728 = vmax.f32 %v725, 0.0
      %v729 = vmax.f32 %v726, 0.0
      %v730 = vmax.f32 %v727, 0.0
      %731 = vst [vmem:[%s244] sm:$0xff] %v728
      %732 = vst [vmem:[%s244 + $0x8] sm:$0xff] %v729
      %vm733 = vcmask 261120
      %734 = vst.msk [vmem:[%s244 + $0x10] sm:$0xff] %vm733, %v730
      %p735 = scmp.lt.s32.totalorder %s16, 1
      %s736 = scalar_select %p735, %s16, 1
      %s737 = smul.addr %s736, 3
      %s738 = smul.addr %s737, 8
      %s739 = scalar_lea.vmem %s5, %s738
      // Predicated region
      $region41: #{posnet_forward.10} parent=39 // pred_check
        %p740 = pneg %p149
      $region42: #{posnet_forward.10} parent=39 // pred_check_branch
        %742 = sbr.rel (%p740) target = $region44
      $region43: #{posnet_forward.10} parent=39 // pred_region
        _
      $region44: #{posnet_forward.10} parent=39 // pred_fallthru
        _
    $region40: #{posnet_forward.10} parent=5 // pred_fallthru
      _
    %p743 = scmp.le.s32.totalorder 2, %s11
    // Predicated region
    $region45: #{posnet_forward.10} parent=5 // pred_check
      %p744 = pneg %p743
    $region46: #{posnet_forward.10} parent=5 // pred_check_branch
      %746 = sbr.rel (%p744) target = $region48
    $region47: #{posnet_forward.10} parent=5 // pred_region
      %s747 = ssub.s32 %s11, 2
      // Predicated region
      $region49: #{posnet_forward.10} parent=47 // pred_check
        %p748 = pneg %p155
      $region50: #{posnet_forward.10} parent=47 // pred_check_branch
        %750 = sbr.rel (%p748) target = $region52
      $region51: #{posnet_forward.10} parent=47 // pred_region
        %p751 = scmp.lt.s32.totalorder %s17, 1
        %s752 = scalar_select %p751, %s17, 1
        %s753 = smul.addr %s752, 3
        %s754 = smul.addr %s753, 8
        %s755 = scalar_lea.vmem %s5, %s754
      $region52: #{posnet_forward.10} parent=47 // pred_fallthru
        _
    $region48: #{posnet_forward.10} parent=5 // pred_fallthru
      _
  $region6: #{posnet_forward.10} parent=0 // loop_footer
    %s15 = sadd.s32 1, %s11
  $region7: #{posnet_forward.10} parent=0 // loop_footer_branch
    %10 = sbr.rel target = $region3
  $region8: #{posnet_forward.10} parent=0 // loop_exit
    _

</llo_original>
